<compile_context>
chip_gen: v7x
topology: tpu7x:2x2x1
jax: 0.10.0
libtpu: 0.0.40
codegen_flags: <defaults>
</compile_context>

<pallas_src>
import jax
import jax.numpy as jnp
import numpy as np
from jax import lax
from jax.experimental import pallas as pl
from jax.experimental.pallas import tpu as pltpu

P_DROP = 0.4


# ------------------------------------------------------------- fused kernel
def _make_fused_kernel(num_layers, p_drop):
    """Builds a kernel: dropout -> num_layers x LSTM -> Linear, fully fused."""

    def kernel(*refs):
        n_in = 2 + 3 * num_layers + 2
        seed_ref = refs[0]                       # SMEM (1,) int32
        x_ref = refs[1]                          # (B, T, Din)
        layer_refs = refs[2:2 + 3 * num_layers]  # per layer: w_ih(D,4H), w_hh(H,4H), b(1,4H)
        fc_w_ref = refs[n_in - 2]                # (H, O)
        fc_b_ref = refs[n_in - 1]                # (1, O)
        out_ref = refs[n_in]                     # (B, T, O)
        hid_ref = refs[n_in + 1]                 # (L, B, H)
        xdrop_ref = refs[n_in + 2]               # (B, T, Din)
        y_scr = refs[n_in + 3]                   # VMEM scratch (B, T, H)

        B, T, Din = x_ref.shape
        H = layer_refs[1].shape[0]
        O = fc_w_ref.shape[1]

        # ---------------- dropout (train mode, p=p_drop) -------------------
        # Counter-based integer hash -> 23 uniform bits -> threshold compare.
        x = x_ref[...]
        seed = seed_ref[0]
        i0 = lax.broadcasted_iota(jnp.int32, (B, T, Din), 0)
        i1 = lax.broadcasted_iota(jnp.int32, (B, T, Din), 1)
        i2 = lax.broadcasted_iota(jnp.int32, (B, T, Din), 2)
        v = i0 * jnp.int32(T * Din) + i1 * jnp.int32(Din) + i2 + seed
        v = v ^ lax.shift_right_logical(v, 16)
        v = v * jnp.int32(0x7FEB352D)
        v = v ^ lax.shift_right_logical(v, 15)
        v = v * jnp.int32(0x68E31DA5)
        v = v ^ lax.shift_right_logical(v, 16)
        r = jnp.bitwise_and(v, jnp.int32(0x7FFFFF))          # 23 uniform bits
        thr = jnp.int32(int(p_drop * float(1 << 23)))
        keep = r >= thr
        scale = jnp.float32(1.0 / (1.0 - p_drop))
        x_d = jnp.where(keep, x * scale, jnp.zeros_like(x))
        xdrop_ref[...] = x_d

        # ---------------- hoist weights / biases (already transposed) ------
        ws = []
        for l in range(num_layers):
            wih = layer_refs[3 * l][...]                     # (D_l, 4H)
            whh = layer_refs[3 * l + 1][...]                 # (H, 4H)
            b = jnp.broadcast_to(layer_refs[3 * l + 2][...], (B, 4 * H))
            ws.append((wih, whh, b))

        h = [jnp.zeros((B, H), jnp.float32) for _ in range(num_layers)]
        c = [jnp.zeros((B, H), jnp.float32) for _ in range(num_layers)]

        # ---------------- statically-unrolled time loop --------------------
        for t in range(T):
            inp = x_d[:, t, :]                               # (B, D_l)
            for l in range(num_layers):
                wih, whh, b = ws[l]
                z = (jnp.dot(inp, wih, preferred_element_type=jnp.float32)
                     + jnp.dot(h[l], whh, preferred_element_type=jnp.float32)
                     + b)                                    # (B, 4H)
                s = jax.nn.sigmoid(z)                        # full-width EUP
                tg = jnp.tanh(z)                             # full-width EUP
                i_g = s[:, 0:H]
                f_g = s[:, H:2 * H]
                g_g = tg[:, 2 * H:3 * H]
                o_g = s[:, 3 * H:4 * H]
                c[l] = f_g * c[l] + i_g * g_g
                h[l] = o_g * jnp.tanh(c[l])
                inp = h[l]
            y_scr[:, t, :] = h[num_layers - 1]               # stays in VMEM

        # ---------------- final Linear (single matmul, single store) -------
        y = y_scr[...].reshape(B * T, H)
        out = (jnp.dot(y, fc_w_ref[...], preferred_element_type=jnp.float32)
               + fc_b_ref[...])
        out_ref[...] = out.reshape(B, T, O)

        for l in range(num_layers):
            hid_ref[l] = h[l]

    return kernel


# ------------------------------------------------------------- full forward
def model_forward(x, params, seed):
    """x: (B, T, input_size) -> (output (B, T, O), hidden (L, B, H), x_dropped)."""
    B, T, Din = x.shape
    H = params["hidden_dim"]
    L = len(params["lstm"])
    O = params["fc_w"].shape[0]

    args = [jnp.array([seed], dtype=jnp.int32), x]
    in_specs = [pl.BlockSpec(memory_space=pltpu.MemorySpace.SMEM),
                pl.BlockSpec(memory_space=pltpu.MemorySpace.VMEM)]
    for (w_ih, w_hh, b_ih, b_hh) in params["lstm"]:
        # pre-transpose weights once, combine biases once (host/XLA side)
        args += [w_ih.T, w_hh.T, (b_ih + b_hh).reshape(1, -1)]
        in_specs += [pl.BlockSpec(memory_space=pltpu.MemorySpace.VMEM)] * 3
    args += [params["fc_w"].T, params["fc_b"].reshape(1, -1)]
    in_specs += [pl.BlockSpec(memory_space=pltpu.MemorySpace.VMEM)] * 2

    kernel = _make_fused_kernel(L, P_DROP)
    out, hidden, x_d = pl.pallas_call(
        kernel,
        out_shape=(jax.ShapeDtypeStruct((B, T, O), jnp.float32),
                   jax.ShapeDtypeStruct((L, B, H), jnp.float32),
                   jax.ShapeDtypeStruct((B, T, Din), jnp.float32)),
        in_specs=in_specs,
        out_specs=(pl.BlockSpec(memory_space=pltpu.MemorySpace.VMEM),
                   pl.BlockSpec(memory_space=pltpu.MemorySpace.VMEM),
                   pl.BlockSpec(memory_space=pltpu.MemorySpace.VMEM)),
        scratch_shapes=[pltpu.VMEM((B, T, H), jnp.float32)],
    )(*args)
    return out, hidden, x_d


# ------------------------------------------------------------- pure-JAX ref
def ref_forward(x_dropped, params):
    B, T, _ = x_dropped.shape
    inp = x_dropped
    hs = []
    for (w_ih, w_hh, b_ih, b_hh) in params["lstm"]:
        H = w_hh.shape[1]
        h = jnp.zeros((B, H), jnp.float32)
        c = jnp.zeros((B, H), jnp.float32)
        ys = []
        for t in range(T):
            z = inp[:, t, :] @ w_ih.T + h @ w_hh.T + b_ih + b_hh
            i = jax.nn.sigmoid(z[:, :H])
            f = jax.nn.sigmoid(z[:, H:2 * H])
            g = jnp.tanh(z[:, 2 * H:3 * H])
            o = jax.nn.sigmoid(z[:, 3 * H:])
            c = f * c + i * g
            h = o * jnp.tanh(c)
            ys.append(h)
        inp = jnp.stack(ys, axis=1)
        hs.append(h)
    out = inp @ params["fc_w"].T + params["fc_b"]
    return out, jnp.stack(hs, axis=0)


# ----------------------------------------------------------------- __main__
if __name__ == "__main__":
    batch, seq = 2, 8
    input_size, hidden_dim, output_size, num_layers = 16, 32, 24, 2

    key = jax.random.PRNGKey(0)
    key, xk = jax.random.split(key)
    x = jax.random.normal(xk, (batch, seq, input_size), dtype=jnp.float32)

    # PyTorch-style init: uniform(-1/sqrt(H), 1/sqrt(H)) for all LSTM params.
    k = 1.0 / np.sqrt(hidden_dim)
    lstm_params = []
    for l in range(num_layers):
        d_in = input_size if l == 0 else hidden_dim
        key, k1, k2, k3, k4 = jax.random.split(key, 5)
        w_ih = jax.random.uniform(k1, (4 * hidden_dim, d_in), jnp.float32, -k, k)
        w_hh = jax.random.uniform(k2, (4 * hidden_dim, hidden_dim), jnp.float32, -k, k)
        b_ih = jax.random.uniform(k3, (4 * hidden_dim,), jnp.float32, -k, k)
        b_hh = jax.random.uniform(k4, (4 * hidden_dim,), jnp.float32, -k, k)
        lstm_params.append((w_ih, w_hh, b_ih, b_hh))

    key, k5, k6 = jax.random.split(key, 3)
    kf = 1.0 / np.sqrt(hidden_dim)
    fc_w = jax.random.uniform(k5, (output_size, hidden_dim), jnp.float32, -kf, kf)
    fc_b = jax.random.uniform(k6, (output_size,), jnp.float32, -kf, kf)

    params = {"lstm": lstm_params, "fc_w": fc_w, "fc_b": fc_b,
              "hidden_dim": hidden_dim}

    out, hidden, x_dropped = model_forward(x, params, seed=1234)
    jax.block_until_ready((out, hidden, x_dropped))

    # Verify LSTM + Linear against a pure-JAX reference on the same dropped
    # input.  (Dropout RNG stream intentionally differs from torch; inverted
    # dropout semantics match nn.Dropout(0.4) in train mode.)
    out_ref, hidden_ref = ref_forward(x_dropped, params)
    np.testing.assert_allclose(np.asarray(out), np.asarray(out_ref),
                               rtol=1e-4, atol=1e-4)
    np.testing.assert_allclose(np.asarray(hidden), np.asarray(hidden_ref),
                               rtol=1e-4, atol=1e-4)

    assert out.shape == (batch, seq, output_size)
    assert hidden.shape == (num_layers, batch, hidden_dim)
    print("KERNEL_OK")
</pallas_src>

<mosaic_0001>
module attributes {stable_mosaic.version = 11 : i64} {
  func.func @kernel(%arg0: memref<1xi32, #tpu.memory_space<smem>>, %arg1: memref<2x8x16xf32, #tpu.memory_space<vmem>>, %arg2: memref<16x128xf32, #tpu.memory_space<vmem>>, %arg3: memref<32x128xf32, #tpu.memory_space<vmem>>, %arg4: memref<1x128xf32, #tpu.memory_space<vmem>>, %arg5: memref<32x128xf32, #tpu.memory_space<vmem>>, %arg6: memref<32x128xf32, #tpu.memory_space<vmem>>, %arg7: memref<1x128xf32, #tpu.memory_space<vmem>>, %arg8: memref<32x24xf32, #tpu.memory_space<vmem>>, %arg9: memref<1x24xf32, #tpu.memory_space<vmem>>, %arg10: memref<2x8x24xf32, #tpu.memory_space<vmem>>, %arg11: memref<2x2x32xf32, #tpu.memory_space<vmem>>, %arg12: memref<2x8x16xf32, #tpu.memory_space<vmem>>, %arg13: memref<2x8x32xf32, #tpu.memory_space<vmem>>) attributes {dimension_semantics = [], scalar_prefetch = 0 : i64, scratch_operands = 1 : i64, tpu.core_type = #tpu.core_type<tc>} {
    %c0 = arith.constant 0 : index
    %c0_0 = arith.constant 0 : index
    %c0_1 = arith.constant 0 : index
    %0 = vector.load %arg1[%c0, %c0_0, %c0_1] : memref<2x8x16xf32, #tpu.memory_space<vmem>>, vector<2x8x16xf32>
    %c0_2 = arith.constant 0 : index
    %1 = memref.load %arg0[%c0_2] : memref<1xi32, #tpu.memory_space<smem>>
    %2 = tpu.iota {dimensions = array<i32: 0>} : vector<2x8x16xi32>
    %3 = tpu.iota {dimensions = array<i32: 1>} : vector<2x8x16xi32>
    %4 = tpu.iota {dimensions = array<i32: 2>} : vector<2x8x16xi32>
    %c128_i32 = arith.constant 128 : i32
    %5 = vector.broadcast %c128_i32 : i32 to vector<2x8x16xi32>
    %6 = arith.muli %2, %5 : vector<2x8x16xi32>
    %c16_i32 = arith.constant 16 : i32
    %7 = vector.broadcast %c16_i32 : i32 to vector<2x8x16xi32>
    %8 = arith.muli %3, %7 : vector<2x8x16xi32>
    %9 = arith.addi %6, %8 : vector<2x8x16xi32>
    %10 = arith.addi %9, %4 : vector<2x8x16xi32>
    %11 = vector.broadcast %1 : i32 to vector<2x8x16xi32>
    %12 = arith.addi %10, %11 : vector<2x8x16xi32>
    %c16_i32_3 = arith.constant 16 : i32
    %13 = vector.broadcast %c16_i32_3 : i32 to vector<2x8x16xi32>
    %14 = arith.shrui %12, %13 : vector<2x8x16xi32>
    %15 = arith.xori %12, %14 : vector<2x8x16xi32>
    %c2146121005_i32 = arith.constant 2146121005 : i32
    %16 = vector.broadcast %c2146121005_i32 : i32 to vector<2x8x16xi32>
    %17 = arith.muli %15, %16 : vector<2x8x16xi32>
    %c15_i32 = arith.constant 15 : i32
    %18 = vector.broadcast %c15_i32 : i32 to vector<2x8x16xi32>
    %19 = arith.shrui %17, %18 : vector<2x8x16xi32>
    %20 = arith.xori %17, %19 : vector<2x8x16xi32>
    %c1759714725_i32 = arith.constant 1759714725 : i32
    %21 = vector.broadcast %c1759714725_i32 : i32 to vector<2x8x16xi32>
    %22 = arith.muli %20, %21 : vector<2x8x16xi32>
    %c16_i32_4 = arith.constant 16 : i32
    %23 = vector.broadcast %c16_i32_4 : i32 to vector<2x8x16xi32>
    %24 = arith.shrui %22, %23 : vector<2x8x16xi32>
    %25 = arith.xori %22, %24 : vector<2x8x16xi32>
    %c8388607_i32 = arith.constant 8388607 : i32
    %26 = vector.broadcast %c8388607_i32 : i32 to vector<2x8x16xi32>
    %27 = arith.andi %25, %26 : vector<2x8x16xi32>
    %c3355443_i32 = arith.constant 3355443 : i32
    %28 = vector.broadcast %c3355443_i32 : i32 to vector<2x8x16xi32>
    %29 = arith.cmpi sge, %27, %28 : vector<2x8x16xi32>
    %cst = arith.constant 1.66666663 : f32
    %30 = vector.broadcast %cst : f32 to vector<2x8x16xf32>
    %31 = arith.mulf %0, %30 : vector<2x8x16xf32>
    %cst_5 = arith.constant 0.000000e+00 : f32
    %32 = vector.broadcast %cst_5 : f32 to vector<2x8x16xf32>
    %33 = arith.select %29, %31, %32 : vector<2x8x16xi1>, vector<2x8x16xf32>
    %c0_6 = arith.constant 0 : index
    %c0_7 = arith.constant 0 : index
    %c0_8 = arith.constant 0 : index
    %34 = vector.load %arg12[%c0_6, %c0_7, %c0_8] : memref<2x8x16xf32, #tpu.memory_space<vmem>>, vector<2x8x16xf32>
    tpu.vector_store %arg12[%c0_6, %c0_7, %c0_8], %33 {strides = array<i32>} : memref<2x8x16xf32, #tpu.memory_space<vmem>>, vector<2x8x16xf32>,
    %c0_9 = arith.constant 0 : index
    %c0_10 = arith.constant 0 : index
    %35 = vector.load %arg2[%c0_9, %c0_10] : memref<16x128xf32, #tpu.memory_space<vmem>>, vector<16x128xf32>
    %c0_11 = arith.constant 0 : index
    %c0_12 = arith.constant 0 : index
    %36 = vector.load %arg3[%c0_11, %c0_12] : memref<32x128xf32, #tpu.memory_space<vmem>>, vector<32x128xf32>
    %c0_13 = arith.constant 0 : index
    %c0_14 = arith.constant 0 : index
    %37 = vector.load %arg4[%c0_13, %c0_14] : memref<1x128xf32, #tpu.memory_space<vmem>>, vector<1x128xf32>
    %38 = vector.shape_cast %37 : vector<1x128xf32> to vector<1x128xf32>
    %39 = vector.broadcast %38 : vector<1x128xf32> to vector<2x128xf32>
    %c0_15 = arith.constant 0 : index
    %c0_16 = arith.constant 0 : index
    %40 = vector.load %arg5[%c0_15, %c0_16] : memref<32x128xf32, #tpu.memory_space<vmem>>, vector<32x128xf32>
    %c0_17 = arith.constant 0 : index
    %c0_18 = arith.constant 0 : index
    %41 = vector.load %arg6[%c0_17, %c0_18] : memref<32x128xf32, #tpu.memory_space<vmem>>, vector<32x128xf32>
    %c0_19 = arith.constant 0 : index
    %c0_20 = arith.constant 0 : index
    %42 = vector.load %arg7[%c0_19, %c0_20] : memref<1x128xf32, #tpu.memory_space<vmem>>, vector<1x128xf32>
    %43 = vector.shape_cast %42 : vector<1x128xf32> to vector<1x128xf32>
    %44 = vector.broadcast %43 : vector<1x128xf32> to vector<2x128xf32>
    %cst_21 = arith.constant 0.000000e+00 : f32
    %45 = vector.broadcast %cst_21 : f32 to vector<2x32xf32>
    %cst_22 = arith.constant 0.000000e+00 : f32
    %46 = vector.broadcast %cst_22 : f32 to vector<2x32xf32>
    %cst_23 = arith.constant 0.000000e+00 : f32
    %47 = vector.broadcast %cst_23 : f32 to vector<2x32xf32>
    %cst_24 = arith.constant 0.000000e+00 : f32
    %48 = vector.broadcast %cst_24 : f32 to vector<2x32xf32>
    %49 = vector.extract_strided_slice %33 {offsets = [0, 0, 0], sizes = [2, 1, 16], strides = [1, 1, 1]} : vector<2x8x16xf32> to vector<2x1x16xf32>
    %50 = vector.shape_cast %49 : vector<2x1x16xf32> to vector<2x16xf32>
    %cst_25 = arith.constant dense<0.000000e+00> : vector<2x128xf32>
    %51 = tpu.matmul %50, %35, %cst_25 {dimension_numbers = #tpu.dot_dimension_numbers<[1], [0], [0], [1], [0, 0, 1, 1], [], []>} : vector<2x16xf32>, vector<16x128xf32>, vector<2x128xf32> -> vector<2x128xf32>
    %cst_26 = arith.constant dense<0.000000e+00> : vector<2x128xf32>
    %52 = tpu.matmul %45, %36, %cst_26 {dimension_numbers = #tpu.dot_dimension_numbers<[1], [0], [0], [1], [0, 0, 1, 1], [], []>} : vector<2x32xf32>, vector<32x128xf32>, vector<2x128xf32> -> vector<2x128xf32>
    %53 = arith.addf %51, %52 : vector<2x128xf32>
    %54 = arith.addf %53, %39 : vector<2x128xf32>
    %55 = arith.negf %54 : vector<2x128xf32>
    %56 = math.exp %55 : vector<2x128xf32>
    %cst_27 = arith.constant 1.000000e+00 : f32
    %57 = vector.broadcast %cst_27 : f32 to vector<2x128xf32>
    %58 = arith.addf %57, %56 : vector<2x128xf32>
    %59 = arith.divf %57, %58 : vector<2x128xf32>
    %60 = math.tanh %54 : vector<2x128xf32>
    %61 = vector.extract_strided_slice %59 {offsets = [0, 0], sizes = [2, 32], strides = [1, 1]} : vector<2x128xf32> to vector<2x32xf32>
    %62 = vector.extract_strided_slice %59 {offsets = [0, 32], sizes = [2, 32], strides = [1, 1]} : vector<2x128xf32> to vector<2x32xf32>
    %63 = vector.extract_strided_slice %60 {offsets = [0, 64], sizes = [2, 32], strides = [1, 1]} : vector<2x128xf32> to vector<2x32xf32>
    %64 = vector.extract_strided_slice %59 {offsets = [0, 96], sizes = [2, 32], strides = [1, 1]} : vector<2x128xf32> to vector<2x32xf32>
    %65 = arith.mulf %62, %47 : vector<2x32xf32>
    %66 = arith.mulf %61, %63 : vector<2x32xf32>
    %67 = arith.addf %65, %66 : vector<2x32xf32>
    %68 = math.tanh %67 : vector<2x32xf32>
    %69 = arith.mulf %64, %68 : vector<2x32xf32>
    %cst_28 = arith.constant dense<0.000000e+00> : vector<2x128xf32>
    %70 = tpu.matmul %69, %40, %cst_28 {dimension_numbers = #tpu.dot_dimension_numbers<[1], [0], [0], [1], [0, 0, 1, 1], [], []>} : vector<2x32xf32>, vector<32x128xf32>, vector<2x128xf32> -> vector<2x128xf32>
    %cst_29 = arith.constant dense<0.000000e+00> : vector<2x128xf32>
    %71 = tpu.matmul %46, %41, %cst_29 {dimension_numbers = #tpu.dot_dimension_numbers<[1], [0], [0], [1], [0, 0, 1, 1], [], []>} : vector<2x32xf32>, vector<32x128xf32>, vector<2x128xf32> -> vector<2x128xf32>
    %72 = arith.addf %70, %71 : vector<2x128xf32>
    %73 = arith.addf %72, %44 : vector<2x128xf32>
    %74 = arith.negf %73 : vector<2x128xf32>
    %75 = math.exp %74 : vector<2x128xf32>
    %cst_30 = arith.constant 1.000000e+00 : f32
    %76 = vector.broadcast %cst_30 : f32 to vector<2x128xf32>
    %77 = arith.addf %76, %75 : vector<2x128xf32>
    %78 = arith.divf %76, %77 : vector<2x128xf32>
    %79 = math.tanh %73 : vector<2x128xf32>
    %80 = vector.extract_strided_slice %78 {offsets = [0, 0], sizes = [2, 32], strides = [1, 1]} : vector<2x128xf32> to vector<2x32xf32>
    %81 = vector.extract_strided_slice %78 {offsets = [0, 32], sizes = [2, 32], strides = [1, 1]} : vector<2x128xf32> to vector<2x32xf32>
    %82 = vector.extract_strided_slice %79 {offsets = [0, 64], sizes = [2, 32], strides = [1, 1]} : vector<2x128xf32> to vector<2x32xf32>
    %83 = vector.extract_strided_slice %78 {offsets = [0, 96], sizes = [2, 32], strides = [1, 1]} : vector<2x128xf32> to vector<2x32xf32>
    %84 = arith.mulf %81, %48 : vector<2x32xf32>
    %85 = arith.mulf %80, %82 : vector<2x32xf32>
    %86 = arith.addf %84, %85 : vector<2x32xf32>
    %87 = math.tanh %86 : vector<2x32xf32>
    %88 = arith.mulf %83, %87 : vector<2x32xf32>
    %c0_31 = arith.constant 0 : index
    %c0_32 = arith.constant 0 : index
    %c0_33 = arith.constant 0 : index
    %89 = vector.load %arg13[%c0_31, %c0_32, %c0_33] : memref<2x8x32xf32, #tpu.memory_space<vmem>>, vector<2x1x32xf32>
    %90 = vector.shape_cast %89 : vector<2x1x32xf32> to vector<2x32xf32>
    %91 = vector.shape_cast %88 : vector<2x32xf32> to vector<2x1x32xf32>
    tpu.vector_store %arg13[%c0_31, %c0_32, %c0_33], %91 {strides = array<i32>} : memref<2x8x32xf32, #tpu.memory_space<vmem>>, vector<2x1x32xf32>,
    %92 = vector.extract_strided_slice %33 {offsets = [0, 1, 0], sizes = [2, 1, 16], strides = [1, 1, 1]} : vector<2x8x16xf32> to vector<2x1x16xf32>
    %93 = vector.shape_cast %92 : vector<2x1x16xf32> to vector<2x16xf32>
    %cst_34 = arith.constant dense<0.000000e+00> : vector<2x128xf32>
    %94 = tpu.matmul %93, %35, %cst_34 {dimension_numbers = #tpu.dot_dimension_numbers<[1], [0], [0], [1], [0, 0, 1, 1], [], []>} : vector<2x16xf32>, vector<16x128xf32>, vector<2x128xf32> -> vector<2x128xf32>
    %cst_35 = arith.constant dense<0.000000e+00> : vector<2x128xf32>
    %95 = tpu.matmul %69, %36, %cst_35 {dimension_numbers = #tpu.dot_dimension_numbers<[1], [0], [0], [1], [0, 0, 1, 1], [], []>} : vector<2x32xf32>, vector<32x128xf32>, vector<2x128xf32> -> vector<2x128xf32>
    %96 = arith.addf %94, %95 : vector<2x128xf32>
    %97 = arith.addf %96, %39 : vector<2x128xf32>
    %98 = arith.negf %97 : vector<2x128xf32>
    %99 = math.exp %98 : vector<2x128xf32>
    %cst_36 = arith.constant 1.000000e+00 : f32
    %100 = vector.broadcast %cst_36 : f32 to vector<2x128xf32>
    %101 = arith.addf %100, %99 : vector<2x128xf32>
    %102 = arith.divf %100, %101 : vector<2x128xf32>
    %103 = math.tanh %97 : vector<2x128xf32>
    %104 = vector.extract_strided_slice %102 {offsets = [0, 0], sizes = [2, 32], strides = [1, 1]} : vector<2x128xf32> to vector<2x32xf32>
    %105 = vector.extract_strided_slice %102 {offsets = [0, 32], sizes = [2, 32], strides = [1, 1]} : vector<2x128xf32> to vector<2x32xf32>
    %106 = vector.extract_strided_slice %103 {offsets = [0, 64], sizes = [2, 32], strides = [1, 1]} : vector<2x128xf32> to vector<2x32xf32>
    %107 = vector.extract_strided_slice %102 {offsets = [0, 96], sizes = [2, 32], strides = [1, 1]} : vector<2x128xf32> to vector<2x32xf32>
    %108 = arith.mulf %105, %67 : vector<2x32xf32>
    %109 = arith.mulf %104, %106 : vector<2x32xf32>
    %110 = arith.addf %108, %109 : vector<2x32xf32>
    %111 = math.tanh %110 : vector<2x32xf32>
    %112 = arith.mulf %107, %111 : vector<2x32xf32>
    %cst_37 = arith.constant dense<0.000000e+00> : vector<2x128xf32>
    %113 = tpu.matmul %112, %40, %cst_37 {dimension_numbers = #tpu.dot_dimension_numbers<[1], [0], [0], [1], [0, 0, 1, 1], [], []>} : vector<2x32xf32>, vector<32x128xf32>, vector<2x128xf32> -> vector<2x128xf32>
    %cst_38 = arith.constant dense<0.000000e+00> : vector<2x128xf32>
    %114 = tpu.matmul %88, %41, %cst_38 {dimension_numbers = #tpu.dot_dimension_numbers<[1], [0], [0], [1], [0, 0, 1, 1], [], []>} : vector<2x32xf32>, vector<32x128xf32>, vector<2x128xf32> -> vector<2x128xf32>
    %115 = arith.addf %113, %114 : vector<2x128xf32>
    %116 = arith.addf %115, %44 : vector<2x128xf32>
    %117 = arith.negf %116 : vector<2x128xf32>
    %118 = math.exp %117 : vector<2x128xf32>
    %cst_39 = arith.constant 1.000000e+00 : f32
    %119 = vector.broadcast %cst_39 : f32 to vector<2x128xf32>
    %120 = arith.addf %119, %118 : vector<2x128xf32>
    %121 = arith.divf %119, %120 : vector<2x128xf32>
    %122 = math.tanh %116 : vector<2x128xf32>
    %123 = vector.extract_strided_slice %121 {offsets = [0, 0], sizes = [2, 32], strides = [1, 1]} : vector<2x128xf32> to vector<2x32xf32>
    %124 = vector.extract_strided_slice %121 {offsets = [0, 32], sizes = [2, 32], strides = [1, 1]} : vector<2x128xf32> to vector<2x32xf32>
    %125 = vector.extract_strided_slice %122 {offsets = [0, 64], sizes = [2, 32], strides = [1, 1]} : vector<2x128xf32> to vector<2x32xf32>
    %126 = vector.extract_strided_slice %121 {offsets = [0, 96], sizes = [2, 32], strides = [1, 1]} : vector<2x128xf32> to vector<2x32xf32>
    %127 = arith.mulf %124, %86 : vector<2x32xf32>
    %128 = arith.mulf %123, %125 : vector<2x32xf32>
    %129 = arith.addf %127, %128 : vector<2x32xf32>
    %130 = math.tanh %129 : vector<2x32xf32>
    %131 = arith.mulf %126, %130 : vector<2x32xf32>
    %c0_40 = arith.constant 0 : index
    %c1 = arith.constant 1 : index
    %c0_41 = arith.constant 0 : index
    %132 = vector.load %arg13[%c0_40, %c1, %c0_41] : memref<2x8x32xf32, #tpu.memory_space<vmem>>, vector<2x1x32xf32>
    %133 = vector.shape_cast %132 : vector<2x1x32xf32> to vector<2x32xf32>
    %134 = vector.shape_cast %131 : vector<2x32xf32> to vector<2x1x32xf32>
    tpu.vector_store %arg13[%c0_40, %c1, %c0_41], %134 {strides = array<i32>} : memref<2x8x32xf32, #tpu.memory_space<vmem>>, vector<2x1x32xf32>,
    %135 = vector.extract_strided_slice %33 {offsets = [0, 2, 0], sizes = [2, 1, 16], strides = [1, 1, 1]} : vector<2x8x16xf32> to vector<2x1x16xf32>
    %136 = vector.shape_cast %135 : vector<2x1x16xf32> to vector<2x16xf32>
    %cst_42 = arith.constant dense<0.000000e+00> : vector<2x128xf32>
    %137 = tpu.matmul %136, %35, %cst_42 {dimension_numbers = #tpu.dot_dimension_numbers<[1], [0], [0], [1], [0, 0, 1, 1], [], []>} : vector<2x16xf32>, vector<16x128xf32>, vector<2x128xf32> -> vector<2x128xf32>
    %cst_43 = arith.constant dense<0.000000e+00> : vector<2x128xf32>
    %138 = tpu.matmul %112, %36, %cst_43 {dimension_numbers = #tpu.dot_dimension_numbers<[1], [0], [0], [1], [0, 0, 1, 1], [], []>} : vector<2x32xf32>, vector<32x128xf32>, vector<2x128xf32> -> vector<2x128xf32>
    %139 = arith.addf %137, %138 : vector<2x128xf32>
    %140 = arith.addf %139, %39 : vector<2x128xf32>
    %141 = arith.negf %140 : vector<2x128xf32>
    %142 = math.exp %141 : vector<2x128xf32>
    %cst_44 = arith.constant 1.000000e+00 : f32
    %143 = vector.broadcast %cst_44 : f32 to vector<2x128xf32>
    %144 = arith.addf %143, %142 : vector<2x128xf32>
    %145 = arith.divf %143, %144 : vector<2x128xf32>
    %146 = math.tanh %140 : vector<2x128xf32>
    %147 = vector.extract_strided_slice %145 {offsets = [0, 0], sizes = [2, 32], strides = [1, 1]} : vector<2x128xf32> to vector<2x32xf32>
    %148 = vector.extract_strided_slice %145 {offsets = [0, 32], sizes = [2, 32], strides = [1, 1]} : vector<2x128xf32> to vector<2x32xf32>
    %149 = vector.extract_strided_slice %146 {offsets = [0, 64], sizes = [2, 32], strides = [1, 1]} : vector<2x128xf32> to vector<2x32xf32>
    %150 = vector.extract_strided_slice %145 {offsets = [0, 96], sizes = [2, 32], strides = [1, 1]} : vector<2x128xf32> to vector<2x32xf32>
    %151 = arith.mulf %148, %110 : vector<2x32xf32>
    %152 = arith.mulf %147, %149 : vector<2x32xf32>
    %153 = arith.addf %151, %152 : vector<2x32xf32>
    %154 = math.tanh %153 : vector<2x32xf32>
    %155 = arith.mulf %150, %154 : vector<2x32xf32>
    %cst_45 = arith.constant dense<0.000000e+00> : vector<2x128xf32>
    %156 = tpu.matmul %155, %40, %cst_45 {dimension_numbers = #tpu.dot_dimension_numbers<[1], [0], [0], [1], [0, 0, 1, 1], [], []>} : vector<2x32xf32>, vector<32x128xf32>, vector<2x128xf32> -> vector<2x128xf32>
    %cst_46 = arith.constant dense<0.000000e+00> : vector<2x128xf32>
    %157 = tpu.matmul %131, %41, %cst_46 {dimension_numbers = #tpu.dot_dimension_numbers<[1], [0], [0], [1], [0, 0, 1, 1], [], []>} : vector<2x32xf32>, vector<32x128xf32>, vector<2x128xf32> -> vector<2x128xf32>
    %158 = arith.addf %156, %157 : vector<2x128xf32>
    %159 = arith.addf %158, %44 : vector<2x128xf32>
    %160 = arith.negf %159 : vector<2x128xf32>
    %161 = math.exp %160 : vector<2x128xf32>
    %cst_47 = arith.constant 1.000000e+00 : f32
    %162 = vector.broadcast %cst_47 : f32 to vector<2x128xf32>
    %163 = arith.addf %162, %161 : vector<2x128xf32>
    %164 = arith.divf %162, %163 : vector<2x128xf32>
    %165 = math.tanh %159 : vector<2x128xf32>
    %166 = vector.extract_strided_slice %164 {offsets = [0, 0], sizes = [2, 32], strides = [1, 1]} : vector<2x128xf32> to vector<2x32xf32>
    %167 = vector.extract_strided_slice %164 {offsets = [0, 32], sizes = [2, 32], strides = [1, 1]} : vector<2x128xf32> to vector<2x32xf32>
    %168 = vector.extract_strided_slice %165 {offsets = [0, 64], sizes = [2, 32], strides = [1, 1]} : vector<2x128xf32> to vector<2x32xf32>
    %169 = vector.extract_strided_slice %164 {offsets = [0, 96], sizes = [2, 32], strides = [1, 1]} : vector<2x128xf32> to vector<2x32xf32>
    %170 = arith.mulf %167, %129 : vector<2x32xf32>
    %171 = arith.mulf %166, %168 : vector<2x32xf32>
    %172 = arith.addf %170, %171 : vector<2x32xf32>
    %173 = math.tanh %172 : vector<2x32xf32>
    %174 = arith.mulf %169, %173 : vector<2x32xf32>
    %c0_48 = arith.constant 0 : index
    %c2 = arith.constant 2 : index
    %c0_49 = arith.constant 0 : index
    %175 = vector.load %arg13[%c0_48, %c2, %c0_49] : memref<2x8x32xf32, #tpu.memory_space<vmem>>, vector<2x1x32xf32>
    %176 = vector.shape_cast %175 : vector<2x1x32xf32> to vector<2x32xf32>
    %177 = vector.shape_cast %174 : vector<2x32xf32> to vector<2x1x32xf32>
    tpu.vector_store %arg13[%c0_48, %c2, %c0_49], %177 {strides = array<i32>} : memref<2x8x32xf32, #tpu.memory_space<vmem>>, vector<2x1x32xf32>,
    %178 = vector.extract_strided_slice %33 {offsets = [0, 3, 0], sizes = [2, 1, 16], strides = [1, 1, 1]} : vector<2x8x16xf32> to vector<2x1x16xf32>
    %179 = vector.shape_cast %178 : vector<2x1x16xf32> to vector<2x16xf32>
    %cst_50 = arith.constant dense<0.000000e+00> : vector<2x128xf32>
    %180 = tpu.matmul %179, %35, %cst_50 {dimension_numbers = #tpu.dot_dimension_numbers<[1], [0], [0], [1], [0, 0, 1, 1], [], []>} : vector<2x16xf32>, vector<16x128xf32>, vector<2x128xf32> -> vector<2x128xf32>
    %cst_51 = arith.constant dense<0.000000e+00> : vector<2x128xf32>
    %181 = tpu.matmul %155, %36, %cst_51 {dimension_numbers = #tpu.dot_dimension_numbers<[1], [0], [0], [1], [0, 0, 1, 1], [], []>} : vector<2x32xf32>, vector<32x128xf32>, vector<2x128xf32> -> vector<2x128xf32>
    %182 = arith.addf %180, %181 : vector<2x128xf32>
    %183 = arith.addf %182, %39 : vector<2x128xf32>
    %184 = arith.negf %183 : vector<2x128xf32>
    %185 = math.exp %184 : vector<2x128xf32>
    %cst_52 = arith.constant 1.000000e+00 : f32
    %186 = vector.broadcast %cst_52 : f32 to vector<2x128xf32>
    %187 = arith.addf %186, %185 : vector<2x128xf32>
    %188 = arith.divf %186, %187 : vector<2x128xf32>
    %189 = math.tanh %183 : vector<2x128xf32>
    %190 = vector.extract_strided_slice %188 {offsets = [0, 0], sizes = [2, 32], strides = [1, 1]} : vector<2x128xf32> to vector<2x32xf32>
    %191 = vector.extract_strided_slice %188 {offsets = [0, 32], sizes = [2, 32], strides = [1, 1]} : vector<2x128xf32> to vector<2x32xf32>
    %192 = vector.extract_strided_slice %189 {offsets = [0, 64], sizes = [2, 32], strides = [1, 1]} : vector<2x128xf32> to vector<2x32xf32>
    %193 = vector.extract_strided_slice %188 {offsets = [0, 96], sizes = [2, 32], strides = [1, 1]} : vector<2x128xf32> to vector<2x32xf32>
    %194 = arith.mulf %191, %153 : vector<2x32xf32>
    %195 = arith.mulf %190, %192 : vector<2x32xf32>
    %196 = arith.addf %194, %195 : vector<2x32xf32>
    %197 = math.tanh %196 : vector<2x32xf32>
    %198 = arith.mulf %193, %197 : vector<2x32xf32>
    %cst_53 = arith.constant dense<0.000000e+00> : vector<2x128xf32>
    %199 = tpu.matmul %198, %40, %cst_53 {dimension_numbers = #tpu.dot_dimension_numbers<[1], [0], [0], [1], [0, 0, 1, 1], [], []>} : vector<2x32xf32>, vector<32x128xf32>, vector<2x128xf32> -> vector<2x128xf32>
    %cst_54 = arith.constant dense<0.000000e+00> : vector<2x128xf32>
    %200 = tpu.matmul %174, %41, %cst_54 {dimension_numbers = #tpu.dot_dimension_numbers<[1], [0], [0], [1], [0, 0, 1, 1], [], []>} : vector<2x32xf32>, vector<32x128xf32>, vector<2x128xf32> -> vector<2x128xf32>
    %201 = arith.addf %199, %200 : vector<2x128xf32>
    %202 = arith.addf %201, %44 : vector<2x128xf32>
    %203 = arith.negf %202 : vector<2x128xf32>
    %204 = math.exp %203 : vector<2x128xf32>
    %cst_55 = arith.constant 1.000000e+00 : f32
    %205 = vector.broadcast %cst_55 : f32 to vector<2x128xf32>
    %206 = arith.addf %205, %204 : vector<2x128xf32>
    %207 = arith.divf %205, %206 : vector<2x128xf32>
    %208 = math.tanh %202 : vector<2x128xf32>
    %209 = vector.extract_strided_slice %207 {offsets = [0, 0], sizes = [2, 32], strides = [1, 1]} : vector<2x128xf32> to vector<2x32xf32>
    %210 = vector.extract_strided_slice %207 {offsets = [0, 32], sizes = [2, 32], strides = [1, 1]} : vector<2x128xf32> to vector<2x32xf32>
    %211 = vector.extract_strided_slice %208 {offsets = [0, 64], sizes = [2, 32], strides = [1, 1]} : vector<2x128xf32> to vector<2x32xf32>
    %212 = vector.extract_strided_slice %207 {offsets = [0, 96], sizes = [2, 32], strides = [1, 1]} : vector<2x128xf32> to vector<2x32xf32>
    %213 = arith.mulf %210, %172 : vector<2x32xf32>
    %214 = arith.mulf %209, %211 : vector<2x32xf32>
    %215 = arith.addf %213, %214 : vector<2x32xf32>
    %216 = math.tanh %215 : vector<2x32xf32>
    %217 = arith.mulf %212, %216 : vector<2x32xf32>
    %c0_56 = arith.constant 0 : index
    %c3 = arith.constant 3 : index
    %c0_57 = arith.constant 0 : index
    %218 = vector.load %arg13[%c0_56, %c3, %c0_57] : memref<2x8x32xf32, #tpu.memory_space<vmem>>, vector<2x1x32xf32>
    %219 = vector.shape_cast %218 : vector<2x1x32xf32> to vector<2x32xf32>
    %220 = vector.shape_cast %217 : vector<2x32xf32> to vector<2x1x32xf32>
    tpu.vector_store %arg13[%c0_56, %c3, %c0_57], %220 {strides = array<i32>} : memref<2x8x32xf32, #tpu.memory_space<vmem>>, vector<2x1x32xf32>,
    %221 = vector.extract_strided_slice %33 {offsets = [0, 4, 0], sizes = [2, 1, 16], strides = [1, 1, 1]} : vector<2x8x16xf32> to vector<2x1x16xf32>
    %222 = vector.shape_cast %221 : vector<2x1x16xf32> to vector<2x16xf32>
    %cst_58 = arith.constant dense<0.000000e+00> : vector<2x128xf32>
    %223 = tpu.matmul %222, %35, %cst_58 {dimension_numbers = #tpu.dot_dimension_numbers<[1], [0], [0], [1], [0, 0, 1, 1], [], []>} : vector<2x16xf32>, vector<16x128xf32>, vector<2x128xf32> -> vector<2x128xf32>
    %cst_59 = arith.constant dense<0.000000e+00> : vector<2x128xf32>
    %224 = tpu.matmul %198, %36, %cst_59 {dimension_numbers = #tpu.dot_dimension_numbers<[1], [0], [0], [1], [0, 0, 1, 1], [], []>} : vector<2x32xf32>, vector<32x128xf32>, vector<2x128xf32> -> vector<2x128xf32>
    %225 = arith.addf %223, %224 : vector<2x128xf32>
    %226 = arith.addf %225, %39 : vector<2x128xf32>
    %227 = arith.negf %226 : vector<2x128xf32>
    %228 = math.exp %227 : vector<2x128xf32>
    %cst_60 = arith.constant 1.000000e+00 : f32
    %229 = vector.broadcast %cst_60 : f32 to vector<2x128xf32>
    %230 = arith.addf %229, %228 : vector<2x128xf32>
    %231 = arith.divf %229, %230 : vector<2x128xf32>
    %232 = math.tanh %226 : vector<2x128xf32>
    %233 = vector.extract_strided_slice %231 {offsets = [0, 0], sizes = [2, 32], strides = [1, 1]} : vector<2x128xf32> to vector<2x32xf32>
    %234 = vector.extract_strided_slice %231 {offsets = [0, 32], sizes = [2, 32], strides = [1, 1]} : vector<2x128xf32> to vector<2x32xf32>
    %235 = vector.extract_strided_slice %232 {offsets = [0, 64], sizes = [2, 32], strides = [1, 1]} : vector<2x128xf32> to vector<2x32xf32>
    %236 = vector.extract_strided_slice %231 {offsets = [0, 96], sizes = [2, 32], strides = [1, 1]} : vector<2x128xf32> to vector<2x32xf32>
    %237 = arith.mulf %234, %196 : vector<2x32xf32>
    %238 = arith.mulf %233, %235 : vector<2x32xf32>
    %239 = arith.addf %237, %238 : vector<2x32xf32>
    %240 = math.tanh %239 : vector<2x32xf32>
    %241 = arith.mulf %236, %240 : vector<2x32xf32>
    %cst_61 = arith.constant dense<0.000000e+00> : vector<2x128xf32>
    %242 = tpu.matmul %241, %40, %cst_61 {dimension_numbers = #tpu.dot_dimension_numbers<[1], [0], [0], [1], [0, 0, 1, 1], [], []>} : vector<2x32xf32>, vector<32x128xf32>, vector<2x128xf32> -> vector<2x128xf32>
    %cst_62 = arith.constant dense<0.000000e+00> : vector<2x128xf32>
    %243 = tpu.matmul %217, %41, %cst_62 {dimension_numbers = #tpu.dot_dimension_numbers<[1], [0], [0], [1], [0, 0, 1, 1], [], []>} : vector<2x32xf32>, vector<32x128xf32>, vector<2x128xf32> -> vector<2x128xf32>
    %244 = arith.addf %242, %243 : vector<2x128xf32>
    %245 = arith.addf %244, %44 : vector<2x128xf32>
    %246 = arith.negf %245 : vector<2x128xf32>
    %247 = math.exp %246 : vector<2x128xf32>
    %cst_63 = arith.constant 1.000000e+00 : f32
    %248 = vector.broadcast %cst_63 : f32 to vector<2x128xf32>
    %249 = arith.addf %248, %247 : vector<2x128xf32>
    %250 = arith.divf %248, %249 : vector<2x128xf32>
    %251 = math.tanh %245 : vector<2x128xf32>
    %252 = vector.extract_strided_slice %250 {offsets = [0, 0], sizes = [2, 32], strides = [1, 1]} : vector<2x128xf32> to vector<2x32xf32>
    %253 = vector.extract_strided_slice %250 {offsets = [0, 32], sizes = [2, 32], strides = [1, 1]} : vector<2x128xf32> to vector<2x32xf32>
    %254 = vector.extract_strided_slice %251 {offsets = [0, 64], sizes = [2, 32], strides = [1, 1]} : vector<2x128xf32> to vector<2x32xf32>
    %255 = vector.extract_strided_slice %250 {offsets = [0, 96], sizes = [2, 32], strides = [1, 1]} : vector<2x128xf32> to vector<2x32xf32>
    %256 = arith.mulf %253, %215 : vector<2x32xf32>
    %257 = arith.mulf %252, %254 : vector<2x32xf32>
    %258 = arith.addf %256, %257 : vector<2x32xf32>
    %259 = math.tanh %258 : vector<2x32xf32>
    %260 = arith.mulf %255, %259 : vector<2x32xf32>
    %c0_64 = arith.constant 0 : index
    %c4 = arith.constant 4 : index
    %c0_65 = arith.constant 0 : index
    %261 = vector.load %arg13[%c0_64, %c4, %c0_65] : memref<2x8x32xf32, #tpu.memory_space<vmem>>, vector<2x1x32xf32>
    %262 = vector.shape_cast %261 : vector<2x1x32xf32> to vector<2x32xf32>
    %263 = vector.shape_cast %260 : vector<2x32xf32> to vector<2x1x32xf32>
    tpu.vector_store %arg13[%c0_64, %c4, %c0_65], %263 {strides = array<i32>} : memref<2x8x32xf32, #tpu.memory_space<vmem>>, vector<2x1x32xf32>,
    %264 = vector.extract_strided_slice %33 {offsets = [0, 5, 0], sizes = [2, 1, 16], strides = [1, 1, 1]} : vector<2x8x16xf32> to vector<2x1x16xf32>
    %265 = vector.shape_cast %264 : vector<2x1x16xf32> to vector<2x16xf32>
    %cst_66 = arith.constant dense<0.000000e+00> : vector<2x128xf32>
    %266 = tpu.matmul %265, %35, %cst_66 {dimension_numbers = #tpu.dot_dimension_numbers<[1], [0], [0], [1], [0, 0, 1, 1], [], []>} : vector<2x16xf32>, vector<16x128xf32>, vector<2x128xf32> -> vector<2x128xf32>
    %cst_67 = arith.constant dense<0.000000e+00> : vector<2x128xf32>
    %267 = tpu.matmul %241, %36, %cst_67 {dimension_numbers = #tpu.dot_dimension_numbers<[1], [0], [0], [1], [0, 0, 1, 1], [], []>} : vector<2x32xf32>, vector<32x128xf32>, vector<2x128xf32> -> vector<2x128xf32>
    %268 = arith.addf %266, %267 : vector<2x128xf32>
    %269 = arith.addf %268, %39 : vector<2x128xf32>
    %270 = arith.negf %269 : vector<2x128xf32>
    %271 = math.exp %270 : vector<2x128xf32>
    %cst_68 = arith.constant 1.000000e+00 : f32
    %272 = vector.broadcast %cst_68 : f32 to vector<2x128xf32>
    %273 = arith.addf %272, %271 : vector<2x128xf32>
    %274 = arith.divf %272, %273 : vector<2x128xf32>
    %275 = math.tanh %269 : vector<2x128xf32>
    %276 = vector.extract_strided_slice %274 {offsets = [0, 0], sizes = [2, 32], strides = [1, 1]} : vector<2x128xf32> to vector<2x32xf32>
    %277 = vector.extract_strided_slice %274 {offsets = [0, 32], sizes = [2, 32], strides = [1, 1]} : vector<2x128xf32> to vector<2x32xf32>
    %278 = vector.extract_strided_slice %275 {offsets = [0, 64], sizes = [2, 32], strides = [1, 1]} : vector<2x128xf32> to vector<2x32xf32>
    %279 = vector.extract_strided_slice %274 {offsets = [0, 96], sizes = [2, 32], strides = [1, 1]} : vector<2x128xf32> to vector<2x32xf32>
    %280 = arith.mulf %277, %239 : vector<2x32xf32>
    %281 = arith.mulf %276, %278 : vector<2x32xf32>
    %282 = arith.addf %280, %281 : vector<2x32xf32>
    %283 = math.tanh %282 : vector<2x32xf32>
    %284 = arith.mulf %279, %283 : vector<2x32xf32>
    %cst_69 = arith.constant dense<0.000000e+00> : vector<2x128xf32>
    %285 = tpu.matmul %284, %40, %cst_69 {dimension_numbers = #tpu.dot_dimension_numbers<[1], [0], [0], [1], [0, 0, 1, 1], [], []>} : vector<2x32xf32>, vector<32x128xf32>, vector<2x128xf32> -> vector<2x128xf32>
    %cst_70 = arith.constant dense<0.000000e+00> : vector<2x128xf32>
    %286 = tpu.matmul %260, %41, %cst_70 {dimension_numbers = #tpu.dot_dimension_numbers<[1], [0], [0], [1], [0, 0, 1, 1], [], []>} : vector<2x32xf32>, vector<32x128xf32>, vector<2x128xf32> -> vector<2x128xf32>
    %287 = arith.addf %285, %286 : vector<2x128xf32>
    %288 = arith.addf %287, %44 : vector<2x128xf32>
    %289 = arith.negf %288 : vector<2x128xf32>
    %290 = math.exp %289 : vector<2x128xf32>
    %cst_71 = arith.constant 1.000000e+00 : f32
    %291 = vector.broadcast %cst_71 : f32 to vector<2x128xf32>
    %292 = arith.addf %291, %290 : vector<2x128xf32>
    %293 = arith.divf %291, %292 : vector<2x128xf32>
    %294 = math.tanh %288 : vector<2x128xf32>
    %295 = vector.extract_strided_slice %293 {offsets = [0, 0], sizes = [2, 32], strides = [1, 1]} : vector<2x128xf32> to vector<2x32xf32>
    %296 = vector.extract_strided_slice %293 {offsets = [0, 32], sizes = [2, 32], strides = [1, 1]} : vector<2x128xf32> to vector<2x32xf32>
    %297 = vector.extract_strided_slice %294 {offsets = [0, 64], sizes = [2, 32], strides = [1, 1]} : vector<2x128xf32> to vector<2x32xf32>
    %298 = vector.extract_strided_slice %293 {offsets = [0, 96], sizes = [2, 32], strides = [1, 1]} : vector<2x128xf32> to vector<2x32xf32>
    %299 = arith.mulf %296, %258 : vector<2x32xf32>
    %300 = arith.mulf %295, %297 : vector<2x32xf32>
    %301 = arith.addf %299, %300 : vector<2x32xf32>
    %302 = math.tanh %301 : vector<2x32xf32>
    %303 = arith.mulf %298, %302 : vector<2x32xf32>
    %c0_72 = arith.constant 0 : index
    %c5 = arith.constant 5 : index
    %c0_73 = arith.constant 0 : index
    %304 = vector.load %arg13[%c0_72, %c5, %c0_73] : memref<2x8x32xf32, #tpu.memory_space<vmem>>, vector<2x1x32xf32>
    %305 = vector.shape_cast %304 : vector<2x1x32xf32> to vector<2x32xf32>
    %306 = vector.shape_cast %303 : vector<2x32xf32> to vector<2x1x32xf32>
    tpu.vector_store %arg13[%c0_72, %c5, %c0_73], %306 {strides = array<i32>} : memref<2x8x32xf32, #tpu.memory_space<vmem>>, vector<2x1x32xf32>,
    %307 = vector.extract_strided_slice %33 {offsets = [0, 6, 0], sizes = [2, 1, 16], strides = [1, 1, 1]} : vector<2x8x16xf32> to vector<2x1x16xf32>
    %308 = vector.shape_cast %307 : vector<2x1x16xf32> to vector<2x16xf32>
    %cst_74 = arith.constant dense<0.000000e+00> : vector<2x128xf32>
    %309 = tpu.matmul %308, %35, %cst_74 {dimension_numbers = #tpu.dot_dimension_numbers<[1], [0], [0], [1], [0, 0, 1, 1], [], []>} : vector<2x16xf32>, vector<16x128xf32>, vector<2x128xf32> -> vector<2x128xf32>
    %cst_75 = arith.constant dense<0.000000e+00> : vector<2x128xf32>
    %310 = tpu.matmul %284, %36, %cst_75 {dimension_numbers = #tpu.dot_dimension_numbers<[1], [0], [0], [1], [0, 0, 1, 1], [], []>} : vector<2x32xf32>, vector<32x128xf32>, vector<2x128xf32> -> vector<2x128xf32>
    %311 = arith.addf %309, %310 : vector<2x128xf32>
    %312 = arith.addf %311, %39 : vector<2x128xf32>
    %313 = arith.negf %312 : vector<2x128xf32>
    %314 = math.exp %313 : vector<2x128xf32>
    %cst_76 = arith.constant 1.000000e+00 : f32
    %315 = vector.broadcast %cst_76 : f32 to vector<2x128xf32>
    %316 = arith.addf %315, %314 : vector<2x128xf32>
    %317 = arith.divf %315, %316 : vector<2x128xf32>
    %318 = math.tanh %312 : vector<2x128xf32>
    %319 = vector.extract_strided_slice %317 {offsets = [0, 0], sizes = [2, 32], strides = [1, 1]} : vector<2x128xf32> to vector<2x32xf32>
    %320 = vector.extract_strided_slice %317 {offsets = [0, 32], sizes = [2, 32], strides = [1, 1]} : vector<2x128xf32> to vector<2x32xf32>
    %321 = vector.extract_strided_slice %318 {offsets = [0, 64], sizes = [2, 32], strides = [1, 1]} : vector<2x128xf32> to vector<2x32xf32>
    %322 = vector.extract_strided_slice %317 {offsets = [0, 96], sizes = [2, 32], strides = [1, 1]} : vector<2x128xf32> to vector<2x32xf32>
    %323 = arith.mulf %320, %282 : vector<2x32xf32>
    %324 = arith.mulf %319, %321 : vector<2x32xf32>
    %325 = arith.addf %323, %324 : vector<2x32xf32>
    %326 = math.tanh %325 : vector<2x32xf32>
    %327 = arith.mulf %322, %326 : vector<2x32xf32>
    %cst_77 = arith.constant dense<0.000000e+00> : vector<2x128xf32>
    %328 = tpu.matmul %327, %40, %cst_77 {dimension_numbers = #tpu.dot_dimension_numbers<[1], [0], [0], [1], [0, 0, 1, 1], [], []>} : vector<2x32xf32>, vector<32x128xf32>, vector<2x128xf32> -> vector<2x128xf32>
    %cst_78 = arith.constant dense<0.000000e+00> : vector<2x128xf32>
    %329 = tpu.matmul %303, %41, %cst_78 {dimension_numbers = #tpu.dot_dimension_numbers<[1], [0], [0], [1], [0, 0, 1, 1], [], []>} : vector<2x32xf32>, vector<32x128xf32>, vector<2x128xf32> -> vector<2x128xf32>
    %330 = arith.addf %328, %329 : vector<2x128xf32>
    %331 = arith.addf %330, %44 : vector<2x128xf32>
    %332 = arith.negf %331 : vector<2x128xf32>
    %333 = math.exp %332 : vector<2x128xf32>
    %cst_79 = arith.constant 1.000000e+00 : f32
    %334 = vector.broadcast %cst_79 : f32 to vector<2x128xf32>
    %335 = arith.addf %334, %333 : vector<2x128xf32>
    %336 = arith.divf %334, %335 : vector<2x128xf32>
    %337 = math.tanh %331 : vector<2x128xf32>
    %338 = vector.extract_strided_slice %336 {offsets = [0, 0], sizes = [2, 32], strides = [1, 1]} : vector<2x128xf32> to vector<2x32xf32>
    %339 = vector.extract_strided_slice %336 {offsets = [0, 32], sizes = [2, 32], strides = [1, 1]} : vector<2x128xf32> to vector<2x32xf32>
    %340 = vector.extract_strided_slice %337 {offsets = [0, 64], sizes = [2, 32], strides = [1, 1]} : vector<2x128xf32> to vector<2x32xf32>
    %341 = vector.extract_strided_slice %336 {offsets = [0, 96], sizes = [2, 32], strides = [1, 1]} : vector<2x128xf32> to vector<2x32xf32>
    %342 = arith.mulf %339, %301 : vector<2x32xf32>
    %343 = arith.mulf %338, %340 : vector<2x32xf32>
    %344 = arith.addf %342, %343 : vector<2x32xf32>
    %345 = math.tanh %344 : vector<2x32xf32>
    %346 = arith.mulf %341, %345 : vector<2x32xf32>
    %c0_80 = arith.constant 0 : index
    %c6 = arith.constant 6 : index
    %c0_81 = arith.constant 0 : index
    %347 = vector.load %arg13[%c0_80, %c6, %c0_81] : memref<2x8x32xf32, #tpu.memory_space<vmem>>, vector<2x1x32xf32>
    %348 = vector.shape_cast %347 : vector<2x1x32xf32> to vector<2x32xf32>
    %349 = vector.shape_cast %346 : vector<2x32xf32> to vector<2x1x32xf32>
    tpu.vector_store %arg13[%c0_80, %c6, %c0_81], %349 {strides = array<i32>} : memref<2x8x32xf32, #tpu.memory_space<vmem>>, vector<2x1x32xf32>,
    %350 = vector.extract_strided_slice %33 {offsets = [0, 7, 0], sizes = [2, 1, 16], strides = [1, 1, 1]} : vector<2x8x16xf32> to vector<2x1x16xf32>
    %351 = vector.shape_cast %350 : vector<2x1x16xf32> to vector<2x16xf32>
    %cst_82 = arith.constant dense<0.000000e+00> : vector<2x128xf32>
    %352 = tpu.matmul %351, %35, %cst_82 {dimension_numbers = #tpu.dot_dimension_numbers<[1], [0], [0], [1], [0, 0, 1, 1], [], []>} : vector<2x16xf32>, vector<16x128xf32>, vector<2x128xf32> -> vector<2x128xf32>
    %cst_83 = arith.constant dense<0.000000e+00> : vector<2x128xf32>
    %353 = tpu.matmul %327, %36, %cst_83 {dimension_numbers = #tpu.dot_dimension_numbers<[1], [0], [0], [1], [0, 0, 1, 1], [], []>} : vector<2x32xf32>, vector<32x128xf32>, vector<2x128xf32> -> vector<2x128xf32>
    %354 = arith.addf %352, %353 : vector<2x128xf32>
    %355 = arith.addf %354, %39 : vector<2x128xf32>
    %356 = arith.negf %355 : vector<2x128xf32>
    %357 = math.exp %356 : vector<2x128xf32>
    %cst_84 = arith.constant 1.000000e+00 : f32
    %358 = vector.broadcast %cst_84 : f32 to vector<2x128xf32>
    %359 = arith.addf %358, %357 : vector<2x128xf32>
    %360 = arith.divf %358, %359 : vector<2x128xf32>
    %361 = math.tanh %355 : vector<2x128xf32>
    %362 = vector.extract_strided_slice %360 {offsets = [0, 0], sizes = [2, 32], strides = [1, 1]} : vector<2x128xf32> to vector<2x32xf32>
    %363 = vector.extract_strided_slice %360 {offsets = [0, 32], sizes = [2, 32], strides = [1, 1]} : vector<2x128xf32> to vector<2x32xf32>
    %364 = vector.extract_strided_slice %361 {offsets = [0, 64], sizes = [2, 32], strides = [1, 1]} : vector<2x128xf32> to vector<2x32xf32>
    %365 = vector.extract_strided_slice %360 {offsets = [0, 96], sizes = [2, 32], strides = [1, 1]} : vector<2x128xf32> to vector<2x32xf32>
    %366 = arith.mulf %363, %325 : vector<2x32xf32>
    %367 = arith.mulf %362, %364 : vector<2x32xf32>
    %368 = arith.addf %366, %367 : vector<2x32xf32>
    %369 = math.tanh %368 : vector<2x32xf32>
    %370 = arith.mulf %365, %369 : vector<2x32xf32>
    %cst_85 = arith.constant dense<0.000000e+00> : vector<2x128xf32>
    %371 = tpu.matmul %370, %40, %cst_85 {dimension_numbers = #tpu.dot_dimension_numbers<[1], [0], [0], [1], [0, 0, 1, 1], [], []>} : vector<2x32xf32>, vector<32x128xf32>, vector<2x128xf32> -> vector<2x128xf32>
    %cst_86 = arith.constant dense<0.000000e+00> : vector<2x128xf32>
    %372 = tpu.matmul %346, %41, %cst_86 {dimension_numbers = #tpu.dot_dimension_numbers<[1], [0], [0], [1], [0, 0, 1, 1], [], []>} : vector<2x32xf32>, vector<32x128xf32>, vector<2x128xf32> -> vector<2x128xf32>
    %373 = arith.addf %371, %372 : vector<2x128xf32>
    %374 = arith.addf %373, %44 : vector<2x128xf32>
    %375 = arith.negf %374 : vector<2x128xf32>
    %376 = math.exp %375 : vector<2x128xf32>
    %cst_87 = arith.constant 1.000000e+00 : f32
    %377 = vector.broadcast %cst_87 : f32 to vector<2x128xf32>
    %378 = arith.addf %377, %376 : vector<2x128xf32>
    %379 = arith.divf %377, %378 : vector<2x128xf32>
    %380 = math.tanh %374 : vector<2x128xf32>
    %381 = vector.extract_strided_slice %379 {offsets = [0, 0], sizes = [2, 32], strides = [1, 1]} : vector<2x128xf32> to vector<2x32xf32>
    %382 = vector.extract_strided_slice %379 {offsets = [0, 32], sizes = [2, 32], strides = [1, 1]} : vector<2x128xf32> to vector<2x32xf32>
    %383 = vector.extract_strided_slice %380 {offsets = [0, 64], sizes = [2, 32], strides = [1, 1]} : vector<2x128xf32> to vector<2x32xf32>
    %384 = vector.extract_strided_slice %379 {offsets = [0, 96], sizes = [2, 32], strides = [1, 1]} : vector<2x128xf32> to vector<2x32xf32>
    %385 = arith.mulf %382, %344 : vector<2x32xf32>
    %386 = arith.mulf %381, %383 : vector<2x32xf32>
    %387 = arith.addf %385, %386 : vector<2x32xf32>
    %388 = math.tanh %387 : vector<2x32xf32>
    %389 = arith.mulf %384, %388 : vector<2x32xf32>
    %c0_88 = arith.constant 0 : index
    %c7 = arith.constant 7 : index
    %c0_89 = arith.constant 0 : index
    %390 = vector.load %arg13[%c0_88, %c7, %c0_89] : memref<2x8x32xf32, #tpu.memory_space<vmem>>, vector<2x1x32xf32>
    %391 = vector.shape_cast %390 : vector<2x1x32xf32> to vector<2x32xf32>
    %392 = vector.shape_cast %389 : vector<2x32xf32> to vector<2x1x32xf32>
    tpu.vector_store %arg13[%c0_88, %c7, %c0_89], %392 {strides = array<i32>} : memref<2x8x32xf32, #tpu.memory_space<vmem>>, vector<2x1x32xf32>,
    %c0_90 = arith.constant 0 : index
    %c0_91 = arith.constant 0 : index
    %c0_92 = arith.constant 0 : index
    %393 = vector.load %arg13[%c0_90, %c0_91, %c0_92] : memref<2x8x32xf32, #tpu.memory_space<vmem>>, vector<2x8x32xf32>
    %394 = vector.shape_cast %393 : vector<2x8x32xf32> to vector<16x32xf32>
    %c0_93 = arith.constant 0 : index
    %c0_94 = arith.constant 0 : index
    %395 = vector.load %arg8[%c0_93, %c0_94] : memref<32x24xf32, #tpu.memory_space<vmem>>, vector<32x24xf32>
    %cst_95 = arith.constant dense<0.000000e+00> : vector<16x24xf32>
    %396 = tpu.matmul %394, %395, %cst_95 {dimension_numbers = #tpu.dot_dimension_numbers<[1], [0], [0], [1], [0, 0, 1, 1], [], []>} : vector<16x32xf32>, vector<32x24xf32>, vector<16x24xf32> -> vector<16x24xf32>
    %c0_96 = arith.constant 0 : index
    %c0_97 = arith.constant 0 : index
    %397 = vector.load %arg9[%c0_96, %c0_97] : memref<1x24xf32, #tpu.memory_space<vmem>>, vector<1x24xf32>
    %398 = vector.broadcast %397 : vector<1x24xf32> to vector<16x24xf32>
    %399 = arith.addf %396, %398 : vector<16x24xf32>
    %400 = vector.shape_cast %399 : vector<16x24xf32> to vector<2x8x24xf32>
    %c0_98 = arith.constant 0 : index
    %c0_99 = arith.constant 0 : index
    %c0_100 = arith.constant 0 : index
    %401 = vector.load %arg10[%c0_98, %c0_99, %c0_100] : memref<2x8x24xf32, #tpu.memory_space<vmem>>, vector<2x8x24xf32>
    tpu.vector_store %arg10[%c0_98, %c0_99, %c0_100], %400 {strides = array<i32>} : memref<2x8x24xf32, #tpu.memory_space<vmem>>, vector<2x8x24xf32>,
    %c0_101 = arith.constant 0 : index
    %c0_102 = arith.constant 0 : index
    %c0_103 = arith.constant 0 : index
    %402 = vector.load %arg11[%c0_101, %c0_102, %c0_103] : memref<2x2x32xf32, #tpu.memory_space<vmem>>, vector<1x2x32xf32>
    %403 = vector.shape_cast %402 : vector<1x2x32xf32> to vector<2x32xf32>
    %404 = vector.shape_cast %370 : vector<2x32xf32> to vector<1x2x32xf32>
    tpu.vector_store %arg11[%c0_101, %c0_102, %c0_103], %404 {strides = array<i32>} : memref<2x2x32xf32, #tpu.memory_space<vmem>>, vector<1x2x32xf32>,
    %c1_104 = arith.constant 1 : index
    %c0_105 = arith.constant 0 : index
    %c0_106 = arith.constant 0 : index
    %405 = vector.load %arg11[%c1_104, %c0_105, %c0_106] : memref<2x2x32xf32, #tpu.memory_space<vmem>>, vector<1x2x32xf32>
    %406 = vector.shape_cast %405 : vector<1x2x32xf32> to vector<2x32xf32>
    %407 = vector.shape_cast %389 : vector<2x32xf32> to vector<1x2x32xf32>
    tpu.vector_store %arg11[%c1_104, %c0_105, %c0_106], %407 {strides = array<i32>} : memref<2x2x32xf32, #tpu.memory_space<vmem>>, vector<1x2x32xf32>,
    return
  }
}

</mosaic_0001>

<llo_original>
// kernel: tpu_custom_call.1
$region0: #{tpu_custom_call.1}
  #allocation0 [shape = 'u32[]', space=smem, size = 0x4, offset = 0x4, fixed_abs, tag = 'smem constant byte address 0x4 - core index']
  #allocation1 [shape = 'u32[144,128]{1,0:T(1,128)}', space=vmem, size = 0x12000, scoped, tag = 'internal scratch']
  #allocation2 [shape = 'f32[2,8,32]{2,1,0:T(8,128)}', space=vmem, size = 0x2000, scoped, tag = 'scratch operand']
  #allocation3 [shape = 's32[1]{0:T(128)S(6)}', space=smem, size = 0x200, scoped, tag = 'scoped memory for tpu_custom_call.1']
  %s0 = inlined_call_operand.<no memory space> [shape: s32[1], index: 0, kind: input, shape index: {}]
  %s1 = inlined_call_operand.hbm [shape: f32[2,8,16], index: 1, kind: input, shape index: {}]
  %s2 = inlined_call_operand.hbm [shape: f32[16,128], index: 2, kind: input, shape index: {}]
  %s3 = inlined_call_operand.vmem [shape: f32[32,128], index: 3, kind: input, shape index: {}]
  %s4 = inlined_call_operand.vmem [shape: f32[1,128], index: 4, kind: input, shape index: {}]
  %s5 = inlined_call_operand.vmem [shape: f32[32,128], index: 5, kind: input, shape index: {}]
  %s6 = inlined_call_operand.hbm [shape: f32[32,128], index: 6, kind: input, shape index: {}]
  %s7 = inlined_call_operand.vmem [shape: f32[1,128], index: 7, kind: input, shape index: {}]
  %s8 = inlined_call_operand.vmem [shape: f32[32,24], index: 8, kind: input, shape index: {}]
  %s9 = inlined_call_operand.vmem [shape: f32[1,24], index: 9, kind: input, shape index: {}]
  %s10 = inlined_call_operand.hbm [shape: f32[2,8,24], index: 10, kind: output, shape index: {0}]
  %s11 = inlined_call_operand.hbm [shape: f32[2,2,32], index: 11, kind: output, shape index: {1}]
  %s12 = inlined_call_operand.hbm [shape: f32[2,8,16], index: 12, kind: output, shape index: {2}]
  %13 = xla_tuple %s10, %s11, %s12
  %s14 = sld [smem:[#allocation0]]
  $region78: #{tpu_custom_call.1} parent=0
    _
  %s16 = ssub.s32 1, %s14
  %s17 = scalar_select 0, %s16, %s14
  %18 = sst [smem:[#allocation3]] %s0
  $region1: #{tpu_custom_call.1} parent=0
    #allocation4 [shape = 'u8[8192]{0}', space=vmem, size = 0x2000, scoped, tag = 'input window, operand 1, single buffered']
    #allocation5 [shape = 's32[1]{0}', space=sflag, size = 0x4, scoped, tag = 'scoped memory for tpu_custom_call.1']
    #allocation6 [shape = 's32[1]{0}', space=sflag, size = 0x4, scoped, tag = 'scoped memory for tpu_custom_call.1']
    #allocation7 [shape = 'u8[8192]{0}', space=vmem, size = 0x2000, scoped, tag = 'input window, operand 2, single buffered']
    #allocation8 [shape = 's32[1]{0}', space=sflag, size = 0x4, scoped, tag = 'scoped memory for tpu_custom_call.1']
    #allocation9 [shape = 'u8[16384]{0}', space=vmem, size = 0x4000, scoped, tag = 'input window, operand 6, single buffered']
    #allocation10 [shape = 'u8[8192]{0}', space=vmem, size = 0x2000, scoped, tag = 'output window, operand 0, single buffered']
    #allocation11 [shape = 'u8[2048]{0}', space=vmem, size = 0x800, scoped, tag = 'output window, operand 1, single buffered']
    #allocation12 [shape = 's32[1]{0}', space=sflag, size = 0x4, scoped, tag = 'scoped memory for tpu_custom_call.1']
    #allocation13 [shape = 'u8[8192]{0}', space=vmem, size = 0x2000, scoped, tag = 'output window, operand 2, single buffered']
    %19 = vsyncpa [#allocation5], 0
    %20 = vsyncpa [#allocation8], 0
    %21 = vsyncpa [#allocation6], 0
    %22 = vsyncpa [#allocation12], 0
    // Predicated region
    $region2: #{tpu_custom_call.1} parent=1 // pred_check
      _
    $region3: #{tpu_custom_call.1} parent=1 // pred_check_branch
      %24 = sbr.rel (0) target = $region5
    $region4: #{tpu_custom_call.1} parent=1 // pred_region
      _
    $region5: #{tpu_custom_call.1} parent=1 // pred_fallthru
      _
    // Predicated region
    $region6: #{tpu_custom_call.1} parent=1 // pred_check
      _
    $region7: #{tpu_custom_call.1} parent=1 // pred_check_branch
      %26 = sbr.rel (0) target = $region9
    $region8: #{tpu_custom_call.1} parent=1 // pred_region
      %s28 = ssub.s32 256, 256
      %29 = vsyncadd [#allocation5], %s28
      %s30 = sshll.u32 [#allocation4], 4
      %s31 = int_to_ptr.vmem [resolvable:$true] %s30
      %36 = dma.hbm_to_vmem [thread:$0]  %s1, 256, %s31, [#allocation5], 128, 128, 8
    $region9: #{tpu_custom_call.1} parent=1 // pred_fallthru
      _
    // Predicated region
    $region10: #{tpu_custom_call.1} parent=1 // pred_check
      _
    $region11: #{tpu_custom_call.1} parent=1 // pred_check_branch
      %38 = sbr.rel (0) target = $region13
    $region12: #{tpu_custom_call.1} parent=1 // pred_region
      %s40 = ssub.s32 256, 256
      %41 = vsyncadd [#allocation8], %s40
      %s42 = sshll.u32 [#allocation7], 4
      %s43 = int_to_ptr.vmem [resolvable:$true] %s42
      %48 = dma.hbm_to_vmem [thread:$0]  %s2, 256, %s43, [#allocation8], 128, 128, 8
    $region13: #{tpu_custom_call.1} parent=1 // pred_fallthru
      _
    // Predicated region
    $region14: #{tpu_custom_call.1} parent=1 // pred_check
      _
    $region15: #{tpu_custom_call.1} parent=1 // pred_check_branch
      %50 = sbr.rel (0) target = $region17
    $region16: #{tpu_custom_call.1} parent=1 // pred_region
      _
    $region17: #{tpu_custom_call.1} parent=1 // pred_fallthru
      _
    // Predicated region
    $region18: #{tpu_custom_call.1} parent=1 // pred_check
      _
    $region19: #{tpu_custom_call.1} parent=1 // pred_check_branch
      %52 = sbr.rel (0) target = $region21
    $region20: #{tpu_custom_call.1} parent=1 // pred_region
      _
    $region21: #{tpu_custom_call.1} parent=1 // pred_fallthru
      _
    // Predicated region
    $region22: #{tpu_custom_call.1} parent=1 // pred_check
      _
    $region23: #{tpu_custom_call.1} parent=1 // pred_check_branch
      %54 = sbr.rel (0) target = $region25
    $region24: #{tpu_custom_call.1} parent=1 // pred_region
      _
    $region25: #{tpu_custom_call.1} parent=1 // pred_fallthru
      _
    // Predicated region
    $region26: #{tpu_custom_call.1} parent=1 // pred_check
      _
    $region27: #{tpu_custom_call.1} parent=1 // pred_check_branch
      %56 = sbr.rel (0) target = $region29
    $region28: #{tpu_custom_call.1} parent=1 // pred_region
      %s58 = ssub.s32 512, 512
      %59 = vsyncadd [#allocation8], %s58
      %s60 = sshll.u32 [#allocation9], 4
      %s61 = int_to_ptr.vmem [resolvable:$true] %s60
      %66 = dma.hbm_to_vmem [thread:$0]  %s6, 512, %s61, [#allocation8], 128, 128, 8
    $region29: #{tpu_custom_call.1} parent=1 // pred_fallthru
      _
    // Predicated region
    $region30: #{tpu_custom_call.1} parent=1 // pred_check
      _
    $region31: #{tpu_custom_call.1} parent=1 // pred_check_branch
      %68 = sbr.rel (0) target = $region33
    $region32: #{tpu_custom_call.1} parent=1 // pred_region
      _
    $region33: #{tpu_custom_call.1} parent=1 // pred_fallthru
      _
    // Predicated region
    $region34: #{tpu_custom_call.1} parent=1 // pred_check
      _
    $region35: #{tpu_custom_call.1} parent=1 // pred_check_branch
      %70 = sbr.rel (0) target = $region37
    $region36: #{tpu_custom_call.1} parent=1 // pred_region
      _
    $region37: #{tpu_custom_call.1} parent=1 // pred_fallthru
      _
    // Predicated region
    $region38: #{tpu_custom_call.1} parent=1 // pred_check
      _
    $region39: #{tpu_custom_call.1} parent=1 // pred_check_branch
      %72 = sbr.rel (0) target = $region41
    $region40: #{tpu_custom_call.1} parent=1 // pred_region
      _
    $region41: #{tpu_custom_call.1} parent=1 // pred_fallthru
      _
    // Predicated region
    $region42: #{tpu_custom_call.1} parent=1 // pred_check
      _
    $region43: #{tpu_custom_call.1} parent=1 // pred_check_branch
      %74 = sbr.rel (0) target = $region45
    $region44: #{tpu_custom_call.1} parent=1 // pred_region
      %75 = dma.done [#allocation5], 256
    $region45: #{tpu_custom_call.1} parent=1 // pred_fallthru
      _
    // Predicated region
    $region46: #{tpu_custom_call.1} parent=1 // pred_check
      _
    $region47: #{tpu_custom_call.1} parent=1 // pred_check_branch
      %77 = sbr.rel (0) target = $region49
    $region48: #{tpu_custom_call.1} parent=1 // pred_region
      %78 = dma.done [#allocation8], 256
    $region49: #{tpu_custom_call.1} parent=1 // pred_fallthru
      _
    // Predicated region
    $region50: #{tpu_custom_call.1} parent=1 // pred_check
      _
    $region51: #{tpu_custom_call.1} parent=1 // pred_check_branch
      %80 = sbr.rel (0) target = $region53
    $region52: #{tpu_custom_call.1} parent=1 // pred_region
      %81 = dma.done [#allocation8], 512
    $region53: #{tpu_custom_call.1} parent=1 // pred_fallthru
      _
    %v82 = vld [vmem:[#allocation4] sm:$0xff]
    %v83 = vld [vmem:[#allocation4 + $0x8] sm:$0xff]
    %s84 = sld [smem:[#allocation3]]
    %v85 = vlaneseq
    %v86 = vshrl.u32 %v85, 7
    %v87 = vlaneseq
    %v88 = vand.u32 %v87, 127
    %v89 = vmul.u32 %v86, 16
    %v90 = vadd.s32 %v89, 128
    %v91 = vadd.s32 %v89, %v88
    %v92 = vadd.s32 %v90, %v88
    %v93 = vstv %s84
    %v94 = vadd.s32 %v91, %v93
    %v95 = vadd.s32 %v92, %v93
    %v96 = vshrl.u32 %v94, 16
    %v97 = vshrl.u32 %v95, 16
    %v98 = vxor.u32 %v94, %v96
    %v99 = vxor.u32 %v95, %v97
    %v100 = vmul.u32 %v98, 2146121005
    %v101 = vmul.u32 %v99, 2146121005
    %v102 = vshrl.u32 %v100, 15
    %v103 = vshrl.u32 %v101, 15
    %v104 = vxor.u32 %v100, %v102
    %v105 = vxor.u32 %v101, %v103
    %v106 = vmul.u32 %v104, 1759714725
    %v107 = vmul.u32 %v105, 1759714725
    %v108 = vshrl.u32 %v106, 16
    %v109 = vshrl.u32 %v107, 16
    %v110 = vxor.u32 %v106, %v108
    %v111 = vxor.u32 %v107, %v109
    %v112 = vand.u32 %v110, 8388607
    %v113 = vand.u32 %v111, 8388607
    %vm114 = vcmp.ge.s32.totalorder %v112, 3355443
    %vm115 = vcmp.ge.s32.totalorder %v113, 3355443
    %v116 = vmul.f32 %v82, 1.6666666
    %v117 = vmul.f32 %v83, 1.6666666
    %v118 = vsel %vm114, %v116, 0.0
    %v119 = vsel %vm115, %v117, 0.0
    %vm120 = vcmask 130048
    %121 = vst.msk [vmem:[#allocation13] sm:$0xff] %vm120, %v118
    %122 = vst.msk [vmem:[#allocation13 + $0x8] sm:$0xff] %vm120, %v119
    %v123 = vld [vmem:[#allocation7] sm:$0xff]
    %v124 = vld [vmem:[#allocation7 + $0x8] sm:$0xff]
    %v125 = vld [vmem:[%s3] sm:$0xff]
    %v126 = vld [vmem:[%s3 + $0x8] sm:$0xff]
    %v127 = vld [vmem:[%s3 + $0x10] sm:$0xff]
    %v128 = vld [vmem:[%s3 + $0x18] sm:$0xff]
    %v129 = vld [vmem:[%s4] sm:$0x1]
    %v131 = vlaneseq
    %v132 = vshrl.u32 %v131, 7
    %v133 = vsub.s32 0, %v132
    %v134 = vrot.slane %v129, %v133
    %v136 = vld [vmem:[%s5] sm:$0xff]
    %v137 = vld [vmem:[%s5 + $0x8] sm:$0xff]
    %v138 = vld [vmem:[%s5 + $0x10] sm:$0xff]
    %v139 = vld [vmem:[%s5 + $0x18] sm:$0xff]
    %v140 = vld [vmem:[#allocation9] sm:$0xff]
    %v141 = vld [vmem:[#allocation9 + $0x8] sm:$0xff]
    %v142 = vld [vmem:[#allocation9 + $0x10] sm:$0xff]
    %v143 = vld [vmem:[#allocation9 + $0x18] sm:$0xff]
    %v144 = vld [vmem:[%s7] sm:$0x1]
    %v146 = vlaneseq
    %v147 = vshrl.u32 %v146, 7
    %v148 = vsub.s32 0, %v147
    %v149 = vrot.slane %v144, %v148
    %vm151 = vcmask 261120
    %v153 = vsel %vm151, 0.0, 0
    %155 = vmatprep.subr.mxu0 0.0
    %156 = vmatpush1.msra.mxu0 %v125
    %157 = vmatprep.subr.mxu0 0.0
    %158 = vmatpush1.msra.mxu0 %v126
    %159 = vmatprep.subr.mxu0 0.0
    %160 = vmatpush1.msra.mxu0 %v127
    %161 = vmatprep.subr.mxu0 0.0
    %162 = vmatpush1.msra.mxu0 %v128
    %163 = vmatprep.subr.mxu0 0.0
    %164 = vmatpush1.msra.mxu0 0.0
    %165 = vmatprep.subr.mxu0 0.0
    %166 = vmatpush1.msra.mxu0 0.0
    %167 = vmatprep.subr.mxu0 0.0
    %168 = vmatpush1.msra.mxu0 0.0
    %169 = vmatprep.subr.mxu0 0.0
    %170 = vmatpush1.msra.mxu0 0.0
    %171 = vmatprep.subr.mxu0 0.0
    %172 = vmatpush1.msra.mxu0 0.0
    %173 = vmatprep.subr.mxu0 0.0
    %174 = vmatpush1.msra.mxu0 0.0
    %175 = vmatprep.subr.mxu0 0.0
    %176 = vmatpush1.msra.mxu0 0.0
    %177 = vmatprep.subr.mxu0 0.0
    %178 = vmatpush1.msra.mxu0 0.0
    %179 = vmatprep.subr.mxu0 0.0
    %180 = vmatpush1.msra.mxu0 0.0
    %181 = vmatprep.subr.mxu0 0.0
    %182 = vmatpush1.msra.mxu0 0.0
    %183 = vmatprep.subr.mxu0 0.0
    %184 = vmatpush1.msra.mxu0 0.0
    %185 = vmatprep.subr.mxu0 0.0
    %186 = vmatpush1.msra.mxu0 0.0
    %187 = vmatprep.subr.mxu0 0.0
    %188 = vmatpush1.msra.mxu0 0.0
    %189 = vmatprep.subr.mxu0 0.0
    %190 = vmatpush1.msra.mxu0 0.0
    %191 = vmatprep.subr.mxu0 0.0
    %192 = vmatpush1.msra.mxu0 0.0
    %193 = vmatprep.subr.mxu0 0.0
    %194 = vmatpush1.msra.mxu0 0.0
    %195 = vmatprep.subr.mxu0 0.0
    %196 = vmatpush1.msra.mxu0 0.0
    %197 = vmatprep.subr.mxu0 0.0
    %198 = vmatpush1.msra.mxu0 0.0
    %199 = vmatprep.subr.mxu0 0.0
    %200 = vmatpush1.msra.mxu0 0.0
    %201 = vmatprep.subr.mxu0 0.0
    %202 = vmatpush1.msra.mxu0 0.0
    %203 = vmatprep.subr.mxu0 0.0
    %204 = vmatpush1.msra.mxu0 0.0
    %205 = vmatprep.subr.mxu0 0.0
    %206 = vmatpush1.msra.mxu0 0.0
    %207 = vmatprep.subr.mxu0 0.0
    %208 = vmatpush1.msra.mxu0 0.0
    %209 = vmatprep.subr.mxu0 0.0
    %210 = vmatpush1.msra.mxu0 0.0
    %211 = vmatprep.subr.mxu0 0.0
    %212 = vmatpush1.msra.mxu0 0.0
    %213 = vmatprep.subr.mxu0 0.0
    %214 = vmatpush1.msra.mxu0 0.0
    %215 = vmatprep.subr.mxu0 0.0
    %216 = vmatpush1.msra.mxu0 0.0
    %217 = vmatprep.subr.mxu0 0.0
    %218 = vmatpush1.msra.mxu0 0.0
    %219 = vmatprep.mubr.f32.mxu0 0.0
    %220 = vmatmul.mubr.f32.gmra.mrb[0].mxu0 %v153
    %v221 = vpop.f32.mrb[0].mxu0
    %v222 = vadd.f32 0.0, %v221
    %v223 = vpop.f32.mrb[0].mxu0
    %224 = vdwg.mxu0
    %v227 = vrot.slane %v119, 7
    %vm228 = vcmask 1041409
    %v229 = vsel %vm228, %v227, %v118
    %v230 = vsel %vm120, %v229, 0
    %232 = vmatprep.subr.mxu0 0.0
    %233 = vmatpush1.msra.mxu0 %v123
    %234 = vmatprep.subr.mxu0 0.0
    %235 = vmatpush1.msra.mxu0 %v124
    %236 = vmatprep.subr.mxu0 0.0
    %237 = vmatpush1.msra.mxu0 0.0
    %238 = vmatprep.subr.mxu0 0.0
    %239 = vmatpush1.msra.mxu0 0.0
    %240 = vmatprep.subr.mxu0 0.0
    %241 = vmatpush1.msra.mxu0 0.0
    %242 = vmatprep.subr.mxu0 0.0
    %243 = vmatpush1.msra.mxu0 0.0
    %244 = vmatprep.subr.mxu0 0.0
    %245 = vmatpush1.msra.mxu0 0.0
    %246 = vmatprep.subr.mxu0 0.0
    %247 = vmatpush1.msra.mxu0 0.0
    %248 = vmatprep.subr.mxu0 0.0
    %249 = vmatpush1.msra.mxu0 0.0
    %250 = vmatprep.subr.mxu0 0.0
    %251 = vmatpush1.msra.mxu0 0.0
    %252 = vmatprep.subr.mxu0 0.0
    %253 = vmatpush1.msra.mxu0 0.0
    %254 = vmatprep.subr.mxu0 0.0
    %255 = vmatpush1.msra.mxu0 0.0
    %256 = vmatprep.subr.mxu0 0.0
    %257 = vmatpush1.msra.mxu0 0.0
    %258 = vmatprep.subr.mxu0 0.0
    %259 = vmatpush1.msra.mxu0 0.0
    %260 = vmatprep.subr.mxu0 0.0
    %261 = vmatpush1.msra.mxu0 0.0
    %262 = vmatprep.subr.mxu0 0.0
    %263 = vmatpush1.msra.mxu0 0.0
    %264 = vmatprep.subr.mxu0 0.0
    %265 = vmatpush1.msra.mxu0 0.0
    %266 = vmatprep.subr.mxu0 0.0
    %267 = vmatpush1.msra.mxu0 0.0
    %268 = vmatprep.subr.mxu0 0.0
    %269 = vmatpush1.msra.mxu0 0.0
    %270 = vmatprep.subr.mxu0 0.0
    %271 = vmatpush1.msra.mxu0 0.0
    %272 = vmatprep.subr.mxu0 0.0
    %273 = vmatpush1.msra.mxu0 0.0
    %274 = vmatprep.subr.mxu0 0.0
    %275 = vmatpush1.msra.mxu0 0.0
    %276 = vmatprep.subr.mxu0 0.0
    %277 = vmatpush1.msra.mxu0 0.0
    %278 = vmatprep.subr.mxu0 0.0
    %279 = vmatpush1.msra.mxu0 0.0
    %280 = vmatprep.subr.mxu0 0.0
    %281 = vmatpush1.msra.mxu0 0.0
    %282 = vmatprep.subr.mxu0 0.0
    %283 = vmatpush1.msra.mxu0 0.0
    %284 = vmatprep.subr.mxu0 0.0
    %285 = vmatpush1.msra.mxu0 0.0
    %286 = vmatprep.subr.mxu0 0.0
    %287 = vmatpush1.msra.mxu0 0.0
    %288 = vmatprep.subr.mxu0 0.0
    %289 = vmatpush1.msra.mxu0 0.0
    %290 = vmatprep.subr.mxu0 0.0
    %291 = vmatpush1.msra.mxu0 0.0
    %292 = vmatprep.subr.mxu0 0.0
    %293 = vmatpush1.msra.mxu0 0.0
    %294 = vmatprep.subr.mxu0 0.0
    %295 = vmatpush1.msra.mxu0 0.0
    %296 = vmatprep.mubr.f32.mxu0 0.0
    %297 = vmatmul.mubr.f32.gmra.mrb[0].mxu0 %v230
    %v298 = vpop.f32.mrb[0].mxu0
    %v299 = vadd.f32 %v222, %v298
    %v300 = vpop.f32.mrb[0].mxu0
    %301 = vdwg.mxu0
    %v302 = vadd.f32 %v299, %v134
    %v303 = vxor.u32 %v302, 2147483648
    %v304 = vmul.f32 %v303, 1.442695
    %v305 = vpow.pop %v304
    %v306 = vadd.f32 %v305, 1.0
    %v307 = vrcp.pop %v306
    %v308 = vmul.f32 1.0, %v307
    %v309 = vtanh.pop %v302
    %v310 = vmul.f32 %v308, 0.0
    %312 = vrot.lane.b32.xlu0 %v309, 64
    %v313 = vpop.permute.xlu0 %312
    %v315 = vmul.f32 %v308, %v313
    %317 = vrot.lane.b32.xlu0 %v315, 32
    %v318 = vpop.permute.xlu0 %317
    %v320 = vadd.f32 %v310, %v318
    %v321 = vtanh.pop %v320
    %323 = vrot.lane.b32.xlu0 %v321, 64
    %v324 = vpop.permute.xlu0 %323
    %v326 = vmul.f32 %v308, %v324
    %327 = vmatprep.subr.mxu0 0.0
    %328 = vmatpush1.msra.mxu0 %v140
    %329 = vmatprep.subr.mxu0 0.0
    %330 = vmatpush1.msra.mxu0 %v141
    %331 = vmatprep.subr.mxu0 0.0
    %332 = vmatpush1.msra.mxu0 %v142
    %333 = vmatprep.subr.mxu0 0.0
    %334 = vmatpush1.msra.mxu0 %v143
    %335 = vmatprep.subr.mxu0 0.0
    %336 = vmatpush1.msra.mxu0 0.0
    %337 = vmatprep.subr.mxu0 0.0
    %338 = vmatpush1.msra.mxu0 0.0
    %339 = vmatprep.subr.mxu0 0.0
    %340 = vmatpush1.msra.mxu0 0.0
    %341 = vmatprep.subr.mxu0 0.0
    %342 = vmatpush1.msra.mxu0 0.0
    %343 = vmatprep.subr.mxu0 0.0
    %344 = vmatpush1.msra.mxu0 0.0
    %345 = vmatprep.subr.mxu0 0.0
    %346 = vmatpush1.msra.mxu0 0.0
    %347 = vmatprep.subr.mxu0 0.0
    %348 = vmatpush1.msra.mxu0 0.0
    %349 = vmatprep.subr.mxu0 0.0
    %350 = vmatpush1.msra.mxu0 0.0
    %351 = vmatprep.subr.mxu0 0.0
    %352 = vmatpush1.msra.mxu0 0.0
    %353 = vmatprep.subr.mxu0 0.0
    %354 = vmatpush1.msra.mxu0 0.0
    %355 = vmatprep.subr.mxu0 0.0
    %356 = vmatpush1.msra.mxu0 0.0
    %357 = vmatprep.subr.mxu0 0.0
    %358 = vmatpush1.msra.mxu0 0.0
    %359 = vmatprep.subr.mxu0 0.0
    %360 = vmatpush1.msra.mxu0 0.0
    %361 = vmatprep.subr.mxu0 0.0
    %362 = vmatpush1.msra.mxu0 0.0
    %363 = vmatprep.subr.mxu0 0.0
    %364 = vmatpush1.msra.mxu0 0.0
    %365 = vmatprep.subr.mxu0 0.0
    %366 = vmatpush1.msra.mxu0 0.0
    %367 = vmatprep.subr.mxu0 0.0
    %368 = vmatpush1.msra.mxu0 0.0
    %369 = vmatprep.subr.mxu0 0.0
    %370 = vmatpush1.msra.mxu0 0.0
    %371 = vmatprep.subr.mxu0 0.0
    %372 = vmatpush1.msra.mxu0 0.0
    %373 = vmatprep.subr.mxu0 0.0
    %374 = vmatpush1.msra.mxu0 0.0
    %375 = vmatprep.subr.mxu0 0.0
    %376 = vmatpush1.msra.mxu0 0.0
    %377 = vmatprep.subr.mxu0 0.0
    %378 = vmatpush1.msra.mxu0 0.0
    %379 = vmatprep.subr.mxu0 0.0
    %380 = vmatpush1.msra.mxu0 0.0
    %381 = vmatprep.subr.mxu0 0.0
    %382 = vmatpush1.msra.mxu0 0.0
    %383 = vmatprep.subr.mxu0 0.0
    %384 = vmatpush1.msra.mxu0 0.0
    %385 = vmatprep.subr.mxu0 0.0
    %386 = vmatpush1.msra.mxu0 0.0
    %387 = vmatprep.subr.mxu0 0.0
    %388 = vmatpush1.msra.mxu0 0.0
    %389 = vmatprep.subr.mxu0 0.0
    %390 = vmatpush1.msra.mxu0 0.0
    %391 = vmatprep.mubr.f32.mxu0 0.0
    %392 = vmatmul.mubr.f32.gmra.mrb[0].mxu0 %v153
    %v393 = vpop.f32.mrb[0].mxu0
    %v394 = vadd.f32 0.0, %v393
    %v395 = vpop.f32.mrb[0].mxu0
    %396 = vdwg.mxu0
    %398 = vrot.lane.b32.xlu0 %v326, 32
    %v399 = vpop.permute.xlu0 %398
    %v400 = vsel %vm151, %v399, 0
    %402 = vmatprep.subr.mxu0 0.0
    %403 = vmatpush1.msra.mxu0 %v136
    %404 = vmatprep.subr.mxu0 0.0
    %405 = vmatpush1.msra.mxu0 %v137
    %406 = vmatprep.subr.mxu0 0.0
    %407 = vmatpush1.msra.mxu0 %v138
    %408 = vmatprep.subr.mxu0 0.0
    %409 = vmatpush1.msra.mxu0 %v139
    %410 = vmatprep.subr.mxu0 0.0
    %411 = vmatpush1.msra.mxu0 0.0
    %412 = vmatprep.subr.mxu0 0.0
    %413 = vmatpush1.msra.mxu0 0.0
    %414 = vmatprep.subr.mxu0 0.0
    %415 = vmatpush1.msra.mxu0 0.0
    %416 = vmatprep.subr.mxu0 0.0
    %417 = vmatpush1.msra.mxu0 0.0
    %418 = vmatprep.subr.mxu0 0.0
    %419 = vmatpush1.msra.mxu0 0.0
    %420 = vmatprep.subr.mxu0 0.0
    %421 = vmatpush1.msra.mxu0 0.0
    %422 = vmatprep.subr.mxu0 0.0
    %423 = vmatpush1.msra.mxu0 0.0
    %424 = vmatprep.subr.mxu0 0.0
    %425 = vmatpush1.msra.mxu0 0.0
    %426 = vmatprep.subr.mxu0 0.0
    %427 = vmatpush1.msra.mxu0 0.0
    %428 = vmatprep.subr.mxu0 0.0
    %429 = vmatpush1.msra.mxu0 0.0
    %430 = vmatprep.subr.mxu0 0.0
    %431 = vmatpush1.msra.mxu0 0.0
    %432 = vmatprep.subr.mxu0 0.0
    %433 = vmatpush1.msra.mxu0 0.0
    %434 = vmatprep.subr.mxu0 0.0
    %435 = vmatpush1.msra.mxu0 0.0
    %436 = vmatprep.subr.mxu0 0.0
    %437 = vmatpush1.msra.mxu0 0.0
    %438 = vmatprep.subr.mxu0 0.0
    %439 = vmatpush1.msra.mxu0 0.0
    %440 = vmatprep.subr.mxu0 0.0
    %441 = vmatpush1.msra.mxu0 0.0
    %442 = vmatprep.subr.mxu0 0.0
    %443 = vmatpush1.msra.mxu0 0.0
    %444 = vmatprep.subr.mxu0 0.0
    %445 = vmatpush1.msra.mxu0 0.0
    %446 = vmatprep.subr.mxu0 0.0
    %447 = vmatpush1.msra.mxu0 0.0
    %448 = vmatprep.subr.mxu0 0.0
    %449 = vmatpush1.msra.mxu0 0.0
    %450 = vmatprep.subr.mxu0 0.0
    %451 = vmatpush1.msra.mxu0 0.0
    %452 = vmatprep.subr.mxu0 0.0
    %453 = vmatpush1.msra.mxu0 0.0
    %454 = vmatprep.subr.mxu0 0.0
    %455 = vmatpush1.msra.mxu0 0.0
    %456 = vmatprep.subr.mxu0 0.0
    %457 = vmatpush1.msra.mxu0 0.0
    %458 = vmatprep.subr.mxu0 0.0
    %459 = vmatpush1.msra.mxu0 0.0
    %460 = vmatprep.subr.mxu0 0.0
    %461 = vmatpush1.msra.mxu0 0.0
    %462 = vmatprep.subr.mxu0 0.0
    %463 = vmatpush1.msra.mxu0 0.0
    %464 = vmatprep.subr.mxu0 0.0
    %465 = vmatpush1.msra.mxu0 0.0
    %466 = vmatprep.mubr.f32.mxu0 0.0
    %467 = vmatmul.mubr.f32.gmra.mrb[0].mxu0 %v400
    %v468 = vpop.f32.mrb[0].mxu0
    %v469 = vadd.f32 %v394, %v468
    %v470 = vpop.f32.mrb[0].mxu0
    %471 = vdwg.mxu0
    %v472 = vadd.f32 %v469, %v149
    %v473 = vxor.u32 %v472, 2147483648
    %v474 = vmul.f32 %v473, 1.442695
    %v475 = vpow.pop %v474
    %v476 = vadd.f32 %v475, 1.0
    %v477 = vrcp.pop %v476
    %v478 = vmul.f32 1.0, %v477
    %v479 = vtanh.pop %v472
    %v480 = vmul.f32 %v478, 0.0
    %482 = vrot.lane.b32.xlu0 %v479, 64
    %v483 = vpop.permute.xlu0 %482
    %v485 = vmul.f32 %v478, %v483
    %487 = vrot.lane.b32.xlu0 %v485, 32
    %v488 = vpop.permute.xlu0 %487
    %v490 = vadd.f32 %v480, %v488
    %v491 = vtanh.pop %v490
    %493 = vrot.lane.b32.xlu0 %v491, 64
    %v494 = vpop.permute.xlu0 %493
    %v496 = vmul.f32 %v478, %v494
    %v499 = vunpack.c.l.s4 1966171168
    %v500 = vunpack.c.0.s8 %v499
    %v501 = vlaneseq
    %v502 = vshrl.u32 %v501, 7
    %v503 = vsub.s32 %v500, %v502
    %v504 = vrot.slane %v496, %v503
    %v505 = vcombine.high %v504, %v504
    %v507 = vunpack.c.l.s4 1966171168
    %v508 = vunpack.c.0.s8 %v507
    %v509 = vlaneseq
    %v510 = vshrl.u32 %v509, 7
    %v511 = vsub.s32 %v508, %v510
    %v512 = vrot.slane %v504, %v511
    %v514 = vunpack.c.l.s4 1966171168
    %v515 = vunpack.c.0.s8 %v514
    %v516 = vlaneseq
    %v517 = vshrl.u32 %v516, 7
    %v518 = vsub.s32 %v515, %v517
    %v519 = vrot.slane %v505, %v518
    %v520 = vlaneseq
    %v521 = vshrl.u32 %v520, 7
    %v522 = vsub.s32 0, %v521
    %v523 = vrot.slane %v512, %v522
    %v524 = vlaneseq
    %v525 = vshrl.u32 %v524, 7
    %v526 = vsub.s32 0, %v525
    %v527 = vrot.slane %v519, %v526
    %528 = vrot.lane.b32.xlu0 %v523, 32
    %v529 = vpop.permute.xlu0 %528
    %530 = vrot.lane.b32.xlu0 %v527, 32
    %v531 = vpop.permute.xlu0 %530
    %vm534 = vcmask 253952
    %535 = vst.msk [vmem:[#allocation2] sm:$0x1] %vm534, %v529
    %536 = vst.msk [vmem:[#allocation2 + $0x8] sm:$0x1] %vm534, %v531
    %537 = vmatprep.subr.mxu0 0.0
    %538 = vmatpush1.msra.mxu0 %v125
    %539 = vmatprep.subr.mxu0 0.0
    %540 = vmatpush1.msra.mxu0 %v126
    %541 = vmatprep.subr.mxu0 0.0
    %542 = vmatpush1.msra.mxu0 %v127
    %543 = vmatprep.subr.mxu0 0.0
    %544 = vmatpush1.msra.mxu0 %v128
    %545 = vmatprep.subr.mxu0 0.0
    %546 = vmatpush1.msra.mxu0 0.0
    %547 = vmatprep.subr.mxu0 0.0
    %548 = vmatpush1.msra.mxu0 0.0
    %549 = vmatprep.subr.mxu0 0.0
    %550 = vmatpush1.msra.mxu0 0.0
    %551 = vmatprep.subr.mxu0 0.0
    %552 = vmatpush1.msra.mxu0 0.0
    %553 = vmatprep.subr.mxu0 0.0
    %554 = vmatpush1.msra.mxu0 0.0
    %555 = vmatprep.subr.mxu0 0.0
    %556 = vmatpush1.msra.mxu0 0.0
    %557 = vmatprep.subr.mxu0 0.0
    %558 = vmatpush1.msra.mxu0 0.0
    %559 = vmatprep.subr.mxu0 0.0
    %560 = vmatpush1.msra.mxu0 0.0
    %561 = vmatprep.subr.mxu0 0.0
    %562 = vmatpush1.msra.mxu0 0.0
    %563 = vmatprep.subr.mxu0 0.0
    %564 = vmatpush1.msra.mxu0 0.0
    %565 = vmatprep.subr.mxu0 0.0
    %566 = vmatpush1.msra.mxu0 0.0
    %567 = vmatprep.subr.mxu0 0.0
    %568 = vmatpush1.msra.mxu0 0.0
    %569 = vmatprep.subr.mxu0 0.0
    %570 = vmatpush1.msra.mxu0 0.0
    %571 = vmatprep.subr.mxu0 0.0
    %572 = vmatpush1.msra.mxu0 0.0
    %573 = vmatprep.subr.mxu0 0.0
    %574 = vmatpush1.msra.mxu0 0.0
    %575 = vmatprep.subr.mxu0 0.0
    %576 = vmatpush1.msra.mxu0 0.0
    %577 = vmatprep.subr.mxu0 0.0
    %578 = vmatpush1.msra.mxu0 0.0
    %579 = vmatprep.subr.mxu0 0.0
    %580 = vmatpush1.msra.mxu0 0.0
    %581 = vmatprep.subr.mxu0 0.0
    %582 = vmatpush1.msra.mxu0 0.0
    %583 = vmatprep.subr.mxu0 0.0
    %584 = vmatpush1.msra.mxu0 0.0
    %585 = vmatprep.subr.mxu0 0.0
    %586 = vmatpush1.msra.mxu0 0.0
    %587 = vmatprep.subr.mxu0 0.0
    %588 = vmatpush1.msra.mxu0 0.0
    %589 = vmatprep.subr.mxu0 0.0
    %590 = vmatpush1.msra.mxu0 0.0
    %591 = vmatprep.subr.mxu0 0.0
    %592 = vmatpush1.msra.mxu0 0.0
    %593 = vmatprep.subr.mxu0 0.0
    %594 = vmatpush1.msra.mxu0 0.0
    %595 = vmatprep.subr.mxu0 0.0
    %596 = vmatpush1.msra.mxu0 0.0
    %597 = vmatprep.subr.mxu0 0.0
    %598 = vmatpush1.msra.mxu0 0.0
    %599 = vmatprep.subr.mxu0 0.0
    %600 = vmatpush1.msra.mxu0 0.0
    %601 = vmatprep.mubr.f32.mxu0 0.0
    %602 = vmatmul.mubr.f32.gmra.mrb[0].mxu0 %v400
    %v603 = vpop.f32.mrb[0].mxu0
    %v604 = vadd.f32 0.0, %v603
    %v605 = vpop.f32.mrb[0].mxu0
    %606 = vdwg.mxu0
    %v607 = vrot.slane %v118, 1
    %v608 = vsel %vm228, %v119, %v607
    %v609 = vsel %vm120, %v608, 0
    %611 = vmatprep.subr.mxu0 0.0
    %612 = vmatpush1.msra.mxu0 %v123
    %613 = vmatprep.subr.mxu0 0.0
    %614 = vmatpush1.msra.mxu0 %v124
    %615 = vmatprep.subr.mxu0 0.0
    %616 = vmatpush1.msra.mxu0 0.0
    %617 = vmatprep.subr.mxu0 0.0
    %618 = vmatpush1.msra.mxu0 0.0
    %619 = vmatprep.subr.mxu0 0.0
    %620 = vmatpush1.msra.mxu0 0.0
    %621 = vmatprep.subr.mxu0 0.0
    %622 = vmatpush1.msra.mxu0 0.0
    %623 = vmatprep.subr.mxu0 0.0
    %624 = vmatpush1.msra.mxu0 0.0
    %625 = vmatprep.subr.mxu0 0.0
    %626 = vmatpush1.msra.mxu0 0.0
    %627 = vmatprep.subr.mxu0 0.0
    %628 = vmatpush1.msra.mxu0 0.0
    %629 = vmatprep.subr.mxu0 0.0
    %630 = vmatpush1.msra.mxu0 0.0
    %631 = vmatprep.subr.mxu0 0.0
    %632 = vmatpush1.msra.mxu0 0.0
    %633 = vmatprep.subr.mxu0 0.0
    %634 = vmatpush1.msra.mxu0 0.0
    %635 = vmatprep.subr.mxu0 0.0
    %636 = vmatpush1.msra.mxu0 0.0
    %637 = vmatprep.subr.mxu0 0.0
    %638 = vmatpush1.msra.mxu0 0.0
    %639 = vmatprep.subr.mxu0 0.0
    %640 = vmatpush1.msra.mxu0 0.0
    %641 = vmatprep.subr.mxu0 0.0
    %642 = vmatpush1.msra.mxu0 0.0
    %643 = vmatprep.subr.mxu0 0.0
    %644 = vmatpush1.msra.mxu0 0.0
    %645 = vmatprep.subr.mxu0 0.0
    %646 = vmatpush1.msra.mxu0 0.0
    %647 = vmatprep.subr.mxu0 0.0
    %648 = vmatpush1.msra.mxu0 0.0
    %649 = vmatprep.subr.mxu0 0.0
    %650 = vmatpush1.msra.mxu0 0.0
    %651 = vmatprep.subr.mxu0 0.0
    %652 = vmatpush1.msra.mxu0 0.0
    %653 = vmatprep.subr.mxu0 0.0
    %654 = vmatpush1.msra.mxu0 0.0
    %655 = vmatprep.subr.mxu0 0.0
    %656 = vmatpush1.msra.mxu0 0.0
    %657 = vmatprep.subr.mxu0 0.0
    %658 = vmatpush1.msra.mxu0 0.0
    %659 = vmatprep.subr.mxu0 0.0
    %660 = vmatpush1.msra.mxu0 0.0
    %661 = vmatprep.subr.mxu0 0.0
    %662 = vmatpush1.msra.mxu0 0.0
    %663 = vmatprep.subr.mxu0 0.0
    %664 = vmatpush1.msra.mxu0 0.0
    %665 = vmatprep.subr.mxu0 0.0
    %666 = vmatpush1.msra.mxu0 0.0
    %667 = vmatprep.subr.mxu0 0.0
    %668 = vmatpush1.msra.mxu0 0.0
    %669 = vmatprep.subr.mxu0 0.0
    %670 = vmatpush1.msra.mxu0 0.0
    %671 = vmatprep.subr.mxu0 0.0
    %672 = vmatpush1.msra.mxu0 0.0
    %673 = vmatprep.subr.mxu0 0.0
    %674 = vmatpush1.msra.mxu0 0.0
    %675 = vmatprep.mubr.f32.mxu0 0.0
    %676 = vmatmul.mubr.f32.gmra.mrb[0].mxu0 %v609
    %v677 = vpop.f32.mrb[0].mxu0
    %v678 = vadd.f32 %v604, %v677
    %v679 = vpop.f32.mrb[0].mxu0
    %680 = vdwg.mxu0
    %v681 = vadd.f32 %v678, %v134
    %v682 = vxor.u32 %v681, 2147483648
    %v683 = vmul.f32 %v682, 1.442695
    %v684 = vpow.pop %v683
    %v685 = vadd.f32 %v684, 1.0
    %v686 = vrcp.pop %v685
    %v687 = vmul.f32 1.0, %v686
    %v688 = vtanh.pop %v681
    %v689 = vmul.f32 %v687, %v320
    %691 = vrot.lane.b32.xlu0 %v688, 64
    %v692 = vpop.permute.xlu0 %691
    %v694 = vmul.f32 %v687, %v692
    %696 = vrot.lane.b32.xlu0 %v694, 32
    %v697 = vpop.permute.xlu0 %696
    %v699 = vadd.f32 %v689, %v697
    %v700 = vtanh.pop %v699
    %702 = vrot.lane.b32.xlu0 %v700, 64
    %v703 = vpop.permute.xlu0 %702
    %v705 = vmul.f32 %v687, %v703
    %706 = vrot.lane.b32.xlu0 %v496, 32
    %v707 = vpop.permute.xlu0 %706
    %v708 = vsel %vm151, %v707, 0
    %710 = vmatprep.subr.mxu0 0.0
    %711 = vmatpush1.msra.mxu0 %v140
    %712 = vmatprep.subr.mxu0 0.0
    %713 = vmatpush1.msra.mxu0 %v141
    %714 = vmatprep.subr.mxu0 0.0
    %715 = vmatpush1.msra.mxu0 %v142
    %716 = vmatprep.subr.mxu0 0.0
    %717 = vmatpush1.msra.mxu0 %v143
    %718 = vmatprep.subr.mxu0 0.0
    %719 = vmatpush1.msra.mxu0 0.0
    %720 = vmatprep.subr.mxu0 0.0
    %721 = vmatpush1.msra.mxu0 0.0
    %722 = vmatprep.subr.mxu0 0.0
    %723 = vmatpush1.msra.mxu0 0.0
    %724 = vmatprep.subr.mxu0 0.0
    %725 = vmatpush1.msra.mxu0 0.0
    %726 = vmatprep.subr.mxu0 0.0
    %727 = vmatpush1.msra.mxu0 0.0
    %728 = vmatprep.subr.mxu0 0.0
    %729 = vmatpush1.msra.mxu0 0.0
    %730 = vmatprep.subr.mxu0 0.0
    %731 = vmatpush1.msra.mxu0 0.0
    %732 = vmatprep.subr.mxu0 0.0
    %733 = vmatpush1.msra.mxu0 0.0
    %734 = vmatprep.subr.mxu0 0.0
    %735 = vmatpush1.msra.mxu0 0.0
    %736 = vmatprep.subr.mxu0 0.0
    %737 = vmatpush1.msra.mxu0 0.0
    %738 = vmatprep.subr.mxu0 0.0
    %739 = vmatpush1.msra.mxu0 0.0
    %740 = vmatprep.subr.mxu0 0.0
    %741 = vmatpush1.msra.mxu0 0.0
    %742 = vmatprep.subr.mxu0 0.0
    %743 = vmatpush1.msra.mxu0 0.0
    %744 = vmatprep.subr.mxu0 0.0
    %745 = vmatpush1.msra.mxu0 0.0
    %746 = vmatprep.subr.mxu0 0.0
    %747 = vmatpush1.msra.mxu0 0.0
    %748 = vmatprep.subr.mxu0 0.0
    %749 = vmatpush1.msra.mxu0 0.0
    %750 = vmatprep.subr.mxu0 0.0
    %751 = vmatpush1.msra.mxu0 0.0
    %752 = vmatprep.subr.mxu0 0.0
    %753 = vmatpush1.msra.mxu0 0.0
    %754 = vmatprep.subr.mxu0 0.0
    %755 = vmatpush1.msra.mxu0 0.0
    %756 = vmatprep.subr.mxu0 0.0
    %757 = vmatpush1.msra.mxu0 0.0
    %758 = vmatprep.subr.mxu0 0.0
    %759 = vmatpush1.msra.mxu0 0.0
    %760 = vmatprep.subr.mxu0 0.0
    %761 = vmatpush1.msra.mxu0 0.0
    %762 = vmatprep.subr.mxu0 0.0
    %763 = vmatpush1.msra.mxu0 0.0
    %764 = vmatprep.subr.mxu0 0.0
    %765 = vmatpush1.msra.mxu0 0.0
    %766 = vmatprep.subr.mxu0 0.0
    %767 = vmatpush1.msra.mxu0 0.0
    %768 = vmatprep.subr.mxu0 0.0
    %769 = vmatpush1.msra.mxu0 0.0
    %770 = vmatprep.subr.mxu0 0.0
    %771 = vmatpush1.msra.mxu0 0.0
    %772 = vmatprep.subr.mxu0 0.0
    %773 = vmatpush1.msra.mxu0 0.0
    %774 = vmatprep.mubr.f32.mxu0 0.0
    %775 = vmatmul.mubr.f32.gmra.mrb[0].mxu0 %v708
    %v776 = vpop.f32.mrb[0].mxu0
    %v777 = vadd.f32 0.0, %v776
    %v778 = vpop.f32.mrb[0].mxu0
    %779 = vdwg.mxu0
    %781 = vrot.lane.b32.xlu0 %v705, 32
    %v782 = vpop.permute.xlu0 %781
    %v783 = vsel %vm151, %v782, 0
    %785 = vmatprep.subr.mxu0 0.0
    %786 = vmatpush1.msra.mxu0 %v136
    %787 = vmatprep.subr.mxu0 0.0
    %788 = vmatpush1.msra.mxu0 %v137
    %789 = vmatprep.subr.mxu0 0.0
    %790 = vmatpush1.msra.mxu0 %v138
    %791 = vmatprep.subr.mxu0 0.0
    %792 = vmatpush1.msra.mxu0 %v139
    %793 = vmatprep.subr.mxu0 0.0
    %794 = vmatpush1.msra.mxu0 0.0
    %795 = vmatprep.subr.mxu0 0.0
    %796 = vmatpush1.msra.mxu0 0.0
    %797 = vmatprep.subr.mxu0 0.0
    %798 = vmatpush1.msra.mxu0 0.0
    %799 = vmatprep.subr.mxu0 0.0
    %800 = vmatpush1.msra.mxu0 0.0
    %801 = vmatprep.subr.mxu0 0.0
    %802 = vmatpush1.msra.mxu0 0.0
    %803 = vmatprep.subr.mxu0 0.0
    %804 = vmatpush1.msra.mxu0 0.0
    %805 = vmatprep.subr.mxu0 0.0
    %806 = vmatpush1.msra.mxu0 0.0
    %807 = vmatprep.subr.mxu0 0.0
    %808 = vmatpush1.msra.mxu0 0.0
    %809 = vmatprep.subr.mxu0 0.0
    %810 = vmatpush1.msra.mxu0 0.0
    %811 = vmatprep.subr.mxu0 0.0
    %812 = vmatpush1.msra.mxu0 0.0
    %813 = vmatprep.subr.mxu0 0.0
    %814 = vmatpush1.msra.mxu0 0.0
    %815 = vmatprep.subr.mxu0 0.0
    %816 = vmatpush1.msra.mxu0 0.0
    %817 = vmatprep.subr.mxu0 0.0
    %818 = vmatpush1.msra.mxu0 0.0
    %819 = vmatprep.subr.mxu0 0.0
    %820 = vmatpush1.msra.mxu0 0.0
    %821 = vmatprep.subr.mxu0 0.0
    %822 = vmatpush1.msra.mxu0 0.0
    %823 = vmatprep.subr.mxu0 0.0
    %824 = vmatpush1.msra.mxu0 0.0
    %825 = vmatprep.subr.mxu0 0.0
    %826 = vmatpush1.msra.mxu0 0.0
    %827 = vmatprep.subr.mxu0 0.0
    %828 = vmatpush1.msra.mxu0 0.0
    %829 = vmatprep.subr.mxu0 0.0
    %830 = vmatpush1.msra.mxu0 0.0
    %831 = vmatprep.subr.mxu0 0.0
    %832 = vmatpush1.msra.mxu0 0.0
    %833 = vmatprep.subr.mxu0 0.0
    %834 = vmatpush1.msra.mxu0 0.0
    %835 = vmatprep.subr.mxu0 0.0
    %836 = vmatpush1.msra.mxu0 0.0
    %837 = vmatprep.subr.mxu0 0.0
    %838 = vmatpush1.msra.mxu0 0.0
    %839 = vmatprep.subr.mxu0 0.0
    %840 = vmatpush1.msra.mxu0 0.0
    %841 = vmatprep.subr.mxu0 0.0
    %842 = vmatpush1.msra.mxu0 0.0
    %843 = vmatprep.subr.mxu0 0.0
    %844 = vmatpush1.msra.mxu0 0.0
    %845 = vmatprep.subr.mxu0 0.0
    %846 = vmatpush1.msra.mxu0 0.0
    %847 = vmatprep.subr.mxu0 0.0
    %848 = vmatpush1.msra.mxu0 0.0
    %849 = vmatprep.mubr.f32.mxu0 0.0
    %850 = vmatmul.mubr.f32.gmra.mrb[0].mxu0 %v783
    %v851 = vpop.f32.mrb[0].mxu0
    %v852 = vadd.f32 %v777, %v851
    %v853 = vpop.f32.mrb[0].mxu0
    %854 = vdwg.mxu0
    %v855 = vadd.f32 %v852, %v149
    %v856 = vxor.u32 %v855, 2147483648
    %v857 = vmul.f32 %v856, 1.442695
    %v858 = vpow.pop %v857
    %v859 = vadd.f32 %v858, 1.0
    %v860 = vrcp.pop %v859
    %v861 = vmul.f32 1.0, %v860
    %v862 = vtanh.pop %v855
    %v863 = vmul.f32 %v861, %v490
    %865 = vrot.lane.b32.xlu0 %v862, 64
    %v866 = vpop.permute.xlu0 %865
    %v868 = vmul.f32 %v861, %v866
    %870 = vrot.lane.b32.xlu0 %v868, 32
    %v871 = vpop.permute.xlu0 %870
    %v873 = vadd.f32 %v863, %v871
    %v874 = vtanh.pop %v873
    %876 = vrot.lane.b32.xlu0 %v874, 64
    %v877 = vpop.permute.xlu0 %876
    %v879 = vmul.f32 %v861, %v877
    %v882 = vunpack.c.l.s4 1966171168
    %v883 = vunpack.c.0.s8 %v882
    %v884 = vlaneseq
    %v885 = vshrl.u32 %v884, 7
    %v886 = vsub.s32 %v883, %v885
    %v887 = vrot.slane %v879, %v886
    %v888 = vcombine.high %v887, %v887
    %v890 = vunpack.c.l.s4 1966171168
    %v891 = vunpack.c.0.s8 %v890
    %v892 = vlaneseq
    %v893 = vshrl.u32 %v892, 7
    %v894 = vsub.s32 %v891, %v893
    %v895 = vrot.slane %v887, %v894
    %v897 = vunpack.c.l.s4 1966171168
    %v898 = vunpack.c.0.s8 %v897
    %v899 = vlaneseq
    %v900 = vshrl.u32 %v899, 7
    %v901 = vsub.s32 %v898, %v900
    %v902 = vrot.slane %v888, %v901
    %v903 = vlaneseq
    %v904 = vshrl.u32 %v903, 7
    %v905 = vsub.s32 0, %v904
    %v906 = vrot.slane %v895, %v905
    %v907 = vlaneseq
    %v908 = vshrl.u32 %v907, 7
    %v909 = vsub.s32 0, %v908
    %v910 = vrot.slane %v902, %v909
    %911 = vrot.lane.b32.xlu0 %v906, 32
    %v912 = vpop.permute.xlu0 %911
    %913 = vrot.lane.b32.xlu0 %v910, 32
    %v914 = vpop.permute.xlu0 %913
    %917 = vst.msk [vmem:[#allocation2 + $0x1] sm:$0x1] %vm534, %v912
    %918 = vst.msk [vmem:[#allocation2 + $0x9] sm:$0x1] %vm534, %v914
    %919 = vmatprep.subr.mxu0 0.0
    %920 = vmatpush1.msra.mxu0 %v125
    %921 = vmatprep.subr.mxu0 0.0
    %922 = vmatpush1.msra.mxu0 %v126
    %923 = vmatprep.subr.mxu0 0.0
    %924 = vmatpush1.msra.mxu0 %v127
    %925 = vmatprep.subr.mxu0 0.0
    %926 = vmatpush1.msra.mxu0 %v128
    %927 = vmatprep.subr.mxu0 0.0
    %928 = vmatpush1.msra.mxu0 0.0
    %929 = vmatprep.subr.mxu0 0.0
    %930 = vmatpush1.msra.mxu0 0.0
    %931 = vmatprep.subr.mxu0 0.0
    %932 = vmatpush1.msra.mxu0 0.0
    %933 = vmatprep.subr.mxu0 0.0
    %934 = vmatpush1.msra.mxu0 0.0
    %935 = vmatprep.subr.mxu0 0.0
    %936 = vmatpush1.msra.mxu0 0.0
    %937 = vmatprep.subr.mxu0 0.0
    %938 = vmatpush1.msra.mxu0 0.0
    %939 = vmatprep.subr.mxu0 0.0
    %940 = vmatpush1.msra.mxu0 0.0
    %941 = vmatprep.subr.mxu0 0.0
    %942 = vmatpush1.msra.mxu0 0.0
    %943 = vmatprep.subr.mxu0 0.0
    %944 = vmatpush1.msra.mxu0 0.0
    %945 = vmatprep.subr.mxu0 0.0
    %946 = vmatpush1.msra.mxu0 0.0
    %947 = vmatprep.subr.mxu0 0.0
    %948 = vmatpush1.msra.mxu0 0.0
    %949 = vmatprep.subr.mxu0 0.0
    %950 = vmatpush1.msra.mxu0 0.0
    %951 = vmatprep.subr.mxu0 0.0
    %952 = vmatpush1.msra.mxu0 0.0
    %953 = vmatprep.subr.mxu0 0.0
    %954 = vmatpush1.msra.mxu0 0.0
    %955 = vmatprep.subr.mxu0 0.0
    %956 = vmatpush1.msra.mxu0 0.0
    %957 = vmatprep.subr.mxu0 0.0
    %958 = vmatpush1.msra.mxu0 0.0
    %959 = vmatprep.subr.mxu0 0.0
    %960 = vmatpush1.msra.mxu0 0.0
    %961 = vmatprep.subr.mxu0 0.0
    %962 = vmatpush1.msra.mxu0 0.0
    %963 = vmatprep.subr.mxu0 0.0
    %964 = vmatpush1.msra.mxu0 0.0
    %965 = vmatprep.subr.mxu0 0.0
    %966 = vmatpush1.msra.mxu0 0.0
    %967 = vmatprep.subr.mxu0 0.0
    %968 = vmatpush1.msra.mxu0 0.0
    %969 = vmatprep.subr.mxu0 0.0
    %970 = vmatpush1.msra.mxu0 0.0
    %971 = vmatprep.subr.mxu0 0.0
    %972 = vmatpush1.msra.mxu0 0.0
    %973 = vmatprep.subr.mxu0 0.0
    %974 = vmatpush1.msra.mxu0 0.0
    %975 = vmatprep.subr.mxu0 0.0
    %976 = vmatpush1.msra.mxu0 0.0
    %977 = vmatprep.subr.mxu0 0.0
    %978 = vmatpush1.msra.mxu0 0.0
    %979 = vmatprep.subr.mxu0 0.0
    %980 = vmatpush1.msra.mxu0 0.0
    %981 = vmatprep.subr.mxu0 0.0
    %982 = vmatpush1.msra.mxu0 0.0
    %983 = vmatprep.mubr.f32.mxu0 0.0
    %984 = vmatmul.mubr.f32.gmra.mrb[0].mxu0 %v783
    %v985 = vpop.f32.mrb[0].mxu0
    %v986 = vadd.f32 0.0, %v985
    %v987 = vpop.f32.mrb[0].mxu0
    %988 = vdwg.mxu0
    %v989 = vrot.slane %v118, 2
    %v990 = vrot.slane %v119, 1
    %v991 = vsel %vm228, %v990, %v989
    %v992 = vsel %vm120, %v991, 0
    %994 = vmatprep.subr.mxu0 0.0
    %995 = vmatpush1.msra.mxu0 %v123
    %996 = vmatprep.subr.mxu0 0.0
    %997 = vmatpush1.msra.mxu0 %v124
    %998 = vmatprep.subr.mxu0 0.0
    %999 = vmatpush1.msra.mxu0 0.0
    %1000 = vmatprep.subr.mxu0 0.0
    %1001 = vmatpush1.msra.mxu0 0.0
    %1002 = vmatprep.subr.mxu0 0.0
    %1003 = vmatpush1.msra.mxu0 0.0
    %1004 = vmatprep.subr.mxu0 0.0
    %1005 = vmatpush1.msra.mxu0 0.0
    %1006 = vmatprep.subr.mxu0 0.0
    %1007 = vmatpush1.msra.mxu0 0.0
    %1008 = vmatprep.subr.mxu0 0.0
    %1009 = vmatpush1.msra.mxu0 0.0
    %1010 = vmatprep.subr.mxu0 0.0
    %1011 = vmatpush1.msra.mxu0 0.0
    %1012 = vmatprep.subr.mxu0 0.0
    %1013 = vmatpush1.msra.mxu0 0.0
    %1014 = vmatprep.subr.mxu0 0.0
    %1015 = vmatpush1.msra.mxu0 0.0
    %1016 = vmatprep.subr.mxu0 0.0
    %1017 = vmatpush1.msra.mxu0 0.0
    %1018 = vmatprep.subr.mxu0 0.0
    %1019 = vmatpush1.msra.mxu0 0.0
    %1020 = vmatprep.subr.mxu0 0.0
    %1021 = vmatpush1.msra.mxu0 0.0
    %1022 = vmatprep.subr.mxu0 0.0
    %1023 = vmatpush1.msra.mxu0 0.0
    %1024 = vmatprep.subr.mxu0 0.0
    %1025 = vmatpush1.msra.mxu0 0.0
    %1026 = vmatprep.subr.mxu0 0.0
    %1027 = vmatpush1.msra.mxu0 0.0
    %1028 = vmatprep.subr.mxu0 0.0
    %1029 = vmatpush1.msra.mxu0 0.0
    %1030 = vmatprep.subr.mxu0 0.0
    %1031 = vmatpush1.msra.mxu0 0.0
    %1032 = vmatprep.subr.mxu0 0.0
    %1033 = vmatpush1.msra.mxu0 0.0
    %1034 = vmatprep.subr.mxu0 0.0
    %1035 = vmatpush1.msra.mxu0 0.0
    %1036 = vmatprep.subr.mxu0 0.0
    %1037 = vmatpush1.msra.mxu0 0.0
    %1038 = vmatprep.subr.mxu0 0.0
    %1039 = vmatpush1.msra.mxu0 0.0
    %1040 = vmatprep.subr.mxu0 0.0
    %1041 = vmatpush1.msra.mxu0 0.0
    %1042 = vmatprep.subr.mxu0 0.0
    %1043 = vmatpush1.msra.mxu0 0.0
    %1044 = vmatprep.subr.mxu0 0.0
    %1045 = vmatpush1.msra.mxu0 0.0
    %1046 = vmatprep.subr.mxu0 0.0
    %1047 = vmatpush1.msra.mxu0 0.0
    %1048 = vmatprep.subr.mxu0 0.0
    %1049 = vmatpush1.msra.mxu0 0.0
    %1050 = vmatprep.subr.mxu0 0.0
    %1051 = vmatpush1.msra.mxu0 0.0
    %1052 = vmatprep.subr.mxu0 0.0
    %1053 = vmatpush1.msra.mxu0 0.0
    %1054 = vmatprep.subr.mxu0 0.0
    %1055 = vmatpush1.msra.mxu0 0.0
    %1056 = vmatprep.subr.mxu0 0.0
    %1057 = vmatpush1.msra.mxu0 0.0
    %1058 = vmatprep.mubr.f32.mxu0 0.0
    %1059 = vmatmul.mubr.f32.gmra.mrb[0].mxu0 %v992
    %v1060 = vpop.f32.mrb[0].mxu0
    %v1061 = vadd.f32 %v986, %v1060
    %v1062 = vpop.f32.mrb[0].mxu0
    %1063 = vdwg.mxu0
    %v1064 = vadd.f32 %v1061, %v134
    %v1065 = vxor.u32 %v1064, 2147483648
    %v1066 = vmul.f32 %v1065, 1.442695
    %v1067 = vpow.pop %v1066
    %v1068 = vadd.f32 %v1067, 1.0
    %v1069 = vrcp.pop %v1068
    %v1070 = vmul.f32 1.0, %v1069
    %v1071 = vtanh.pop %v1064
    %v1072 = vmul.f32 %v1070, %v699
    %1074 = vrot.lane.b32.xlu0 %v1071, 64
    %v1075 = vpop.permute.xlu0 %1074
    %v1077 = vmul.f32 %v1070, %v1075
    %1079 = vrot.lane.b32.xlu0 %v1077, 32
    %v1080 = vpop.permute.xlu0 %1079
    %v1082 = vadd.f32 %v1072, %v1080
    %v1083 = vtanh.pop %v1082
    %1085 = vrot.lane.b32.xlu0 %v1083, 64
    %v1086 = vpop.permute.xlu0 %1085
    %v1088 = vmul.f32 %v1070, %v1086
    %1089 = vrot.lane.b32.xlu0 %v879, 32
    %v1090 = vpop.permute.xlu0 %1089
    %v1091 = vsel %vm151, %v1090, 0
    %1093 = vmatprep.subr.mxu0 0.0
    %1094 = vmatpush1.msra.mxu0 %v140
    %1095 = vmatprep.subr.mxu0 0.0
    %1096 = vmatpush1.msra.mxu0 %v141
    %1097 = vmatprep.subr.mxu0 0.0
    %1098 = vmatpush1.msra.mxu0 %v142
    %1099 = vmatprep.subr.mxu0 0.0
    %1100 = vmatpush1.msra.mxu0 %v143
    %1101 = vmatprep.subr.mxu0 0.0
    %1102 = vmatpush1.msra.mxu0 0.0
    %1103 = vmatprep.subr.mxu0 0.0
    %1104 = vmatpush1.msra.mxu0 0.0
    %1105 = vmatprep.subr.mxu0 0.0
    %1106 = vmatpush1.msra.mxu0 0.0
    %1107 = vmatprep.subr.mxu0 0.0
    %1108 = vmatpush1.msra.mxu0 0.0
    %1109 = vmatprep.subr.mxu0 0.0
    %1110 = vmatpush1.msra.mxu0 0.0
    %1111 = vmatprep.subr.mxu0 0.0
    %1112 = vmatpush1.msra.mxu0 0.0
    %1113 = vmatprep.subr.mxu0 0.0
    %1114 = vmatpush1.msra.mxu0 0.0
    %1115 = vmatprep.subr.mxu0 0.0
    %1116 = vmatpush1.msra.mxu0 0.0
    %1117 = vmatprep.subr.mxu0 0.0
    %1118 = vmatpush1.msra.mxu0 0.0
    %1119 = vmatprep.subr.mxu0 0.0
    %1120 = vmatpush1.msra.mxu0 0.0
    %1121 = vmatprep.subr.mxu0 0.0
    %1122 = vmatpush1.msra.mxu0 0.0
    %1123 = vmatprep.subr.mxu0 0.0
    %1124 = vmatpush1.msra.mxu0 0.0
    %1125 = vmatprep.subr.mxu0 0.0
    %1126 = vmatpush1.msra.mxu0 0.0
    %1127 = vmatprep.subr.mxu0 0.0
    %1128 = vmatpush1.msra.mxu0 0.0
    %1129 = vmatprep.subr.mxu0 0.0
    %1130 = vmatpush1.msra.mxu0 0.0
    %1131 = vmatprep.subr.mxu0 0.0
    %1132 = vmatpush1.msra.mxu0 0.0
    %1133 = vmatprep.subr.mxu0 0.0
    %1134 = vmatpush1.msra.mxu0 0.0
    %1135 = vmatprep.subr.mxu0 0.0
    %1136 = vmatpush1.msra.mxu0 0.0
    %1137 = vmatprep.subr.mxu0 0.0
    %1138 = vmatpush1.msra.mxu0 0.0
    %1139 = vmatprep.subr.mxu0 0.0
    %1140 = vmatpush1.msra.mxu0 0.0
    %1141 = vmatprep.subr.mxu0 0.0
    %1142 = vmatpush1.msra.mxu0 0.0
    %1143 = vmatprep.subr.mxu0 0.0
    %1144 = vmatpush1.msra.mxu0 0.0
    %1145 = vmatprep.subr.mxu0 0.0
    %1146 = vmatpush1.msra.mxu0 0.0
    %1147 = vmatprep.subr.mxu0 0.0
    %1148 = vmatpush1.msra.mxu0 0.0
    %1149 = vmatprep.subr.mxu0 0.0
    %1150 = vmatpush1.msra.mxu0 0.0
    %1151 = vmatprep.subr.mxu0 0.0
    %1152 = vmatpush1.msra.mxu0 0.0
    %1153 = vmatprep.subr.mxu0 0.0
    %1154 = vmatpush1.msra.mxu0 0.0
    %1155 = vmatprep.subr.mxu0 0.0
    %1156 = vmatpush1.msra.mxu0 0.0
    %1157 = vmatprep.mubr.f32.mxu0 0.0
    %1158 = vmatmul.mubr.f32.gmra.mrb[0].mxu0 %v1091
    %v1159 = vpop.f32.mrb[0].mxu0
    %v1160 = vadd.f32 0.0, %v1159
    %v1161 = vpop.f32.mrb[0].mxu0
    %1162 = vdwg.mxu0
    %1164 = vrot.lane.b32.xlu0 %v1088, 32
    %v1165 = vpop.permute.xlu0 %1164
    %v1166 = vsel %vm151, %v1165, 0
    %1168 = vmatprep.subr.mxu0 0.0
    %1169 = vmatpush1.msra.mxu0 %v136
    %1170 = vmatprep.subr.mxu0 0.0
    %1171 = vmatpush1.msra.mxu0 %v137
    %1172 = vmatprep.subr.mxu0 0.0
    %1173 = vmatpush1.msra.mxu0 %v138
    %1174 = vmatprep.subr.mxu0 0.0
    %1175 = vmatpush1.msra.mxu0 %v139
    %1176 = vmatprep.subr.mxu0 0.0
    %1177 = vmatpush1.msra.mxu0 0.0
    %1178 = vmatprep.subr.mxu0 0.0
    %1179 = vmatpush1.msra.mxu0 0.0
    %1180 = vmatprep.subr.mxu0 0.0
    %1181 = vmatpush1.msra.mxu0 0.0
    %1182 = vmatprep.subr.mxu0 0.0
    %1183 = vmatpush1.msra.mxu0 0.0
    %1184 = vmatprep.subr.mxu0 0.0
    %1185 = vmatpush1.msra.mxu0 0.0
    %1186 = vmatprep.subr.mxu0 0.0
    %1187 = vmatpush1.msra.mxu0 0.0
    %1188 = vmatprep.subr.mxu0 0.0
    %1189 = vmatpush1.msra.mxu0 0.0
    %1190 = vmatprep.subr.mxu0 0.0
    %1191 = vmatpush1.msra.mxu0 0.0
    %1192 = vmatprep.subr.mxu0 0.0
    %1193 = vmatpush1.msra.mxu0 0.0
    %1194 = vmatprep.subr.mxu0 0.0
    %1195 = vmatpush1.msra.mxu0 0.0
    %1196 = vmatprep.subr.mxu0 0.0
    %1197 = vmatpush1.msra.mxu0 0.0
    %1198 = vmatprep.subr.mxu0 0.0
    %1199 = vmatpush1.msra.mxu0 0.0
    %1200 = vmatprep.subr.mxu0 0.0
    %1201 = vmatpush1.msra.mxu0 0.0
    %1202 = vmatprep.subr.mxu0 0.0
    %1203 = vmatpush1.msra.mxu0 0.0
    %1204 = vmatprep.subr.mxu0 0.0
    %1205 = vmatpush1.msra.mxu0 0.0
    %1206 = vmatprep.subr.mxu0 0.0
    %1207 = vmatpush1.msra.mxu0 0.0
    %1208 = vmatprep.subr.mxu0 0.0
    %1209 = vmatpush1.msra.mxu0 0.0
    %1210 = vmatprep.subr.mxu0 0.0
    %1211 = vmatpush1.msra.mxu0 0.0
    %1212 = vmatprep.subr.mxu0 0.0
    %1213 = vmatpush1.msra.mxu0 0.0
    %1214 = vmatprep.subr.mxu0 0.0
    %1215 = vmatpush1.msra.mxu0 0.0
    %1216 = vmatprep.subr.mxu0 0.0
    %1217 = vmatpush1.msra.mxu0 0.0
    %1218 = vmatprep.subr.mxu0 0.0
    %1219 = vmatpush1.msra.mxu0 0.0
    %1220 = vmatprep.subr.mxu0 0.0
    %1221 = vmatpush1.msra.mxu0 0.0
    %1222 = vmatprep.subr.mxu0 0.0
    %1223 = vmatpush1.msra.mxu0 0.0
    %1224 = vmatprep.subr.mxu0 0.0
    %1225 = vmatpush1.msra.mxu0 0.0
    %1226 = vmatprep.subr.mxu0 0.0
    %1227 = vmatpush1.msra.mxu0 0.0
    %1228 = vmatprep.subr.mxu0 0.0
    %1229 = vmatpush1.msra.mxu0 0.0
    %1230 = vmatprep.subr.mxu0 0.0
    %1231 = vmatpush1.msra.mxu0 0.0
    %1232 = vmatprep.mubr.f32.mxu0 0.0
    %1233 = vmatmul.mubr.f32.gmra.mrb[0].mxu0 %v1166
    %v1234 = vpop.f32.mrb[0].mxu0
    %v1235 = vadd.f32 %v1160, %v1234
    %v1236 = vpop.f32.mrb[0].mxu0
    %1237 = vdwg.mxu0
    %v1238 = vadd.f32 %v1235, %v149
    %v1239 = vxor.u32 %v1238, 2147483648
    %v1240 = vmul.f32 %v1239, 1.442695
    %v1241 = vpow.pop %v1240
    %v1242 = vadd.f32 %v1241, 1.0
    %v1243 = vrcp.pop %v1242
    %v1244 = vmul.f32 1.0, %v1243
    %v1245 = vtanh.pop %v1238
    %v1246 = vmul.f32 %v1244, %v873
    %1248 = vrot.lane.b32.xlu0 %v1245, 64
    %v1249 = vpop.permute.xlu0 %1248
    %v1251 = vmul.f32 %v1244, %v1249
    %1253 = vrot.lane.b32.xlu0 %v1251, 32
    %v1254 = vpop.permute.xlu0 %1253
    %v1256 = vadd.f32 %v1246, %v1254
    %v1257 = vtanh.pop %v1256
    %1259 = vrot.lane.b32.xlu0 %v1257, 64
    %v1260 = vpop.permute.xlu0 %1259
    %v1262 = vmul.f32 %v1244, %v1260
    %v1265 = vunpack.c.l.s4 1966171168
    %v1266 = vunpack.c.0.s8 %v1265
    %v1267 = vlaneseq
    %v1268 = vshrl.u32 %v1267, 7
    %v1269 = vsub.s32 %v1266, %v1268
    %v1270 = vrot.slane %v1262, %v1269
    %v1271 = vcombine.high %v1270, %v1270
    %v1273 = vunpack.c.l.s4 1966171168
    %v1274 = vunpack.c.0.s8 %v1273
    %v1275 = vlaneseq
    %v1276 = vshrl.u32 %v1275, 7
    %v1277 = vsub.s32 %v1274, %v1276
    %v1278 = vrot.slane %v1270, %v1277
    %v1280 = vunpack.c.l.s4 1966171168
    %v1281 = vunpack.c.0.s8 %v1280
    %v1282 = vlaneseq
    %v1283 = vshrl.u32 %v1282, 7
    %v1284 = vsub.s32 %v1281, %v1283
    %v1285 = vrot.slane %v1271, %v1284
    %v1286 = vlaneseq
    %v1287 = vshrl.u32 %v1286, 7
    %v1288 = vsub.s32 0, %v1287
    %v1289 = vrot.slane %v1278, %v1288
    %v1290 = vlaneseq
    %v1291 = vshrl.u32 %v1290, 7
    %v1292 = vsub.s32 0, %v1291
    %v1293 = vrot.slane %v1285, %v1292
    %1294 = vrot.lane.b32.xlu0 %v1289, 32
    %v1295 = vpop.permute.xlu0 %1294
    %1296 = vrot.lane.b32.xlu0 %v1293, 32
    %v1297 = vpop.permute.xlu0 %1296
    %1300 = vst.msk [vmem:[#allocation2 + $0x2] sm:$0x1] %vm534, %v1295
    %1301 = vst.msk [vmem:[#allocation2 + $0xa] sm:$0x1] %vm534, %v1297
    %1302 = vmatprep.subr.mxu0 0.0
    %1303 = vmatpush1.msra.mxu0 %v125
    %1304 = vmatprep.subr.mxu0 0.0
    %1305 = vmatpush1.msra.mxu0 %v126
    %1306 = vmatprep.subr.mxu0 0.0
    %1307 = vmatpush1.msra.mxu0 %v127
    %1308 = vmatprep.subr.mxu0 0.0
    %1309 = vmatpush1.msra.mxu0 %v128
    %1310 = vmatprep.subr.mxu0 0.0
    %1311 = vmatpush1.msra.mxu0 0.0
    %1312 = vmatprep.subr.mxu0 0.0
    %1313 = vmatpush1.msra.mxu0 0.0
    %1314 = vmatprep.subr.mxu0 0.0
    %1315 = vmatpush1.msra.mxu0 0.0
    %1316 = vmatprep.subr.mxu0 0.0
    %1317 = vmatpush1.msra.mxu0 0.0
    %1318 = vmatprep.subr.mxu0 0.0
    %1319 = vmatpush1.msra.mxu0 0.0
    %1320 = vmatprep.subr.mxu0 0.0
    %1321 = vmatpush1.msra.mxu0 0.0
    %1322 = vmatprep.subr.mxu0 0.0
    %1323 = vmatpush1.msra.mxu0 0.0
    %1324 = vmatprep.subr.mxu0 0.0
    %1325 = vmatpush1.msra.mxu0 0.0
    %1326 = vmatprep.subr.mxu0 0.0
    %1327 = vmatpush1.msra.mxu0 0.0
    %1328 = vmatprep.subr.mxu0 0.0
    %1329 = vmatpush1.msra.mxu0 0.0
    %1330 = vmatprep.subr.mxu0 0.0
    %1331 = vmatpush1.msra.mxu0 0.0
    %1332 = vmatprep.subr.mxu0 0.0
    %1333 = vmatpush1.msra.mxu0 0.0
    %1334 = vmatprep.subr.mxu0 0.0
    %1335 = vmatpush1.msra.mxu0 0.0
    %1336 = vmatprep.subr.mxu0 0.0
    %1337 = vmatpush1.msra.mxu0 0.0
    %1338 = vmatprep.subr.mxu0 0.0
    %1339 = vmatpush1.msra.mxu0 0.0
    %1340 = vmatprep.subr.mxu0 0.0
    %1341 = vmatpush1.msra.mxu0 0.0
    %1342 = vmatprep.subr.mxu0 0.0
    %1343 = vmatpush1.msra.mxu0 0.0
    %1344 = vmatprep.subr.mxu0 0.0
    %1345 = vmatpush1.msra.mxu0 0.0
    %1346 = vmatprep.subr.mxu0 0.0
    %1347 = vmatpush1.msra.mxu0 0.0
    %1348 = vmatprep.subr.mxu0 0.0
    %1349 = vmatpush1.msra.mxu0 0.0
    %1350 = vmatprep.subr.mxu0 0.0
    %1351 = vmatpush1.msra.mxu0 0.0
    %1352 = vmatprep.subr.mxu0 0.0
    %1353 = vmatpush1.msra.mxu0 0.0
    %1354 = vmatprep.subr.mxu0 0.0
    %1355 = vmatpush1.msra.mxu0 0.0
    %1356 = vmatprep.subr.mxu0 0.0
    %1357 = vmatpush1.msra.mxu0 0.0
    %1358 = vmatprep.subr.mxu0 0.0
    %1359 = vmatpush1.msra.mxu0 0.0
    %1360 = vmatprep.subr.mxu0 0.0
    %1361 = vmatpush1.msra.mxu0 0.0
    %1362 = vmatprep.subr.mxu0 0.0
    %1363 = vmatpush1.msra.mxu0 0.0
    %1364 = vmatprep.subr.mxu0 0.0
    %1365 = vmatpush1.msra.mxu0 0.0
    %1366 = vmatprep.mubr.f32.mxu0 0.0
    %1367 = vmatmul.mubr.f32.gmra.mrb[0].mxu0 %v1166
    %v1368 = vpop.f32.mrb[0].mxu0
    %v1369 = vadd.f32 0.0, %v1368
    %v1370 = vpop.f32.mrb[0].mxu0
    %1371 = vdwg.mxu0
    %v1372 = vrot.slane %v118, 3
    %v1373 = vrot.slane %v119, 2
    %v1374 = vsel %vm228, %v1373, %v1372
    %v1375 = vsel %vm120, %v1374, 0
    %1377 = vmatprep.subr.mxu0 0.0
    %1378 = vmatpush1.msra.mxu0 %v123
    %1379 = vmatprep.subr.mxu0 0.0
    %1380 = vmatpush1.msra.mxu0 %v124
    %1381 = vmatprep.subr.mxu0 0.0
    %1382 = vmatpush1.msra.mxu0 0.0
    %1383 = vmatprep.subr.mxu0 0.0
    %1384 = vmatpush1.msra.mxu0 0.0
    %1385 = vmatprep.subr.mxu0 0.0
    %1386 = vmatpush1.msra.mxu0 0.0
    %1387 = vmatprep.subr.mxu0 0.0
    %1388 = vmatpush1.msra.mxu0 0.0
    %1389 = vmatprep.subr.mxu0 0.0
    %1390 = vmatpush1.msra.mxu0 0.0
    %1391 = vmatprep.subr.mxu0 0.0
    %1392 = vmatpush1.msra.mxu0 0.0
    %1393 = vmatprep.subr.mxu0 0.0
    %1394 = vmatpush1.msra.mxu0 0.0
    %1395 = vmatprep.subr.mxu0 0.0
    %1396 = vmatpush1.msra.mxu0 0.0
    %1397 = vmatprep.subr.mxu0 0.0
    %1398 = vmatpush1.msra.mxu0 0.0
    %1399 = vmatprep.subr.mxu0 0.0
    %1400 = vmatpush1.msra.mxu0 0.0
    %1401 = vmatprep.subr.mxu0 0.0
    %1402 = vmatpush1.msra.mxu0 0.0
    %1403 = vmatprep.subr.mxu0 0.0
    %1404 = vmatpush1.msra.mxu0 0.0
    %1405 = vmatprep.subr.mxu0 0.0
    %1406 = vmatpush1.msra.mxu0 0.0
    %1407 = vmatprep.subr.mxu0 0.0
    %1408 = vmatpush1.msra.mxu0 0.0
    %1409 = vmatprep.subr.mxu0 0.0
    %1410 = vmatpush1.msra.mxu0 0.0
    %1411 = vmatprep.subr.mxu0 0.0
    %1412 = vmatpush1.msra.mxu0 0.0
    %1413 = vmatprep.subr.mxu0 0.0
    %1414 = vmatpush1.msra.mxu0 0.0
    %1415 = vmatprep.subr.mxu0 0.0
    %1416 = vmatpush1.msra.mxu0 0.0
    %1417 = vmatprep.subr.mxu0 0.0
    %1418 = vmatpush1.msra.mxu0 0.0
    %1419 = vmatprep.subr.mxu0 0.0
    %1420 = vmatpush1.msra.mxu0 0.0
    %1421 = vmatprep.subr.mxu0 0.0
    %1422 = vmatpush1.msra.mxu0 0.0
    %1423 = vmatprep.subr.mxu0 0.0
    %1424 = vmatpush1.msra.mxu0 0.0
    %1425 = vmatprep.subr.mxu0 0.0
    %1426 = vmatpush1.msra.mxu0 0.0
    %1427 = vmatprep.subr.mxu0 0.0
    %1428 = vmatpush1.msra.mxu0 0.0
    %1429 = vmatprep.subr.mxu0 0.0
    %1430 = vmatpush1.msra.mxu0 0.0
    %1431 = vmatprep.subr.mxu0 0.0
    %1432 = vmatpush1.msra.mxu0 0.0
    %1433 = vmatprep.subr.mxu0 0.0
    %1434 = vmatpush1.msra.mxu0 0.0
    %1435 = vmatprep.subr.mxu0 0.0
    %1436 = vmatpush1.msra.mxu0 0.0
    %1437 = vmatprep.subr.mxu0 0.0
    %1438 = vmatpush1.msra.mxu0 0.0
    %1439 = vmatprep.subr.mxu0 0.0
    %1440 = vmatpush1.msra.mxu0 0.0
    %1441 = vmatprep.mubr.f32.mxu0 0.0
    %1442 = vmatmul.mubr.f32.gmra.mrb[0].mxu0 %v1375
    %v1443 = vpop.f32.mrb[0].mxu0
    %v1444 = vadd.f32 %v1369, %v1443
    %v1445 = vpop.f32.mrb[0].mxu0
    %1446 = vdwg.mxu0
    %v1447 = vadd.f32 %v1444, %v134
    %v1448 = vxor.u32 %v1447, 2147483648
    %v1449 = vmul.f32 %v1448, 1.442695
    %v1450 = vpow.pop %v1449
    %v1451 = vadd.f32 %v1450, 1.0
    %v1452 = vrcp.pop %v1451
    %v1453 = vmul.f32 1.0, %v1452
    %v1454 = vtanh.pop %v1447
    %v1455 = vmul.f32 %v1453, %v1082
    %1457 = vrot.lane.b32.xlu0 %v1454, 64
    %v1458 = vpop.permute.xlu0 %1457
    %v1460 = vmul.f32 %v1453, %v1458
    %1462 = vrot.lane.b32.xlu0 %v1460, 32
    %v1463 = vpop.permute.xlu0 %1462
    %v1465 = vadd.f32 %v1455, %v1463
    %v1466 = vtanh.pop %v1465
    %1468 = vrot.lane.b32.xlu0 %v1466, 64
    %v1469 = vpop.permute.xlu0 %1468
    %v1471 = vmul.f32 %v1453, %v1469
    %1472 = vrot.lane.b32.xlu0 %v1262, 32
    %v1473 = vpop.permute.xlu0 %1472
    %v1474 = vsel %vm151, %v1473, 0
    %1476 = vmatprep.subr.mxu0 0.0
    %1477 = vmatpush1.msra.mxu0 %v140
    %1478 = vmatprep.subr.mxu0 0.0
    %1479 = vmatpush1.msra.mxu0 %v141
    %1480 = vmatprep.subr.mxu0 0.0
    %1481 = vmatpush1.msra.mxu0 %v142
    %1482 = vmatprep.subr.mxu0 0.0
    %1483 = vmatpush1.msra.mxu0 %v143
    %1484 = vmatprep.subr.mxu0 0.0
    %1485 = vmatpush1.msra.mxu0 0.0
    %1486 = vmatprep.subr.mxu0 0.0
    %1487 = vmatpush1.msra.mxu0 0.0
    %1488 = vmatprep.subr.mxu0 0.0
    %1489 = vmatpush1.msra.mxu0 0.0
    %1490 = vmatprep.subr.mxu0 0.0
    %1491 = vmatpush1.msra.mxu0 0.0
    %1492 = vmatprep.subr.mxu0 0.0
    %1493 = vmatpush1.msra.mxu0 0.0
    %1494 = vmatprep.subr.mxu0 0.0
    %1495 = vmatpush1.msra.mxu0 0.0
    %1496 = vmatprep.subr.mxu0 0.0
    %1497 = vmatpush1.msra.mxu0 0.0
    %1498 = vmatprep.subr.mxu0 0.0
    %1499 = vmatpush1.msra.mxu0 0.0
    %1500 = vmatprep.subr.mxu0 0.0
    %1501 = vmatpush1.msra.mxu0 0.0
    %1502 = vmatprep.subr.mxu0 0.0
    %1503 = vmatpush1.msra.mxu0 0.0
    %1504 = vmatprep.subr.mxu0 0.0
    %1505 = vmatpush1.msra.mxu0 0.0
    %1506 = vmatprep.subr.mxu0 0.0
    %1507 = vmatpush1.msra.mxu0 0.0
    %1508 = vmatprep.subr.mxu0 0.0
    %1509 = vmatpush1.msra.mxu0 0.0
    %1510 = vmatprep.subr.mxu0 0.0
    %1511 = vmatpush1.msra.mxu0 0.0
    %1512 = vmatprep.subr.mxu0 0.0
    %1513 = vmatpush1.msra.mxu0 0.0
    %1514 = vmatprep.subr.mxu0 0.0
    %1515 = vmatpush1.msra.mxu0 0.0
    %1516 = vmatprep.subr.mxu0 0.0
    %1517 = vmatpush1.msra.mxu0 0.0
    %1518 = vmatprep.subr.mxu0 0.0
    %1519 = vmatpush1.msra.mxu0 0.0
    %1520 = vmatprep.subr.mxu0 0.0
    %1521 = vmatpush1.msra.mxu0 0.0
    %1522 = vmatprep.subr.mxu0 0.0
    %1523 = vmatpush1.msra.mxu0 0.0
    %1524 = vmatprep.subr.mxu0 0.0
    %1525 = vmatpush1.msra.mxu0 0.0
    %1526 = vmatprep.subr.mxu0 0.0
    %1527 = vmatpush1.msra.mxu0 0.0
    %1528 = vmatprep.subr.mxu0 0.0
    %1529 = vmatpush1.msra.mxu0 0.0
    %1530 = vmatprep.subr.mxu0 0.0
    %1531 = vmatpush1.msra.mxu0 0.0
    %1532 = vmatprep.subr.mxu0 0.0
    %1533 = vmatpush1.msra.mxu0 0.0
    %1534 = vmatprep.subr.mxu0 0.0
    %1535 = vmatpush1.msra.mxu0 0.0
    %1536 = vmatprep.subr.mxu0 0.0
    %1537 = vmatpush1.msra.mxu0 0.0
    %1538 = vmatprep.subr.mxu0 0.0
    %1539 = vmatpush1.msra.mxu0 0.0
    %1540 = vmatprep.mubr.f32.mxu0 0.0
    %1541 = vmatmul.mubr.f32.gmra.mrb[0].mxu0 %v1474
    %v1542 = vpop.f32.mrb[0].mxu0
    %v1543 = vadd.f32 0.0, %v1542
    %v1544 = vpop.f32.mrb[0].mxu0
    %1545 = vdwg.mxu0
    %1547 = vrot.lane.b32.xlu0 %v1471, 32
    %v1548 = vpop.permute.xlu0 %1547
    %v1549 = vsel %vm151, %v1548, 0
    %1551 = vmatprep.subr.mxu0 0.0
    %1552 = vmatpush1.msra.mxu0 %v136
    %1553 = vmatprep.subr.mxu0 0.0
    %1554 = vmatpush1.msra.mxu0 %v137
    %1555 = vmatprep.subr.mxu0 0.0
    %1556 = vmatpush1.msra.mxu0 %v138
    %1557 = vmatprep.subr.mxu0 0.0
    %1558 = vmatpush1.msra.mxu0 %v139
    %1559 = vmatprep.subr.mxu0 0.0
    %1560 = vmatpush1.msra.mxu0 0.0
    %1561 = vmatprep.subr.mxu0 0.0
    %1562 = vmatpush1.msra.mxu0 0.0
    %1563 = vmatprep.subr.mxu0 0.0
    %1564 = vmatpush1.msra.mxu0 0.0
    %1565 = vmatprep.subr.mxu0 0.0
    %1566 = vmatpush1.msra.mxu0 0.0
    %1567 = vmatprep.subr.mxu0 0.0
    %1568 = vmatpush1.msra.mxu0 0.0
    %1569 = vmatprep.subr.mxu0 0.0
    %1570 = vmatpush1.msra.mxu0 0.0
    %1571 = vmatprep.subr.mxu0 0.0
    %1572 = vmatpush1.msra.mxu0 0.0
    %1573 = vmatprep.subr.mxu0 0.0
    %1574 = vmatpush1.msra.mxu0 0.0
    %1575 = vmatprep.subr.mxu0 0.0
    %1576 = vmatpush1.msra.mxu0 0.0
    %1577 = vmatprep.subr.mxu0 0.0
    %1578 = vmatpush1.msra.mxu0 0.0
    %1579 = vmatprep.subr.mxu0 0.0
    %1580 = vmatpush1.msra.mxu0 0.0
    %1581 = vmatprep.subr.mxu0 0.0
    %1582 = vmatpush1.msra.mxu0 0.0
    %1583 = vmatprep.subr.mxu0 0.0
    %1584 = vmatpush1.msra.mxu0 0.0
    %1585 = vmatprep.subr.mxu0 0.0
    %1586 = vmatpush1.msra.mxu0 0.0
    %1587 = vmatprep.subr.mxu0 0.0
    %1588 = vmatpush1.msra.mxu0 0.0
    %1589 = vmatprep.subr.mxu0 0.0
    %1590 = vmatpush1.msra.mxu0 0.0
    %1591 = vmatprep.subr.mxu0 0.0
    %1592 = vmatpush1.msra.mxu0 0.0
    %1593 = vmatprep.subr.mxu0 0.0
    %1594 = vmatpush1.msra.mxu0 0.0
    %1595 = vmatprep.subr.mxu0 0.0
    %1596 = vmatpush1.msra.mxu0 0.0
    %1597 = vmatprep.subr.mxu0 0.0
    %1598 = vmatpush1.msra.mxu0 0.0
    %1599 = vmatprep.subr.mxu0 0.0
    %1600 = vmatpush1.msra.mxu0 0.0
    %1601 = vmatprep.subr.mxu0 0.0
    %1602 = vmatpush1.msra.mxu0 0.0
    %1603 = vmatprep.subr.mxu0 0.0
    %1604 = vmatpush1.msra.mxu0 0.0
    %1605 = vmatprep.subr.mxu0 0.0
    %1606 = vmatpush1.msra.mxu0 0.0
    %1607 = vmatprep.subr.mxu0 0.0
    %1608 = vmatpush1.msra.mxu0 0.0
    %1609 = vmatprep.subr.mxu0 0.0
    %1610 = vmatpush1.msra.mxu0 0.0
    %1611 = vmatprep.subr.mxu0 0.0
    %1612 = vmatpush1.msra.mxu0 0.0
    %1613 = vmatprep.subr.mxu0 0.0
    %1614 = vmatpush1.msra.mxu0 0.0
    %1615 = vmatprep.mubr.f32.mxu0 0.0
    %1616 = vmatmul.mubr.f32.gmra.mrb[0].mxu0 %v1549
    %v1617 = vpop.f32.mrb[0].mxu0
    %v1618 = vadd.f32 %v1543, %v1617
    %v1619 = vpop.f32.mrb[0].mxu0
    %1620 = vdwg.mxu0
    %v1621 = vadd.f32 %v1618, %v149
    %v1622 = vxor.u32 %v1621, 2147483648
    %v1623 = vmul.f32 %v1622, 1.442695
    %v1624 = vpow.pop %v1623
    %v1625 = vadd.f32 %v1624, 1.0
    %v1626 = vrcp.pop %v1625
    %v1627 = vmul.f32 1.0, %v1626
    %v1628 = vtanh.pop %v1621
    %v1629 = vmul.f32 %v1627, %v1256
    %1631 = vrot.lane.b32.xlu0 %v1628, 64
    %v1632 = vpop.permute.xlu0 %1631
    %v1634 = vmul.f32 %v1627, %v1632
    %1636 = vrot.lane.b32.xlu0 %v1634, 32
    %v1637 = vpop.permute.xlu0 %1636
    %v1639 = vadd.f32 %v1629, %v1637
    %v1640 = vtanh.pop %v1639
    %1642 = vrot.lane.b32.xlu0 %v1640, 64
    %v1643 = vpop.permute.xlu0 %1642
    %v1645 = vmul.f32 %v1627, %v1643
    %v1648 = vunpack.c.l.s4 1966171168
    %v1649 = vunpack.c.0.s8 %v1648
    %v1650 = vlaneseq
    %v1651 = vshrl.u32 %v1650, 7
    %v1652 = vsub.s32 %v1649, %v1651
    %v1653 = vrot.slane %v1645, %v1652
    %v1654 = vcombine.high %v1653, %v1653
    %v1656 = vunpack.c.l.s4 1966171168
    %v1657 = vunpack.c.0.s8 %v1656
    %v1658 = vlaneseq
    %v1659 = vshrl.u32 %v1658, 7
    %v1660 = vsub.s32 %v1657, %v1659
    %v1661 = vrot.slane %v1653, %v1660
    %v1663 = vunpack.c.l.s4 1966171168
    %v1664 = vunpack.c.0.s8 %v1663
    %v1665 = vlaneseq
    %v1666 = vshrl.u32 %v1665, 7
    %v1667 = vsub.s32 %v1664, %v1666
    %v1668 = vrot.slane %v1654, %v1667
    %v1669 = vlaneseq
    %v1670 = vshrl.u32 %v1669, 7
    %v1671 = vsub.s32 0, %v1670
    %v1672 = vrot.slane %v1661, %v1671
    %v1673 = vlaneseq
    %v1674 = vshrl.u32 %v1673, 7
    %v1675 = vsub.s32 0, %v1674
    %v1676 = vrot.slane %v1668, %v1675
    %1677 = vrot.lane.b32.xlu0 %v1672, 32
    %v1678 = vpop.permute.xlu0 %1677
    %1679 = vrot.lane.b32.xlu0 %v1676, 32
    %v1680 = vpop.permute.xlu0 %1679
    %1683 = vst.msk [vmem:[#allocation2 + $0x3] sm:$0x1] %vm534, %v1678
    %1684 = vst.msk [vmem:[#allocation2 + $0xb] sm:$0x1] %vm534, %v1680
    %1685 = vmatprep.subr.mxu0 0.0
    %1686 = vmatpush1.msra.mxu0 %v125
    %1687 = vmatprep.subr.mxu0 0.0
    %1688 = vmatpush1.msra.mxu0 %v126
    %1689 = vmatprep.subr.mxu0 0.0
    %1690 = vmatpush1.msra.mxu0 %v127
    %1691 = vmatprep.subr.mxu0 0.0
    %1692 = vmatpush1.msra.mxu0 %v128
    %1693 = vmatprep.subr.mxu0 0.0
    %1694 = vmatpush1.msra.mxu0 0.0
    %1695 = vmatprep.subr.mxu0 0.0
    %1696 = vmatpush1.msra.mxu0 0.0
    %1697 = vmatprep.subr.mxu0 0.0
    %1698 = vmatpush1.msra.mxu0 0.0
    %1699 = vmatprep.subr.mxu0 0.0
    %1700 = vmatpush1.msra.mxu0 0.0
    %1701 = vmatprep.subr.mxu0 0.0
    %1702 = vmatpush1.msra.mxu0 0.0
    %1703 = vmatprep.subr.mxu0 0.0
    %1704 = vmatpush1.msra.mxu0 0.0
    %1705 = vmatprep.subr.mxu0 0.0
    %1706 = vmatpush1.msra.mxu0 0.0
    %1707 = vmatprep.subr.mxu0 0.0
    %1708 = vmatpush1.msra.mxu0 0.0
    %1709 = vmatprep.subr.mxu0 0.0
    %1710 = vmatpush1.msra.mxu0 0.0
    %1711 = vmatprep.subr.mxu0 0.0
    %1712 = vmatpush1.msra.mxu0 0.0
    %1713 = vmatprep.subr.mxu0 0.0
    %1714 = vmatpush1.msra.mxu0 0.0
    %1715 = vmatprep.subr.mxu0 0.0
    %1716 = vmatpush1.msra.mxu0 0.0
    %1717 = vmatprep.subr.mxu0 0.0
    %1718 = vmatpush1.msra.mxu0 0.0
    %1719 = vmatprep.subr.mxu0 0.0
    %1720 = vmatpush1.msra.mxu0 0.0
    %1721 = vmatprep.subr.mxu0 0.0
    %1722 = vmatpush1.msra.mxu0 0.0
    %1723 = vmatprep.subr.mxu0 0.0
    %1724 = vmatpush1.msra.mxu0 0.0
    %1725 = vmatprep.subr.mxu0 0.0
    %1726 = vmatpush1.msra.mxu0 0.0
    %1727 = vmatprep.subr.mxu0 0.0
    %1728 = vmatpush1.msra.mxu0 0.0
    %1729 = vmatprep.subr.mxu0 0.0
    %1730 = vmatpush1.msra.mxu0 0.0
    %1731 = vmatprep.subr.mxu0 0.0
    %1732 = vmatpush1.msra.mxu0 0.0
    %1733 = vmatprep.subr.mxu0 0.0
    %1734 = vmatpush1.msra.mxu0 0.0
    %1735 = vmatprep.subr.mxu0 0.0
    %1736 = vmatpush1.msra.mxu0 0.0
    %1737 = vmatprep.subr.mxu0 0.0
    %1738 = vmatpush1.msra.mxu0 0.0
    %1739 = vmatprep.subr.mxu0 0.0
    %1740 = vmatpush1.msra.mxu0 0.0
    %1741 = vmatprep.subr.mxu0 0.0
    %1742 = vmatpush1.msra.mxu0 0.0
    %1743 = vmatprep.subr.mxu0 0.0
    %1744 = vmatpush1.msra.mxu0 0.0
    %1745 = vmatprep.subr.mxu0 0.0
    %1746 = vmatpush1.msra.mxu0 0.0
    %1747 = vmatprep.subr.mxu0 0.0
    %1748 = vmatpush1.msra.mxu0 0.0
    %1749 = vmatprep.mubr.f32.mxu0 0.0
    %1750 = vmatmul.mubr.f32.gmra.mrb[0].mxu0 %v1549
    %v1751 = vpop.f32.mrb[0].mxu0
    %v1752 = vadd.f32 0.0, %v1751
    %v1753 = vpop.f32.mrb[0].mxu0
    %1754 = vdwg.mxu0
    %v1755 = vrot.slane %v118, 4
    %v1756 = vrot.slane %v119, 3
    %v1757 = vsel %vm228, %v1756, %v1755
    %v1758 = vsel %vm120, %v1757, 0
    %1760 = vmatprep.subr.mxu0 0.0
    %1761 = vmatpush1.msra.mxu0 %v123
    %1762 = vmatprep.subr.mxu0 0.0
    %1763 = vmatpush1.msra.mxu0 %v124
    %1764 = vmatprep.subr.mxu0 0.0
    %1765 = vmatpush1.msra.mxu0 0.0
    %1766 = vmatprep.subr.mxu0 0.0
    %1767 = vmatpush1.msra.mxu0 0.0
    %1768 = vmatprep.subr.mxu0 0.0
    %1769 = vmatpush1.msra.mxu0 0.0
    %1770 = vmatprep.subr.mxu0 0.0
    %1771 = vmatpush1.msra.mxu0 0.0
    %1772 = vmatprep.subr.mxu0 0.0
    %1773 = vmatpush1.msra.mxu0 0.0
    %1774 = vmatprep.subr.mxu0 0.0
    %1775 = vmatpush1.msra.mxu0 0.0
    %1776 = vmatprep.subr.mxu0 0.0
    %1777 = vmatpush1.msra.mxu0 0.0
    %1778 = vmatprep.subr.mxu0 0.0
    %1779 = vmatpush1.msra.mxu0 0.0
    %1780 = vmatprep.subr.mxu0 0.0
    %1781 = vmatpush1.msra.mxu0 0.0
    %1782 = vmatprep.subr.mxu0 0.0
    %1783 = vmatpush1.msra.mxu0 0.0
    %1784 = vmatprep.subr.mxu0 0.0
    %1785 = vmatpush1.msra.mxu0 0.0
    %1786 = vmatprep.subr.mxu0 0.0
    %1787 = vmatpush1.msra.mxu0 0.0
    %1788 = vmatprep.subr.mxu0 0.0
    %1789 = vmatpush1.msra.mxu0 0.0
    %1790 = vmatprep.subr.mxu0 0.0
    %1791 = vmatpush1.msra.mxu0 0.0
    %1792 = vmatprep.subr.mxu0 0.0
    %1793 = vmatpush1.msra.mxu0 0.0
    %1794 = vmatprep.subr.mxu0 0.0
    %1795 = vmatpush1.msra.mxu0 0.0
    %1796 = vmatprep.subr.mxu0 0.0
    %1797 = vmatpush1.msra.mxu0 0.0
    %1798 = vmatprep.subr.mxu0 0.0
    %1799 = vmatpush1.msra.mxu0 0.0
    %1800 = vmatprep.subr.mxu0 0.0
    %1801 = vmatpush1.msra.mxu0 0.0
    %1802 = vmatprep.subr.mxu0 0.0
    %1803 = vmatpush1.msra.mxu0 0.0
    %1804 = vmatprep.subr.mxu0 0.0
    %1805 = vmatpush1.msra.mxu0 0.0
    %1806 = vmatprep.subr.mxu0 0.0
    %1807 = vmatpush1.msra.mxu0 0.0
    %1808 = vmatprep.subr.mxu0 0.0
    %1809 = vmatpush1.msra.mxu0 0.0
    %1810 = vmatprep.subr.mxu0 0.0
    %1811 = vmatpush1.msra.mxu0 0.0
    %1812 = vmatprep.subr.mxu0 0.0
    %1813 = vmatpush1.msra.mxu0 0.0
    %1814 = vmatprep.subr.mxu0 0.0
    %1815 = vmatpush1.msra.mxu0 0.0
    %1816 = vmatprep.subr.mxu0 0.0
    %1817 = vmatpush1.msra.mxu0 0.0
    %1818 = vmatprep.subr.mxu0 0.0
    %1819 = vmatpush1.msra.mxu0 0.0
    %1820 = vmatprep.subr.mxu0 0.0
    %1821 = vmatpush1.msra.mxu0 0.0
    %1822 = vmatprep.subr.mxu0 0.0
    %1823 = vmatpush1.msra.mxu0 0.0
    %1824 = vmatprep.mubr.f32.mxu0 0.0
    %1825 = vmatmul.mubr.f32.gmra.mrb[0].mxu0 %v1758
    %v1826 = vpop.f32.mrb[0].mxu0
    %v1827 = vadd.f32 %v1752, %v1826
    %v1828 = vpop.f32.mrb[0].mxu0
    %1829 = vdwg.mxu0
    %v1830 = vadd.f32 %v1827, %v134
    %v1831 = vxor.u32 %v1830, 2147483648
    %v1832 = vmul.f32 %v1831, 1.442695
    %v1833 = vpow.pop %v1832
    %v1834 = vadd.f32 %v1833, 1.0
    %v1835 = vrcp.pop %v1834
    %v1836 = vmul.f32 1.0, %v1835
    %v1837 = vtanh.pop %v1830
    %v1838 = vmul.f32 %v1836, %v1465
    %1840 = vrot.lane.b32.xlu0 %v1837, 64
    %v1841 = vpop.permute.xlu0 %1840
    %v1843 = vmul.f32 %v1836, %v1841
    %1845 = vrot.lane.b32.xlu0 %v1843, 32
    %v1846 = vpop.permute.xlu0 %1845
    %v1848 = vadd.f32 %v1838, %v1846
    %v1849 = vtanh.pop %v1848
    %1851 = vrot.lane.b32.xlu0 %v1849, 64
    %v1852 = vpop.permute.xlu0 %1851
    %v1854 = vmul.f32 %v1836, %v1852
    %1855 = vrot.lane.b32.xlu0 %v1645, 32
    %v1856 = vpop.permute.xlu0 %1855
    %v1857 = vsel %vm151, %v1856, 0
    %1859 = vmatprep.subr.mxu0 0.0
    %1860 = vmatpush1.msra.mxu0 %v140
    %1861 = vmatprep.subr.mxu0 0.0
    %1862 = vmatpush1.msra.mxu0 %v141
    %1863 = vmatprep.subr.mxu0 0.0
    %1864 = vmatpush1.msra.mxu0 %v142
    %1865 = vmatprep.subr.mxu0 0.0
    %1866 = vmatpush1.msra.mxu0 %v143
    %1867 = vmatprep.subr.mxu0 0.0
    %1868 = vmatpush1.msra.mxu0 0.0
    %1869 = vmatprep.subr.mxu0 0.0
    %1870 = vmatpush1.msra.mxu0 0.0
    %1871 = vmatprep.subr.mxu0 0.0
    %1872 = vmatpush1.msra.mxu0 0.0
    %1873 = vmatprep.subr.mxu0 0.0
    %1874 = vmatpush1.msra.mxu0 0.0
    %1875 = vmatprep.subr.mxu0 0.0
    %1876 = vmatpush1.msra.mxu0 0.0
    %1877 = vmatprep.subr.mxu0 0.0
    %1878 = vmatpush1.msra.mxu0 0.0
    %1879 = vmatprep.subr.mxu0 0.0
    %1880 = vmatpush1.msra.mxu0 0.0
    %1881 = vmatprep.subr.mxu0 0.0
    %1882 = vmatpush1.msra.mxu0 0.0
    %1883 = vmatprep.subr.mxu0 0.0
    %1884 = vmatpush1.msra.mxu0 0.0
    %1885 = vmatprep.subr.mxu0 0.0
    %1886 = vmatpush1.msra.mxu0 0.0
    %1887 = vmatprep.subr.mxu0 0.0
    %1888 = vmatpush1.msra.mxu0 0.0
    %1889 = vmatprep.subr.mxu0 0.0
    %1890 = vmatpush1.msra.mxu0 0.0
    %1891 = vmatprep.subr.mxu0 0.0
    %1892 = vmatpush1.msra.mxu0 0.0
    %1893 = vmatprep.subr.mxu0 0.0
    %1894 = vmatpush1.msra.mxu0 0.0
    %1895 = vmatprep.subr.mxu0 0.0
    %1896 = vmatpush1.msra.mxu0 0.0
    %1897 = vmatprep.subr.mxu0 0.0
    %1898 = vmatpush1.msra.mxu0 0.0
    %1899 = vmatprep.subr.mxu0 0.0
    %1900 = vmatpush1.msra.mxu0 0.0
    %1901 = vmatprep.subr.mxu0 0.0
    %1902 = vmatpush1.msra.mxu0 0.0
    %1903 = vmatprep.subr.mxu0 0.0
    %1904 = vmatpush1.msra.mxu0 0.0
    %1905 = vmatprep.subr.mxu0 0.0
    %1906 = vmatpush1.msra.mxu0 0.0
    %1907 = vmatprep.subr.mxu0 0.0
    %1908 = vmatpush1.msra.mxu0 0.0
    %1909 = vmatprep.subr.mxu0 0.0
    %1910 = vmatpush1.msra.mxu0 0.0
    %1911 = vmatprep.subr.mxu0 0.0
    %1912 = vmatpush1.msra.mxu0 0.0
    %1913 = vmatprep.subr.mxu0 0.0
    %1914 = vmatpush1.msra.mxu0 0.0
    %1915 = vmatprep.subr.mxu0 0.0
    %1916 = vmatpush1.msra.mxu0 0.0
    %1917 = vmatprep.subr.mxu0 0.0
    %1918 = vmatpush1.msra.mxu0 0.0
    %1919 = vmatprep.subr.mxu0 0.0
    %1920 = vmatpush1.msra.mxu0 0.0
    %1921 = vmatprep.subr.mxu0 0.0
    %1922 = vmatpush1.msra.mxu0 0.0
    %1923 = vmatprep.mubr.f32.mxu0 0.0
    %1924 = vmatmul.mubr.f32.gmra.mrb[0].mxu0 %v1857
    %v1925 = vpop.f32.mrb[0].mxu0
    %v1926 = vadd.f32 0.0, %v1925
    %v1927 = vpop.f32.mrb[0].mxu0
    %1928 = vdwg.mxu0
    %1930 = vrot.lane.b32.xlu0 %v1854, 32
    %v1931 = vpop.permute.xlu0 %1930
    %v1932 = vsel %vm151, %v1931, 0
    %1934 = vmatprep.subr.mxu0 0.0
    %1935 = vmatpush1.msra.mxu0 %v136
    %1936 = vmatprep.subr.mxu0 0.0
    %1937 = vmatpush1.msra.mxu0 %v137
    %1938 = vmatprep.subr.mxu0 0.0
    %1939 = vmatpush1.msra.mxu0 %v138
    %1940 = vmatprep.subr.mxu0 0.0
    %1941 = vmatpush1.msra.mxu0 %v139
    %1942 = vmatprep.subr.mxu0 0.0
    %1943 = vmatpush1.msra.mxu0 0.0
    %1944 = vmatprep.subr.mxu0 0.0
    %1945 = vmatpush1.msra.mxu0 0.0
    %1946 = vmatprep.subr.mxu0 0.0
    %1947 = vmatpush1.msra.mxu0 0.0
    %1948 = vmatprep.subr.mxu0 0.0
    %1949 = vmatpush1.msra.mxu0 0.0
    %1950 = vmatprep.subr.mxu0 0.0
    %1951 = vmatpush1.msra.mxu0 0.0
    %1952 = vmatprep.subr.mxu0 0.0
    %1953 = vmatpush1.msra.mxu0 0.0
    %1954 = vmatprep.subr.mxu0 0.0
    %1955 = vmatpush1.msra.mxu0 0.0
    %1956 = vmatprep.subr.mxu0 0.0
    %1957 = vmatpush1.msra.mxu0 0.0
    %1958 = vmatprep.subr.mxu0 0.0
    %1959 = vmatpush1.msra.mxu0 0.0
    %1960 = vmatprep.subr.mxu0 0.0
    %1961 = vmatpush1.msra.mxu0 0.0
    %1962 = vmatprep.subr.mxu0 0.0
    %1963 = vmatpush1.msra.mxu0 0.0
    %1964 = vmatprep.subr.mxu0 0.0
    %1965 = vmatpush1.msra.mxu0 0.0
    %1966 = vmatprep.subr.mxu0 0.0
    %1967 = vmatpush1.msra.mxu0 0.0
    %1968 = vmatprep.subr.mxu0 0.0
    %1969 = vmatpush1.msra.mxu0 0.0
    %1970 = vmatprep.subr.mxu0 0.0
    %1971 = vmatpush1.msra.mxu0 0.0
    %1972 = vmatprep.subr.mxu0 0.0
    %1973 = vmatpush1.msra.mxu0 0.0
    %1974 = vmatprep.subr.mxu0 0.0
    %1975 = vmatpush1.msra.mxu0 0.0
    %1976 = vmatprep.subr.mxu0 0.0
    %1977 = vmatpush1.msra.mxu0 0.0
    %1978 = vmatprep.subr.mxu0 0.0
    %1979 = vmatpush1.msra.mxu0 0.0
    %1980 = vmatprep.subr.mxu0 0.0
    %1981 = vmatpush1.msra.mxu0 0.0
    %1982 = vmatprep.subr.mxu0 0.0
    %1983 = vmatpush1.msra.mxu0 0.0
    %1984 = vmatprep.subr.mxu0 0.0
    %1985 = vmatpush1.msra.mxu0 0.0
    %1986 = vmatprep.subr.mxu0 0.0
    %1987 = vmatpush1.msra.mxu0 0.0
    %1988 = vmatprep.subr.mxu0 0.0
    %1989 = vmatpush1.msra.mxu0 0.0
    %1990 = vmatprep.subr.mxu0 0.0
    %1991 = vmatpush1.msra.mxu0 0.0
    %1992 = vmatprep.subr.mxu0 0.0
    %1993 = vmatpush1.msra.mxu0 0.0
    %1994 = vmatprep.subr.mxu0 0.0
    %1995 = vmatpush1.msra.mxu0 0.0
    %1996 = vmatprep.subr.mxu0 0.0
    %1997 = vmatpush1.msra.mxu0 0.0
    %1998 = vmatprep.mubr.f32.mxu0 0.0
    %1999 = vmatmul.mubr.f32.gmra.mrb[0].mxu0 %v1932
    %v2000 = vpop.f32.mrb[0].mxu0
    %v2001 = vadd.f32 %v1926, %v2000
    %v2002 = vpop.f32.mrb[0].mxu0
    %2003 = vdwg.mxu0
    %v2004 = vadd.f32 %v2001, %v149
    %v2005 = vxor.u32 %v2004, 2147483648
    %v2006 = vmul.f32 %v2005, 1.442695
    %v2007 = vpow.pop %v2006
    %v2008 = vadd.f32 %v2007, 1.0
    %v2009 = vrcp.pop %v2008
    %v2010 = vmul.f32 1.0, %v2009
    %v2011 = vtanh.pop %v2004
    %v2012 = vmul.f32 %v2010, %v1639
    %2014 = vrot.lane.b32.xlu0 %v2011, 64
    %v2015 = vpop.permute.xlu0 %2014
    %v2017 = vmul.f32 %v2010, %v2015
    %2019 = vrot.lane.b32.xlu0 %v2017, 32
    %v2020 = vpop.permute.xlu0 %2019
    %v2022 = vadd.f32 %v2012, %v2020
    %v2023 = vtanh.pop %v2022
    %2025 = vrot.lane.b32.xlu0 %v2023, 64
    %v2026 = vpop.permute.xlu0 %2025
    %v2028 = vmul.f32 %v2010, %v2026
    %v2031 = vunpack.c.l.s4 1966171168
    %v2032 = vunpack.c.0.s8 %v2031
    %v2033 = vlaneseq
    %v2034 = vshrl.u32 %v2033, 7
    %v2035 = vsub.s32 %v2032, %v2034
    %v2036 = vrot.slane %v2028, %v2035
    %v2037 = vcombine.high %v2036, %v2036
    %v2039 = vunpack.c.l.s4 1966171168
    %v2040 = vunpack.c.0.s8 %v2039
    %v2041 = vlaneseq
    %v2042 = vshrl.u32 %v2041, 7
    %v2043 = vsub.s32 %v2040, %v2042
    %v2044 = vrot.slane %v2036, %v2043
    %v2046 = vunpack.c.l.s4 1966171168
    %v2047 = vunpack.c.0.s8 %v2046
    %v2048 = vlaneseq
    %v2049 = vshrl.u32 %v2048, 7
    %v2050 = vsub.s32 %v2047, %v2049
    %v2051 = vrot.slane %v2037, %v2050
    %v2052 = vlaneseq
    %v2053 = vshrl.u32 %v2052, 7
    %v2054 = vsub.s32 0, %v2053
    %v2055 = vrot.slane %v2044, %v2054
    %v2056 = vlaneseq
    %v2057 = vshrl.u32 %v2056, 7
    %v2058 = vsub.s32 0, %v2057
    %v2059 = vrot.slane %v2051, %v2058
    %2060 = vrot.lane.b32.xlu0 %v2055, 32
    %v2061 = vpop.permute.xlu0 %2060
    %2062 = vrot.lane.b32.xlu0 %v2059, 32
    %v2063 = vpop.permute.xlu0 %2062
    %2066 = vst.msk [vmem:[#allocation2 + $0x4] sm:$0x1] %vm534, %v2061
    %2067 = vst.msk [vmem:[#allocation2 + $0xc] sm:$0x1] %vm534, %v2063
    %2068 = vmatprep.subr.mxu0 0.0
    %2069 = vmatpush1.msra.mxu0 %v125
    %2070 = vmatprep.subr.mxu0 0.0
    %2071 = vmatpush1.msra.mxu0 %v126
    %2072 = vmatprep.subr.mxu0 0.0
    %2073 = vmatpush1.msra.mxu0 %v127
    %2074 = vmatprep.subr.mxu0 0.0
    %2075 = vmatpush1.msra.mxu0 %v128
    %2076 = vmatprep.subr.mxu0 0.0
    %2077 = vmatpush1.msra.mxu0 0.0
    %2078 = vmatprep.subr.mxu0 0.0
    %2079 = vmatpush1.msra.mxu0 0.0
    %2080 = vmatprep.subr.mxu0 0.0
    %2081 = vmatpush1.msra.mxu0 0.0
    %2082 = vmatprep.subr.mxu0 0.0
    %2083 = vmatpush1.msra.mxu0 0.0
    %2084 = vmatprep.subr.mxu0 0.0
    %2085 = vmatpush1.msra.mxu0 0.0
    %2086 = vmatprep.subr.mxu0 0.0
    %2087 = vmatpush1.msra.mxu0 0.0
    %2088 = vmatprep.subr.mxu0 0.0
    %2089 = vmatpush1.msra.mxu0 0.0
    %2090 = vmatprep.subr.mxu0 0.0
    %2091 = vmatpush1.msra.mxu0 0.0
    %2092 = vmatprep.subr.mxu0 0.0
    %2093 = vmatpush1.msra.mxu0 0.0
    %2094 = vmatprep.subr.mxu0 0.0
    %2095 = vmatpush1.msra.mxu0 0.0
    %2096 = vmatprep.subr.mxu0 0.0
    %2097 = vmatpush1.msra.mxu0 0.0
    %2098 = vmatprep.subr.mxu0 0.0
    %2099 = vmatpush1.msra.mxu0 0.0
    %2100 = vmatprep.subr.mxu0 0.0
    %2101 = vmatpush1.msra.mxu0 0.0
    %2102 = vmatprep.subr.mxu0 0.0
    %2103 = vmatpush1.msra.mxu0 0.0
    %2104 = vmatprep.subr.mxu0 0.0
    %2105 = vmatpush1.msra.mxu0 0.0
    %2106 = vmatprep.subr.mxu0 0.0
    %2107 = vmatpush1.msra.mxu0 0.0
    %2108 = vmatprep.subr.mxu0 0.0
    %2109 = vmatpush1.msra.mxu0 0.0
    %2110 = vmatprep.subr.mxu0 0.0
    %2111 = vmatpush1.msra.mxu0 0.0
    %2112 = vmatprep.subr.mxu0 0.0
    %2113 = vmatpush1.msra.mxu0 0.0
    %2114 = vmatprep.subr.mxu0 0.0
    %2115 = vmatpush1.msra.mxu0 0.0
    %2116 = vmatprep.subr.mxu0 0.0
    %2117 = vmatpush1.msra.mxu0 0.0
    %2118 = vmatprep.subr.mxu0 0.0
    %2119 = vmatpush1.msra.mxu0 0.0
    %2120 = vmatprep.subr.mxu0 0.0
    %2121 = vmatpush1.msra.mxu0 0.0
    %2122 = vmatprep.subr.mxu0 0.0
    %2123 = vmatpush1.msra.mxu0 0.0
    %2124 = vmatprep.subr.mxu0 0.0
    %2125 = vmatpush1.msra.mxu0 0.0
    %2126 = vmatprep.subr.mxu0 0.0
    %2127 = vmatpush1.msra.mxu0 0.0
    %2128 = vmatprep.subr.mxu0 0.0
    %2129 = vmatpush1.msra.mxu0 0.0
    %2130 = vmatprep.subr.mxu0 0.0
    %2131 = vmatpush1.msra.mxu0 0.0
    %2132 = vmatprep.mubr.f32.mxu0 0.0
    %2133 = vmatmul.mubr.f32.gmra.mrb[0].mxu0 %v1932
    %v2134 = vpop.f32.mrb[0].mxu0
    %v2135 = vadd.f32 0.0, %v2134
    %v2136 = vpop.f32.mrb[0].mxu0
    %2137 = vdwg.mxu0
    %v2138 = vrot.slane %v118, 5
    %v2139 = vrot.slane %v119, 4
    %v2140 = vsel %vm228, %v2139, %v2138
    %v2141 = vsel %vm120, %v2140, 0
    %2143 = vmatprep.subr.mxu0 0.0
    %2144 = vmatpush1.msra.mxu0 %v123
    %2145 = vmatprep.subr.mxu0 0.0
    %2146 = vmatpush1.msra.mxu0 %v124
    %2147 = vmatprep.subr.mxu0 0.0
    %2148 = vmatpush1.msra.mxu0 0.0
    %2149 = vmatprep.subr.mxu0 0.0
    %2150 = vmatpush1.msra.mxu0 0.0
    %2151 = vmatprep.subr.mxu0 0.0
    %2152 = vmatpush1.msra.mxu0 0.0
    %2153 = vmatprep.subr.mxu0 0.0
    %2154 = vmatpush1.msra.mxu0 0.0
    %2155 = vmatprep.subr.mxu0 0.0
    %2156 = vmatpush1.msra.mxu0 0.0
    %2157 = vmatprep.subr.mxu0 0.0
    %2158 = vmatpush1.msra.mxu0 0.0
    %2159 = vmatprep.subr.mxu0 0.0
    %2160 = vmatpush1.msra.mxu0 0.0
    %2161 = vmatprep.subr.mxu0 0.0
    %2162 = vmatpush1.msra.mxu0 0.0
    %2163 = vmatprep.subr.mxu0 0.0
    %2164 = vmatpush1.msra.mxu0 0.0
    %2165 = vmatprep.subr.mxu0 0.0
    %2166 = vmatpush1.msra.mxu0 0.0
    %2167 = vmatprep.subr.mxu0 0.0
    %2168 = vmatpush1.msra.mxu0 0.0
    %2169 = vmatprep.subr.mxu0 0.0
    %2170 = vmatpush1.msra.mxu0 0.0
    %2171 = vmatprep.subr.mxu0 0.0
    %2172 = vmatpush1.msra.mxu0 0.0
    %2173 = vmatprep.subr.mxu0 0.0
    %2174 = vmatpush1.msra.mxu0 0.0
    %2175 = vmatprep.subr.mxu0 0.0
    %2176 = vmatpush1.msra.mxu0 0.0
    %2177 = vmatprep.subr.mxu0 0.0
    %2178 = vmatpush1.msra.mxu0 0.0
    %2179 = vmatprep.subr.mxu0 0.0
    %2180 = vmatpush1.msra.mxu0 0.0
    %2181 = vmatprep.subr.mxu0 0.0
    %2182 = vmatpush1.msra.mxu0 0.0
    %2183 = vmatprep.subr.mxu0 0.0
    %2184 = vmatpush1.msra.mxu0 0.0
    %2185 = vmatprep.subr.mxu0 0.0
    %2186 = vmatpush1.msra.mxu0 0.0
    %2187 = vmatprep.subr.mxu0 0.0
    %2188 = vmatpush1.msra.mxu0 0.0
    %2189 = vmatprep.subr.mxu0 0.0
    %2190 = vmatpush1.msra.mxu0 0.0
    %2191 = vmatprep.subr.mxu0 0.0
    %2192 = vmatpush1.msra.mxu0 0.0
    %2193 = vmatprep.subr.mxu0 0.0
    %2194 = vmatpush1.msra.mxu0 0.0
    %2195 = vmatprep.subr.mxu0 0.0
    %2196 = vmatpush1.msra.mxu0 0.0
    %2197 = vmatprep.subr.mxu0 0.0
    %2198 = vmatpush1.msra.mxu0 0.0
    %2199 = vmatprep.subr.mxu0 0.0
    %2200 = vmatpush1.msra.mxu0 0.0
    %2201 = vmatprep.subr.mxu0 0.0
    %2202 = vmatpush1.msra.mxu0 0.0
    %2203 = vmatprep.subr.mxu0 0.0
    %2204 = vmatpush1.msra.mxu0 0.0
    %2205 = vmatprep.subr.mxu0 0.0
    %2206 = vmatpush1.msra.mxu0 0.0
    %2207 = vmatprep.mubr.f32.mxu0 0.0
    %2208 = vmatmul.mubr.f32.gmra.mrb[0].mxu0 %v2141
    %v2209 = vpop.f32.mrb[0].mxu0
    %v2210 = vadd.f32 %v2135, %v2209
    %v2211 = vpop.f32.mrb[0].mxu0
    %2212 = vdwg.mxu0
    %v2213 = vadd.f32 %v2210, %v134
    %v2214 = vxor.u32 %v2213, 2147483648
    %v2215 = vmul.f32 %v2214, 1.442695
    %v2216 = vpow.pop %v2215
    %v2217 = vadd.f32 %v2216, 1.0
    %v2218 = vrcp.pop %v2217
    %v2219 = vmul.f32 1.0, %v2218
    %v2220 = vtanh.pop %v2213
    %v2221 = vmul.f32 %v2219, %v1848
    %2223 = vrot.lane.b32.xlu0 %v2220, 64
    %v2224 = vpop.permute.xlu0 %2223
    %v2226 = vmul.f32 %v2219, %v2224
    %2228 = vrot.lane.b32.xlu0 %v2226, 32
    %v2229 = vpop.permute.xlu0 %2228
    %v2231 = vadd.f32 %v2221, %v2229
    %v2232 = vtanh.pop %v2231
    %2234 = vrot.lane.b32.xlu0 %v2232, 64
    %v2235 = vpop.permute.xlu0 %2234
    %v2237 = vmul.f32 %v2219, %v2235
    %2238 = vrot.lane.b32.xlu0 %v2028, 32
    %v2239 = vpop.permute.xlu0 %2238
    %v2240 = vsel %vm151, %v2239, 0
    %2242 = vmatprep.subr.mxu0 0.0
    %2243 = vmatpush1.msra.mxu0 %v140
    %2244 = vmatprep.subr.mxu0 0.0
    %2245 = vmatpush1.msra.mxu0 %v141
    %2246 = vmatprep.subr.mxu0 0.0
    %2247 = vmatpush1.msra.mxu0 %v142
    %2248 = vmatprep.subr.mxu0 0.0
    %2249 = vmatpush1.msra.mxu0 %v143
    %2250 = vmatprep.subr.mxu0 0.0
    %2251 = vmatpush1.msra.mxu0 0.0
    %2252 = vmatprep.subr.mxu0 0.0
    %2253 = vmatpush1.msra.mxu0 0.0
    %2254 = vmatprep.subr.mxu0 0.0
    %2255 = vmatpush1.msra.mxu0 0.0
    %2256 = vmatprep.subr.mxu0 0.0
    %2257 = vmatpush1.msra.mxu0 0.0
    %2258 = vmatprep.subr.mxu0 0.0
    %2259 = vmatpush1.msra.mxu0 0.0
    %2260 = vmatprep.subr.mxu0 0.0
    %2261 = vmatpush1.msra.mxu0 0.0
    %2262 = vmatprep.subr.mxu0 0.0
    %2263 = vmatpush1.msra.mxu0 0.0
    %2264 = vmatprep.subr.mxu0 0.0
    %2265 = vmatpush1.msra.mxu0 0.0
    %2266 = vmatprep.subr.mxu0 0.0
    %2267 = vmatpush1.msra.mxu0 0.0
    %2268 = vmatprep.subr.mxu0 0.0
    %2269 = vmatpush1.msra.mxu0 0.0
    %2270 = vmatprep.subr.mxu0 0.0
    %2271 = vmatpush1.msra.mxu0 0.0
    %2272 = vmatprep.subr.mxu0 0.0
    %2273 = vmatpush1.msra.mxu0 0.0
    %2274 = vmatprep.subr.mxu0 0.0
    %2275 = vmatpush1.msra.mxu0 0.0
    %2276 = vmatprep.subr.mxu0 0.0
    %2277 = vmatpush1.msra.mxu0 0.0
    %2278 = vmatprep.subr.mxu0 0.0
    %2279 = vmatpush1.msra.mxu0 0.0
    %2280 = vmatprep.subr.mxu0 0.0
    %2281 = vmatpush1.msra.mxu0 0.0
    %2282 = vmatprep.subr.mxu0 0.0
    %2283 = vmatpush1.msra.mxu0 0.0
    %2284 = vmatprep.subr.mxu0 0.0
    %2285 = vmatpush1.msra.mxu0 0.0
    %2286 = vmatprep.subr.mxu0 0.0
    %2287 = vmatpush1.msra.mxu0 0.0
    %2288 = vmatprep.subr.mxu0 0.0
    %2289 = vmatpush1.msra.mxu0 0.0
    %2290 = vmatprep.subr.mxu0 0.0
    %2291 = vmatpush1.msra.mxu0 0.0
    %2292 = vmatprep.subr.mxu0 0.0
    %2293 = vmatpush1.msra.mxu0 0.0
    %2294 = vmatprep.subr.mxu0 0.0
    %2295 = vmatpush1.msra.mxu0 0.0
    %2296 = vmatprep.subr.mxu0 0.0
    %2297 = vmatpush1.msra.mxu0 0.0
    %2298 = vmatprep.subr.mxu0 0.0
    %2299 = vmatpush1.msra.mxu0 0.0
    %2300 = vmatprep.subr.mxu0 0.0
    %2301 = vmatpush1.msra.mxu0 0.0
    %2302 = vmatprep.subr.mxu0 0.0
    %2303 = vmatpush1.msra.mxu0 0.0
    %2304 = vmatprep.subr.mxu0 0.0
    %2305 = vmatpush1.msra.mxu0 0.0
    %2306 = vmatprep.mubr.f32.mxu0 0.0
    %2307 = vmatmul.mubr.f32.gmra.mrb[0].mxu0 %v2240
    %v2308 = vpop.f32.mrb[0].mxu0
    %v2309 = vadd.f32 0.0, %v2308
    %v2310 = vpop.f32.mrb[0].mxu0
    %2311 = vdwg.mxu0
    %2313 = vrot.lane.b32.xlu0 %v2237, 32
    %v2314 = vpop.permute.xlu0 %2313
    %v2315 = vsel %vm151, %v2314, 0
    %2317 = vmatprep.subr.mxu0 0.0
    %2318 = vmatpush1.msra.mxu0 %v136
    %2319 = vmatprep.subr.mxu0 0.0
    %2320 = vmatpush1.msra.mxu0 %v137
    %2321 = vmatprep.subr.mxu0 0.0
    %2322 = vmatpush1.msra.mxu0 %v138
    %2323 = vmatprep.subr.mxu0 0.0
    %2324 = vmatpush1.msra.mxu0 %v139
    %2325 = vmatprep.subr.mxu0 0.0
    %2326 = vmatpush1.msra.mxu0 0.0
    %2327 = vmatprep.subr.mxu0 0.0
    %2328 = vmatpush1.msra.mxu0 0.0
    %2329 = vmatprep.subr.mxu0 0.0
    %2330 = vmatpush1.msra.mxu0 0.0
    %2331 = vmatprep.subr.mxu0 0.0
    %2332 = vmatpush1.msra.mxu0 0.0
    %2333 = vmatprep.subr.mxu0 0.0
    %2334 = vmatpush1.msra.mxu0 0.0
    %2335 = vmatprep.subr.mxu0 0.0
    %2336 = vmatpush1.msra.mxu0 0.0
    %2337 = vmatprep.subr.mxu0 0.0
    %2338 = vmatpush1.msra.mxu0 0.0
    %2339 = vmatprep.subr.mxu0 0.0
    %2340 = vmatpush1.msra.mxu0 0.0
    %2341 = vmatprep.subr.mxu0 0.0
    %2342 = vmatpush1.msra.mxu0 0.0
    %2343 = vmatprep.subr.mxu0 0.0
    %2344 = vmatpush1.msra.mxu0 0.0
    %2345 = vmatprep.subr.mxu0 0.0
    %2346 = vmatpush1.msra.mxu0 0.0
    %2347 = vmatprep.subr.mxu0 0.0
    %2348 = vmatpush1.msra.mxu0 0.0
    %2349 = vmatprep.subr.mxu0 0.0
    %2350 = vmatpush1.msra.mxu0 0.0
    %2351 = vmatprep.subr.mxu0 0.0
    %2352 = vmatpush1.msra.mxu0 0.0
    %2353 = vmatprep.subr.mxu0 0.0
    %2354 = vmatpush1.msra.mxu0 0.0
    %2355 = vmatprep.subr.mxu0 0.0
    %2356 = vmatpush1.msra.mxu0 0.0
    %2357 = vmatprep.subr.mxu0 0.0
    %2358 = vmatpush1.msra.mxu0 0.0
    %2359 = vmatprep.subr.mxu0 0.0
    %2360 = vmatpush1.msra.mxu0 0.0
    %2361 = vmatprep.subr.mxu0 0.0
    %2362 = vmatpush1.msra.mxu0 0.0
    %2363 = vmatprep.subr.mxu0 0.0
    %2364 = vmatpush1.msra.mxu0 0.0
    %2365 = vmatprep.subr.mxu0 0.0
    %2366 = vmatpush1.msra.mxu0 0.0
    %2367 = vmatprep.subr.mxu0 0.0
    %2368 = vmatpush1.msra.mxu0 0.0
    %2369 = vmatprep.subr.mxu0 0.0
    %2370 = vmatpush1.msra.mxu0 0.0
    %2371 = vmatprep.subr.mxu0 0.0
    %2372 = vmatpush1.msra.mxu0 0.0
    %2373 = vmatprep.subr.mxu0 0.0
    %2374 = vmatpush1.msra.mxu0 0.0
    %2375 = vmatprep.subr.mxu0 0.0
    %2376 = vmatpush1.msra.mxu0 0.0
    %2377 = vmatprep.subr.mxu0 0.0
    %2378 = vmatpush1.msra.mxu0 0.0
    %2379 = vmatprep.subr.mxu0 0.0
    %2380 = vmatpush1.msra.mxu0 0.0
    %2381 = vmatprep.mubr.f32.mxu0 0.0
    %2382 = vmatmul.mubr.f32.gmra.mrb[0].mxu0 %v2315
    %v2383 = vpop.f32.mrb[0].mxu0
    %v2384 = vadd.f32 %v2309, %v2383
    %v2385 = vpop.f32.mrb[0].mxu0
    %2386 = vdwg.mxu0
    %v2387 = vadd.f32 %v2384, %v149
    %v2388 = vxor.u32 %v2387, 2147483648
    %v2389 = vmul.f32 %v2388, 1.442695
    %v2390 = vpow.pop %v2389
    %v2391 = vadd.f32 %v2390, 1.0
    %v2392 = vrcp.pop %v2391
    %v2393 = vmul.f32 1.0, %v2392
    %v2394 = vtanh.pop %v2387
    %v2395 = vmul.f32 %v2393, %v2022
    %2397 = vrot.lane.b32.xlu0 %v2394, 64
    %v2398 = vpop.permute.xlu0 %2397
    %v2400 = vmul.f32 %v2393, %v2398
    %2402 = vrot.lane.b32.xlu0 %v2400, 32
    %v2403 = vpop.permute.xlu0 %2402
    %v2405 = vadd.f32 %v2395, %v2403
    %v2406 = vtanh.pop %v2405
    %2408 = vrot.lane.b32.xlu0 %v2406, 64
    %v2409 = vpop.permute.xlu0 %2408
    %v2411 = vmul.f32 %v2393, %v2409
    %v2414 = vunpack.c.l.s4 1966171168
    %v2415 = vunpack.c.0.s8 %v2414
    %v2416 = vlaneseq
    %v2417 = vshrl.u32 %v2416, 7
    %v2418 = vsub.s32 %v2415, %v2417
    %v2419 = vrot.slane %v2411, %v2418
    %v2420 = vcombine.high %v2419, %v2419
    %v2422 = vunpack.c.l.s4 1966171168
    %v2423 = vunpack.c.0.s8 %v2422
    %v2424 = vlaneseq
    %v2425 = vshrl.u32 %v2424, 7
    %v2426 = vsub.s32 %v2423, %v2425
    %v2427 = vrot.slane %v2419, %v2426
    %v2429 = vunpack.c.l.s4 1966171168
    %v2430 = vunpack.c.0.s8 %v2429
    %v2431 = vlaneseq
    %v2432 = vshrl.u32 %v2431, 7
    %v2433 = vsub.s32 %v2430, %v2432
    %v2434 = vrot.slane %v2420, %v2433
    %v2435 = vlaneseq
    %v2436 = vshrl.u32 %v2435, 7
    %v2437 = vsub.s32 0, %v2436
    %v2438 = vrot.slane %v2427, %v2437
    %v2439 = vlaneseq
    %v2440 = vshrl.u32 %v2439, 7
    %v2441 = vsub.s32 0, %v2440
    %v2442 = vrot.slane %v2434, %v2441
    %2443 = vrot.lane.b32.xlu0 %v2438, 32
    %v2444 = vpop.permute.xlu0 %2443
    %2445 = vrot.lane.b32.xlu0 %v2442, 32
    %v2446 = vpop.permute.xlu0 %2445
    %2449 = vst.msk [vmem:[#allocation2 + $0x5] sm:$0x1] %vm534, %v2444
    %2450 = vst.msk [vmem:[#allocation2 + $0xd] sm:$0x1] %vm534, %v2446
    %2451 = vmatprep.subr.mxu0 0.0
    %2452 = vmatpush1.msra.mxu0 %v125
    %2453 = vmatprep.subr.mxu0 0.0
    %2454 = vmatpush1.msra.mxu0 %v126
    %2455 = vmatprep.subr.mxu0 0.0
    %2456 = vmatpush1.msra.mxu0 %v127
    %2457 = vmatprep.subr.mxu0 0.0
    %2458 = vmatpush1.msra.mxu0 %v128
    %2459 = vmatprep.subr.mxu0 0.0
    %2460 = vmatpush1.msra.mxu0 0.0
    %2461 = vmatprep.subr.mxu0 0.0
    %2462 = vmatpush1.msra.mxu0 0.0
    %2463 = vmatprep.subr.mxu0 0.0
    %2464 = vmatpush1.msra.mxu0 0.0
    %2465 = vmatprep.subr.mxu0 0.0
    %2466 = vmatpush1.msra.mxu0 0.0
    %2467 = vmatprep.subr.mxu0 0.0
    %2468 = vmatpush1.msra.mxu0 0.0
    %2469 = vmatprep.subr.mxu0 0.0
    %2470 = vmatpush1.msra.mxu0 0.0
    %2471 = vmatprep.subr.mxu0 0.0
    %2472 = vmatpush1.msra.mxu0 0.0
    %2473 = vmatprep.subr.mxu0 0.0
    %2474 = vmatpush1.msra.mxu0 0.0
    %2475 = vmatprep.subr.mxu0 0.0
    %2476 = vmatpush1.msra.mxu0 0.0
    %2477 = vmatprep.subr.mxu0 0.0
    %2478 = vmatpush1.msra.mxu0 0.0
    %2479 = vmatprep.subr.mxu0 0.0
    %2480 = vmatpush1.msra.mxu0 0.0
    %2481 = vmatprep.subr.mxu0 0.0
    %2482 = vmatpush1.msra.mxu0 0.0
    %2483 = vmatprep.subr.mxu0 0.0
    %2484 = vmatpush1.msra.mxu0 0.0
    %2485 = vmatprep.subr.mxu0 0.0
    %2486 = vmatpush1.msra.mxu0 0.0
    %2487 = vmatprep.subr.mxu0 0.0
    %2488 = vmatpush1.msra.mxu0 0.0
    %2489 = vmatprep.subr.mxu0 0.0
    %2490 = vmatpush1.msra.mxu0 0.0
    %2491 = vmatprep.subr.mxu0 0.0
    %2492 = vmatpush1.msra.mxu0 0.0
    %2493 = vmatprep.subr.mxu0 0.0
    %2494 = vmatpush1.msra.mxu0 0.0
    %2495 = vmatprep.subr.mxu0 0.0
    %2496 = vmatpush1.msra.mxu0 0.0
    %2497 = vmatprep.subr.mxu0 0.0
    %2498 = vmatpush1.msra.mxu0 0.0
    %2499 = vmatprep.subr.mxu0 0.0
    %2500 = vmatpush1.msra.mxu0 0.0
    %2501 = vmatprep.subr.mxu0 0.0
    %2502 = vmatpush1.msra.mxu0 0.0
    %2503 = vmatprep.subr.mxu0 0.0
    %2504 = vmatpush1.msra.mxu0 0.0
    %2505 = vmatprep.subr.mxu0 0.0
    %2506 = vmatpush1.msra.mxu0 0.0
    %2507 = vmatprep.subr.mxu0 0.0
    %2508 = vmatpush1.msra.mxu0 0.0
    %2509 = vmatprep.subr.mxu0 0.0
    %2510 = vmatpush1.msra.mxu0 0.0
    %2511 = vmatprep.subr.mxu0 0.0
    %2512 = vmatpush1.msra.mxu0 0.0
    %2513 = vmatprep.subr.mxu0 0.0
    %2514 = vmatpush1.msra.mxu0 0.0
    %2515 = vmatprep.mubr.f32.mxu0 0.0
    %2516 = vmatmul.mubr.f32.gmra.mrb[0].mxu0 %v2315
    %v2517 = vpop.f32.mrb[0].mxu0
    %v2518 = vadd.f32 0.0, %v2517
    %v2519 = vpop.f32.mrb[0].mxu0
    %2520 = vdwg.mxu0
    %v2521 = vrot.slane %v118, 6
    %v2522 = vrot.slane %v119, 5
    %v2523 = vsel %vm228, %v2522, %v2521
    %v2524 = vsel %vm120, %v2523, 0
    %2526 = vmatprep.subr.mxu0 0.0
    %2527 = vmatpush1.msra.mxu0 %v123
    %2528 = vmatprep.subr.mxu0 0.0
    %2529 = vmatpush1.msra.mxu0 %v124
    %2530 = vmatprep.subr.mxu0 0.0
    %2531 = vmatpush1.msra.mxu0 0.0
    %2532 = vmatprep.subr.mxu0 0.0
    %2533 = vmatpush1.msra.mxu0 0.0
    %2534 = vmatprep.subr.mxu0 0.0
    %2535 = vmatpush1.msra.mxu0 0.0
    %2536 = vmatprep.subr.mxu0 0.0
    %2537 = vmatpush1.msra.mxu0 0.0
    %2538 = vmatprep.subr.mxu0 0.0
    %2539 = vmatpush1.msra.mxu0 0.0
    %2540 = vmatprep.subr.mxu0 0.0
    %2541 = vmatpush1.msra.mxu0 0.0
    %2542 = vmatprep.subr.mxu0 0.0
    %2543 = vmatpush1.msra.mxu0 0.0
    %2544 = vmatprep.subr.mxu0 0.0
    %2545 = vmatpush1.msra.mxu0 0.0
    %2546 = vmatprep.subr.mxu0 0.0
    %2547 = vmatpush1.msra.mxu0 0.0
    %2548 = vmatprep.subr.mxu0 0.0
    %2549 = vmatpush1.msra.mxu0 0.0
    %2550 = vmatprep.subr.mxu0 0.0
    %2551 = vmatpush1.msra.mxu0 0.0
    %2552 = vmatprep.subr.mxu0 0.0
    %2553 = vmatpush1.msra.mxu0 0.0
    %2554 = vmatprep.subr.mxu0 0.0
    %2555 = vmatpush1.msra.mxu0 0.0
    %2556 = vmatprep.subr.mxu0 0.0
    %2557 = vmatpush1.msra.mxu0 0.0
    %2558 = vmatprep.subr.mxu0 0.0
    %2559 = vmatpush1.msra.mxu0 0.0
    %2560 = vmatprep.subr.mxu0 0.0
    %2561 = vmatpush1.msra.mxu0 0.0
    %2562 = vmatprep.subr.mxu0 0.0
    %2563 = vmatpush1.msra.mxu0 0.0
    %2564 = vmatprep.subr.mxu0 0.0
    %2565 = vmatpush1.msra.mxu0 0.0
    %2566 = vmatprep.subr.mxu0 0.0
    %2567 = vmatpush1.msra.mxu0 0.0
    %2568 = vmatprep.subr.mxu0 0.0
    %2569 = vmatpush1.msra.mxu0 0.0
    %2570 = vmatprep.subr.mxu0 0.0
    %2571 = vmatpush1.msra.mxu0 0.0
    %2572 = vmatprep.subr.mxu0 0.0
    %2573 = vmatpush1.msra.mxu0 0.0
    %2574 = vmatprep.subr.mxu0 0.0
    %2575 = vmatpush1.msra.mxu0 0.0
    %2576 = vmatprep.subr.mxu0 0.0
    %2577 = vmatpush1.msra.mxu0 0.0
    %2578 = vmatprep.subr.mxu0 0.0
    %2579 = vmatpush1.msra.mxu0 0.0
    %2580 = vmatprep.subr.mxu0 0.0
    %2581 = vmatpush1.msra.mxu0 0.0
    %2582 = vmatprep.subr.mxu0 0.0
    %2583 = vmatpush1.msra.mxu0 0.0
    %2584 = vmatprep.subr.mxu0 0.0
    %2585 = vmatpush1.msra.mxu0 0.0
    %2586 = vmatprep.subr.mxu0 0.0
    %2587 = vmatpush1.msra.mxu0 0.0
    %2588 = vmatprep.subr.mxu0 0.0
    %2589 = vmatpush1.msra.mxu0 0.0
    %2590 = vmatprep.mubr.f32.mxu0 0.0
    %2591 = vmatmul.mubr.f32.gmra.mrb[0].mxu0 %v2524
    %v2592 = vpop.f32.mrb[0].mxu0
    %v2593 = vadd.f32 %v2518, %v2592
    %v2594 = vpop.f32.mrb[0].mxu0
    %2595 = vdwg.mxu0
    %v2596 = vadd.f32 %v2593, %v134
    %v2597 = vxor.u32 %v2596, 2147483648
    %v2598 = vmul.f32 %v2597, 1.442695
    %v2599 = vpow.pop %v2598
    %v2600 = vadd.f32 %v2599, 1.0
    %v2601 = vrcp.pop %v2600
    %v2602 = vmul.f32 1.0, %v2601
    %v2603 = vtanh.pop %v2596
    %v2604 = vmul.f32 %v2602, %v2231
    %2606 = vrot.lane.b32.xlu0 %v2603, 64
    %v2607 = vpop.permute.xlu0 %2606
    %v2609 = vmul.f32 %v2602, %v2607
    %2611 = vrot.lane.b32.xlu0 %v2609, 32
    %v2612 = vpop.permute.xlu0 %2611
    %v2614 = vadd.f32 %v2604, %v2612
    %v2615 = vtanh.pop %v2614
    %2617 = vrot.lane.b32.xlu0 %v2615, 64
    %v2618 = vpop.permute.xlu0 %2617
    %v2620 = vmul.f32 %v2602, %v2618
    %2621 = vrot.lane.b32.xlu0 %v2411, 32
    %v2622 = vpop.permute.xlu0 %2621
    %v2623 = vsel %vm151, %v2622, 0
    %2625 = vmatprep.subr.mxu0 0.0
    %2626 = vmatpush1.msra.mxu0 %v140
    %2627 = vmatprep.subr.mxu0 0.0
    %2628 = vmatpush1.msra.mxu0 %v141
    %2629 = vmatprep.subr.mxu0 0.0
    %2630 = vmatpush1.msra.mxu0 %v142
    %2631 = vmatprep.subr.mxu0 0.0
    %2632 = vmatpush1.msra.mxu0 %v143
    %2633 = vmatprep.subr.mxu0 0.0
    %2634 = vmatpush1.msra.mxu0 0.0
    %2635 = vmatprep.subr.mxu0 0.0
    %2636 = vmatpush1.msra.mxu0 0.0
    %2637 = vmatprep.subr.mxu0 0.0
    %2638 = vmatpush1.msra.mxu0 0.0
    %2639 = vmatprep.subr.mxu0 0.0
    %2640 = vmatpush1.msra.mxu0 0.0
    %2641 = vmatprep.subr.mxu0 0.0
    %2642 = vmatpush1.msra.mxu0 0.0
    %2643 = vmatprep.subr.mxu0 0.0
    %2644 = vmatpush1.msra.mxu0 0.0
    %2645 = vmatprep.subr.mxu0 0.0
    %2646 = vmatpush1.msra.mxu0 0.0
    %2647 = vmatprep.subr.mxu0 0.0
    %2648 = vmatpush1.msra.mxu0 0.0
    %2649 = vmatprep.subr.mxu0 0.0
    %2650 = vmatpush1.msra.mxu0 0.0
    %2651 = vmatprep.subr.mxu0 0.0
    %2652 = vmatpush1.msra.mxu0 0.0
    %2653 = vmatprep.subr.mxu0 0.0
    %2654 = vmatpush1.msra.mxu0 0.0
    %2655 = vmatprep.subr.mxu0 0.0
    %2656 = vmatpush1.msra.mxu0 0.0
    %2657 = vmatprep.subr.mxu0 0.0
    %2658 = vmatpush1.msra.mxu0 0.0
    %2659 = vmatprep.subr.mxu0 0.0
    %2660 = vmatpush1.msra.mxu0 0.0
    %2661 = vmatprep.subr.mxu0 0.0
    %2662 = vmatpush1.msra.mxu0 0.0
    %2663 = vmatprep.subr.mxu0 0.0
    %2664 = vmatpush1.msra.mxu0 0.0
    %2665 = vmatprep.subr.mxu0 0.0
    %2666 = vmatpush1.msra.mxu0 0.0
    %2667 = vmatprep.subr.mxu0 0.0
    %2668 = vmatpush1.msra.mxu0 0.0
    %2669 = vmatprep.subr.mxu0 0.0
    %2670 = vmatpush1.msra.mxu0 0.0
    %2671 = vmatprep.subr.mxu0 0.0
    %2672 = vmatpush1.msra.mxu0 0.0
    %2673 = vmatprep.subr.mxu0 0.0
    %2674 = vmatpush1.msra.mxu0 0.0
    %2675 = vmatprep.subr.mxu0 0.0
    %2676 = vmatpush1.msra.mxu0 0.0
    %2677 = vmatprep.subr.mxu0 0.0
    %2678 = vmatpush1.msra.mxu0 0.0
    %2679 = vmatprep.subr.mxu0 0.0
    %2680 = vmatpush1.msra.mxu0 0.0
    %2681 = vmatprep.subr.mxu0 0.0
    %2682 = vmatpush1.msra.mxu0 0.0
    %2683 = vmatprep.subr.mxu0 0.0
    %2684 = vmatpush1.msra.mxu0 0.0
    %2685 = vmatprep.subr.mxu0 0.0
    %2686 = vmatpush1.msra.mxu0 0.0
    %2687 = vmatprep.subr.mxu0 0.0
    %2688 = vmatpush1.msra.mxu0 0.0
    %2689 = vmatprep.mubr.f32.mxu0 0.0
    %2690 = vmatmul.mubr.f32.gmra.mrb[0].mxu0 %v2623
    %v2691 = vpop.f32.mrb[0].mxu0
    %v2692 = vadd.f32 0.0, %v2691
    %v2693 = vpop.f32.mrb[0].mxu0
    %2694 = vdwg.mxu0
    %2696 = vrot.lane.b32.xlu0 %v2620, 32
    %v2697 = vpop.permute.xlu0 %2696
    %v2698 = vsel %vm151, %v2697, 0
    %2700 = vmatprep.subr.mxu0 0.0
    %2701 = vmatpush1.msra.mxu0 %v136
    %2702 = vmatprep.subr.mxu0 0.0
    %2703 = vmatpush1.msra.mxu0 %v137
    %2704 = vmatprep.subr.mxu0 0.0
    %2705 = vmatpush1.msra.mxu0 %v138
    %2706 = vmatprep.subr.mxu0 0.0
    %2707 = vmatpush1.msra.mxu0 %v139
    %2708 = vmatprep.subr.mxu0 0.0
    %2709 = vmatpush1.msra.mxu0 0.0
    %2710 = vmatprep.subr.mxu0 0.0
    %2711 = vmatpush1.msra.mxu0 0.0
    %2712 = vmatprep.subr.mxu0 0.0
    %2713 = vmatpush1.msra.mxu0 0.0
    %2714 = vmatprep.subr.mxu0 0.0
    %2715 = vmatpush1.msra.mxu0 0.0
    %2716 = vmatprep.subr.mxu0 0.0
    %2717 = vmatpush1.msra.mxu0 0.0
    %2718 = vmatprep.subr.mxu0 0.0
    %2719 = vmatpush1.msra.mxu0 0.0
    %2720 = vmatprep.subr.mxu0 0.0
    %2721 = vmatpush1.msra.mxu0 0.0
    %2722 = vmatprep.subr.mxu0 0.0
    %2723 = vmatpush1.msra.mxu0 0.0
    %2724 = vmatprep.subr.mxu0 0.0
    %2725 = vmatpush1.msra.mxu0 0.0
    %2726 = vmatprep.subr.mxu0 0.0
    %2727 = vmatpush1.msra.mxu0 0.0
    %2728 = vmatprep.subr.mxu0 0.0
    %2729 = vmatpush1.msra.mxu0 0.0
    %2730 = vmatprep.subr.mxu0 0.0
    %2731 = vmatpush1.msra.mxu0 0.0
    %2732 = vmatprep.subr.mxu0 0.0
    %2733 = vmatpush1.msra.mxu0 0.0
    %2734 = vmatprep.subr.mxu0 0.0
    %2735 = vmatpush1.msra.mxu0 0.0
    %2736 = vmatprep.subr.mxu0 0.0
    %2737 = vmatpush1.msra.mxu0 0.0
    %2738 = vmatprep.subr.mxu0 0.0
    %2739 = vmatpush1.msra.mxu0 0.0
    %2740 = vmatprep.subr.mxu0 0.0
    %2741 = vmatpush1.msra.mxu0 0.0
    %2742 = vmatprep.subr.mxu0 0.0
    %2743 = vmatpush1.msra.mxu0 0.0
    %2744 = vmatprep.subr.mxu0 0.0
    %2745 = vmatpush1.msra.mxu0 0.0
    %2746 = vmatprep.subr.mxu0 0.0
    %2747 = vmatpush1.msra.mxu0 0.0
    %2748 = vmatprep.subr.mxu0 0.0
    %2749 = vmatpush1.msra.mxu0 0.0
    %2750 = vmatprep.subr.mxu0 0.0
    %2751 = vmatpush1.msra.mxu0 0.0
    %2752 = vmatprep.subr.mxu0 0.0
    %2753 = vmatpush1.msra.mxu0 0.0
    %2754 = vmatprep.subr.mxu0 0.0
    %2755 = vmatpush1.msra.mxu0 0.0
    %2756 = vmatprep.subr.mxu0 0.0
    %2757 = vmatpush1.msra.mxu0 0.0
    %2758 = vmatprep.subr.mxu0 0.0
    %2759 = vmatpush1.msra.mxu0 0.0
    %2760 = vmatprep.subr.mxu0 0.0
    %2761 = vmatpush1.msra.mxu0 0.0
    %2762 = vmatprep.subr.mxu0 0.0
    %2763 = vmatpush1.msra.mxu0 0.0
    %2764 = vmatprep.mubr.f32.mxu0 0.0
    %2765 = vmatmul.mubr.f32.gmra.mrb[0].mxu0 %v2698
    %v2766 = vpop.f32.mrb[0].mxu0
    %v2767 = vadd.f32 %v2692, %v2766
    %v2768 = vpop.f32.mrb[0].mxu0
    %2769 = vdwg.mxu0
    %v2770 = vadd.f32 %v2767, %v149
    %v2771 = vxor.u32 %v2770, 2147483648
    %v2772 = vmul.f32 %v2771, 1.442695
    %v2773 = vpow.pop %v2772
    %v2774 = vadd.f32 %v2773, 1.0
    %v2775 = vrcp.pop %v2774
    %v2776 = vmul.f32 1.0, %v2775
    %v2777 = vtanh.pop %v2770
    %v2778 = vmul.f32 %v2776, %v2405
    %2780 = vrot.lane.b32.xlu0 %v2777, 64
    %v2781 = vpop.permute.xlu0 %2780
    %v2783 = vmul.f32 %v2776, %v2781
    %2785 = vrot.lane.b32.xlu0 %v2783, 32
    %v2786 = vpop.permute.xlu0 %2785
    %v2788 = vadd.f32 %v2778, %v2786
    %v2789 = vtanh.pop %v2788
    %2791 = vrot.lane.b32.xlu0 %v2789, 64
    %v2792 = vpop.permute.xlu0 %2791
    %v2794 = vmul.f32 %v2776, %v2792
    %v2797 = vunpack.c.l.s4 1966171168
    %v2798 = vunpack.c.0.s8 %v2797
    %v2799 = vlaneseq
    %v2800 = vshrl.u32 %v2799, 7
    %v2801 = vsub.s32 %v2798, %v2800
    %v2802 = vrot.slane %v2794, %v2801
    %v2803 = vcombine.high %v2802, %v2802
    %v2805 = vunpack.c.l.s4 1966171168
    %v2806 = vunpack.c.0.s8 %v2805
    %v2807 = vlaneseq
    %v2808 = vshrl.u32 %v2807, 7
    %v2809 = vsub.s32 %v2806, %v2808
    %v2810 = vrot.slane %v2802, %v2809
    %v2812 = vunpack.c.l.s4 1966171168
    %v2813 = vunpack.c.0.s8 %v2812
    %v2814 = vlaneseq
    %v2815 = vshrl.u32 %v2814, 7
    %v2816 = vsub.s32 %v2813, %v2815
    %v2817 = vrot.slane %v2803, %v2816
    %v2818 = vlaneseq
    %v2819 = vshrl.u32 %v2818, 7
    %v2820 = vsub.s32 0, %v2819
    %v2821 = vrot.slane %v2810, %v2820
    %v2822 = vlaneseq
    %v2823 = vshrl.u32 %v2822, 7
    %v2824 = vsub.s32 0, %v2823
    %v2825 = vrot.slane %v2817, %v2824
    %2826 = vrot.lane.b32.xlu0 %v2821, 32
    %v2827 = vpop.permute.xlu0 %2826
    %2828 = vrot.lane.b32.xlu0 %v2825, 32
    %v2829 = vpop.permute.xlu0 %2828
    %2832 = vst.msk [vmem:[#allocation2 + $0x6] sm:$0x1] %vm534, %v2827
    %2833 = vst.msk [vmem:[#allocation2 + $0xe] sm:$0x1] %vm534, %v2829
    %2834 = vmatprep.subr.mxu0 0.0
    %2835 = vmatpush1.msra.mxu0 %v125
    %2836 = vmatprep.subr.mxu0 0.0
    %2837 = vmatpush1.msra.mxu0 %v126
    %2838 = vmatprep.subr.mxu0 0.0
    %2839 = vmatpush1.msra.mxu0 %v127
    %2840 = vmatprep.subr.mxu0 0.0
    %2841 = vmatpush1.msra.mxu0 %v128
    %2842 = vmatprep.subr.mxu0 0.0
    %2843 = vmatpush1.msra.mxu0 0.0
    %2844 = vmatprep.subr.mxu0 0.0
    %2845 = vmatpush1.msra.mxu0 0.0
    %2846 = vmatprep.subr.mxu0 0.0
    %2847 = vmatpush1.msra.mxu0 0.0
    %2848 = vmatprep.subr.mxu0 0.0
    %2849 = vmatpush1.msra.mxu0 0.0
    %2850 = vmatprep.subr.mxu0 0.0
    %2851 = vmatpush1.msra.mxu0 0.0
    %2852 = vmatprep.subr.mxu0 0.0
    %2853 = vmatpush1.msra.mxu0 0.0
    %2854 = vmatprep.subr.mxu0 0.0
    %2855 = vmatpush1.msra.mxu0 0.0
    %2856 = vmatprep.subr.mxu0 0.0
    %2857 = vmatpush1.msra.mxu0 0.0
    %2858 = vmatprep.subr.mxu0 0.0
    %2859 = vmatpush1.msra.mxu0 0.0
    %2860 = vmatprep.subr.mxu0 0.0
    %2861 = vmatpush1.msra.mxu0 0.0
    %2862 = vmatprep.subr.mxu0 0.0
    %2863 = vmatpush1.msra.mxu0 0.0
    %2864 = vmatprep.subr.mxu0 0.0
    %2865 = vmatpush1.msra.mxu0 0.0
    %2866 = vmatprep.subr.mxu0 0.0
    %2867 = vmatpush1.msra.mxu0 0.0
    %2868 = vmatprep.subr.mxu0 0.0
    %2869 = vmatpush1.msra.mxu0 0.0
    %2870 = vmatprep.subr.mxu0 0.0
    %2871 = vmatpush1.msra.mxu0 0.0
    %2872 = vmatprep.subr.mxu0 0.0
    %2873 = vmatpush1.msra.mxu0 0.0
    %2874 = vmatprep.subr.mxu0 0.0
    %2875 = vmatpush1.msra.mxu0 0.0
    %2876 = vmatprep.subr.mxu0 0.0
    %2877 = vmatpush1.msra.mxu0 0.0
    %2878 = vmatprep.subr.mxu0 0.0
    %2879 = vmatpush1.msra.mxu0 0.0
    %2880 = vmatprep.subr.mxu0 0.0
    %2881 = vmatpush1.msra.mxu0 0.0
    %2882 = vmatprep.subr.mxu0 0.0
    %2883 = vmatpush1.msra.mxu0 0.0
    %2884 = vmatprep.subr.mxu0 0.0
    %2885 = vmatpush1.msra.mxu0 0.0
    %2886 = vmatprep.subr.mxu0 0.0
    %2887 = vmatpush1.msra.mxu0 0.0
    %2888 = vmatprep.subr.mxu0 0.0
    %2889 = vmatpush1.msra.mxu0 0.0
    %2890 = vmatprep.subr.mxu0 0.0
    %2891 = vmatpush1.msra.mxu0 0.0
    %2892 = vmatprep.subr.mxu0 0.0
    %2893 = vmatpush1.msra.mxu0 0.0
    %2894 = vmatprep.subr.mxu0 0.0
    %2895 = vmatpush1.msra.mxu0 0.0
    %2896 = vmatprep.subr.mxu0 0.0
    %2897 = vmatpush1.msra.mxu0 0.0
    %2898 = vmatprep.mubr.f32.mxu0 0.0
    %2899 = vmatmul.mubr.f32.gmra.mrb[0].mxu0 %v2698
    %v2900 = vpop.f32.mrb[0].mxu0
    %v2901 = vadd.f32 0.0, %v2900
    %v2902 = vpop.f32.mrb[0].mxu0
    %2903 = vdwg.mxu0
    %v2904 = vrot.slane %v118, 7
    %v2905 = vrot.slane %v119, 6
    %v2906 = vsel %vm228, %v2905, %v2904
    %v2907 = vsel %vm120, %v2906, 0
    %2909 = vmatprep.subr.mxu0 0.0
    %2910 = vmatpush1.msra.mxu0 %v123
    %2911 = vmatprep.subr.mxu0 0.0
    %2912 = vmatpush1.msra.mxu0 %v124
    %2913 = vmatprep.subr.mxu0 0.0
    %2914 = vmatpush1.msra.mxu0 0.0
    %2915 = vmatprep.subr.mxu0 0.0
    %2916 = vmatpush1.msra.mxu0 0.0
    %2917 = vmatprep.subr.mxu0 0.0
    %2918 = vmatpush1.msra.mxu0 0.0
    %2919 = vmatprep.subr.mxu0 0.0
    %2920 = vmatpush1.msra.mxu0 0.0
    %2921 = vmatprep.subr.mxu0 0.0
    %2922 = vmatpush1.msra.mxu0 0.0
    %2923 = vmatprep.subr.mxu0 0.0
    %2924 = vmatpush1.msra.mxu0 0.0
    %2925 = vmatprep.subr.mxu0 0.0
    %2926 = vmatpush1.msra.mxu0 0.0
    %2927 = vmatprep.subr.mxu0 0.0
    %2928 = vmatpush1.msra.mxu0 0.0
    %2929 = vmatprep.subr.mxu0 0.0
    %2930 = vmatpush1.msra.mxu0 0.0
    %2931 = vmatprep.subr.mxu0 0.0
    %2932 = vmatpush1.msra.mxu0 0.0
    %2933 = vmatprep.subr.mxu0 0.0
    %2934 = vmatpush1.msra.mxu0 0.0
    %2935 = vmatprep.subr.mxu0 0.0
    %2936 = vmatpush1.msra.mxu0 0.0
    %2937 = vmatprep.subr.mxu0 0.0
    %2938 = vmatpush1.msra.mxu0 0.0
    %2939 = vmatprep.subr.mxu0 0.0
    %2940 = vmatpush1.msra.mxu0 0.0
    %2941 = vmatprep.subr.mxu0 0.0
    %2942 = vmatpush1.msra.mxu0 0.0
    %2943 = vmatprep.subr.mxu0 0.0
    %2944 = vmatpush1.msra.mxu0 0.0
    %2945 = vmatprep.subr.mxu0 0.0
    %2946 = vmatpush1.msra.mxu0 0.0
    %2947 = vmatprep.subr.mxu0 0.0
    %2948 = vmatpush1.msra.mxu0 0.0
    %2949 = vmatprep.subr.mxu0 0.0
    %2950 = vmatpush1.msra.mxu0 0.0
    %2951 = vmatprep.subr.mxu0 0.0
    %2952 = vmatpush1.msra.mxu0 0.0
    %2953 = vmatprep.subr.mxu0 0.0
    %2954 = vmatpush1.msra.mxu0 0.0
    %2955 = vmatprep.subr.mxu0 0.0
    %2956 = vmatpush1.msra.mxu0 0.0
    %2957 = vmatprep.subr.mxu0 0.0
    %2958 = vmatpush1.msra.mxu0 0.0
    %2959 = vmatprep.subr.mxu0 0.0
    %2960 = vmatpush1.msra.mxu0 0.0
    %2961 = vmatprep.subr.mxu0 0.0
    %2962 = vmatpush1.msra.mxu0 0.0
    %2963 = vmatprep.subr.mxu0 0.0
    %2964 = vmatpush1.msra.mxu0 0.0
    %2965 = vmatprep.subr.mxu0 0.0
    %2966 = vmatpush1.msra.mxu0 0.0
    %2967 = vmatprep.subr.mxu0 0.0
    %2968 = vmatpush1.msra.mxu0 0.0
    %2969 = vmatprep.subr.mxu0 0.0
    %2970 = vmatpush1.msra.mxu0 0.0
    %2971 = vmatprep.subr.mxu0 0.0
    %2972 = vmatpush1.msra.mxu0 0.0
    %2973 = vmatprep.mubr.f32.mxu0 0.0
    %2974 = vmatmul.mubr.f32.gmra.mrb[0].mxu0 %v2907
    %v2975 = vpop.f32.mrb[0].mxu0
    %v2976 = vadd.f32 %v2901, %v2975
    %v2977 = vpop.f32.mrb[0].mxu0
    %2978 = vdwg.mxu0
    %v2979 = vadd.f32 %v2976, %v134
    %v2980 = vxor.u32 %v2979, 2147483648
    %v2981 = vmul.f32 %v2980, 1.442695
    %v2982 = vpow.pop %v2981
    %v2983 = vadd.f32 %v2982, 1.0
    %v2984 = vrcp.pop %v2983
    %v2985 = vmul.f32 1.0, %v2984
    %v2986 = vtanh.pop %v2979
    %v2987 = vmul.f32 %v2985, %v2614
    %2989 = vrot.lane.b32.xlu0 %v2986, 64
    %v2990 = vpop.permute.xlu0 %2989
    %v2992 = vmul.f32 %v2985, %v2990
    %2994 = vrot.lane.b32.xlu0 %v2992, 32
    %v2995 = vpop.permute.xlu0 %2994
    %v2997 = vadd.f32 %v2987, %v2995
    %v2998 = vtanh.pop %v2997
    %3000 = vrot.lane.b32.xlu0 %v2998, 64
    %v3001 = vpop.permute.xlu0 %3000
    %v3003 = vmul.f32 %v2985, %v3001
    %3004 = vrot.lane.b32.xlu0 %v2794, 32
    %v3005 = vpop.permute.xlu0 %3004
    %v3006 = vsel %vm151, %v3005, 0
    %3008 = vmatprep.subr.mxu0 0.0
    %3009 = vmatpush1.msra.mxu0 %v140
    %3010 = vmatprep.subr.mxu0 0.0
    %3011 = vmatpush1.msra.mxu0 %v141
    %3012 = vmatprep.subr.mxu0 0.0
    %3013 = vmatpush1.msra.mxu0 %v142
    %3014 = vmatprep.subr.mxu0 0.0
    %3015 = vmatpush1.msra.mxu0 %v143
    %3016 = vmatprep.subr.mxu0 0.0
    %3017 = vmatpush1.msra.mxu0 0.0
    %3018 = vmatprep.subr.mxu0 0.0
    %3019 = vmatpush1.msra.mxu0 0.0
    %3020 = vmatprep.subr.mxu0 0.0
    %3021 = vmatpush1.msra.mxu0 0.0
    %3022 = vmatprep.subr.mxu0 0.0
    %3023 = vmatpush1.msra.mxu0 0.0
    %3024 = vmatprep.subr.mxu0 0.0
    %3025 = vmatpush1.msra.mxu0 0.0
    %3026 = vmatprep.subr.mxu0 0.0
    %3027 = vmatpush1.msra.mxu0 0.0
    %3028 = vmatprep.subr.mxu0 0.0
    %3029 = vmatpush1.msra.mxu0 0.0
    %3030 = vmatprep.subr.mxu0 0.0
    %3031 = vmatpush1.msra.mxu0 0.0
    %3032 = vmatprep.subr.mxu0 0.0
    %3033 = vmatpush1.msra.mxu0 0.0
    %3034 = vmatprep.subr.mxu0 0.0
    %3035 = vmatpush1.msra.mxu0 0.0
    %3036 = vmatprep.subr.mxu0 0.0
    %3037 = vmatpush1.msra.mxu0 0.0
    %3038 = vmatprep.subr.mxu0 0.0
    %3039 = vmatpush1.msra.mxu0 0.0
    %3040 = vmatprep.subr.mxu0 0.0
    %3041 = vmatpush1.msra.mxu0 0.0
    %3042 = vmatprep.subr.mxu0 0.0
    %3043 = vmatpush1.msra.mxu0 0.0
    %3044 = vmatprep.subr.mxu0 0.0
    %3045 = vmatpush1.msra.mxu0 0.0
    %3046 = vmatprep.subr.mxu0 0.0
    %3047 = vmatpush1.msra.mxu0 0.0
    %3048 = vmatprep.subr.mxu0 0.0
    %3049 = vmatpush1.msra.mxu0 0.0
    %3050 = vmatprep.subr.mxu0 0.0
    %3051 = vmatpush1.msra.mxu0 0.0
    %3052 = vmatprep.subr.mxu0 0.0
    %3053 = vmatpush1.msra.mxu0 0.0
    %3054 = vmatprep.subr.mxu0 0.0
    %3055 = vmatpush1.msra.mxu0 0.0
    %3056 = vmatprep.subr.mxu0 0.0
    %3057 = vmatpush1.msra.mxu0 0.0
    %3058 = vmatprep.subr.mxu0 0.0
    %3059 = vmatpush1.msra.mxu0 0.0
    %3060 = vmatprep.subr.mxu0 0.0
    %3061 = vmatpush1.msra.mxu0 0.0
    %3062 = vmatprep.subr.mxu0 0.0
    %3063 = vmatpush1.msra.mxu0 0.0
    %3064 = vmatprep.subr.mxu0 0.0
    %3065 = vmatpush1.msra.mxu0 0.0
    %3066 = vmatprep.subr.mxu0 0.0
    %3067 = vmatpush1.msra.mxu0 0.0
    %3068 = vmatprep.subr.mxu0 0.0
    %3069 = vmatpush1.msra.mxu0 0.0
    %3070 = vmatprep.subr.mxu0 0.0
    %3071 = vmatpush1.msra.mxu0 0.0
    %3072 = vmatprep.mubr.f32.mxu0 0.0
    %3073 = vmatmul.mubr.f32.gmra.mrb[0].mxu0 %v3006
    %v3074 = vpop.f32.mrb[0].mxu0
    %v3075 = vadd.f32 0.0, %v3074
    %v3076 = vpop.f32.mrb[0].mxu0
    %3077 = vdwg.mxu0
    %3079 = vrot.lane.b32.xlu0 %v3003, 32
    %v3080 = vpop.permute.xlu0 %3079
    %v3081 = vsel %vm151, %v3080, 0
    %3083 = vmatprep.subr.mxu0 0.0
    %3084 = vmatpush1.msra.mxu0 %v136
    %3085 = vmatprep.subr.mxu0 0.0
    %3086 = vmatpush1.msra.mxu0 %v137
    %3087 = vmatprep.subr.mxu0 0.0
    %3088 = vmatpush1.msra.mxu0 %v138
    %3089 = vmatprep.subr.mxu0 0.0
    %3090 = vmatpush1.msra.mxu0 %v139
    %3091 = vmatprep.subr.mxu0 0.0
    %3092 = vmatpush1.msra.mxu0 0.0
    %3093 = vmatprep.subr.mxu0 0.0
    %3094 = vmatpush1.msra.mxu0 0.0
    %3095 = vmatprep.subr.mxu0 0.0
    %3096 = vmatpush1.msra.mxu0 0.0
    %3097 = vmatprep.subr.mxu0 0.0
    %3098 = vmatpush1.msra.mxu0 0.0
    %3099 = vmatprep.subr.mxu0 0.0
    %3100 = vmatpush1.msra.mxu0 0.0
    %3101 = vmatprep.subr.mxu0 0.0
    %3102 = vmatpush1.msra.mxu0 0.0
    %3103 = vmatprep.subr.mxu0 0.0
    %3104 = vmatpush1.msra.mxu0 0.0
    %3105 = vmatprep.subr.mxu0 0.0
    %3106 = vmatpush1.msra.mxu0 0.0
    %3107 = vmatprep.subr.mxu0 0.0
    %3108 = vmatpush1.msra.mxu0 0.0
    %3109 = vmatprep.subr.mxu0 0.0
    %3110 = vmatpush1.msra.mxu0 0.0
    %3111 = vmatprep.subr.mxu0 0.0
    %3112 = vmatpush1.msra.mxu0 0.0
    %3113 = vmatprep.subr.mxu0 0.0
    %3114 = vmatpush1.msra.mxu0 0.0
    %3115 = vmatprep.subr.mxu0 0.0
    %3116 = vmatpush1.msra.mxu0 0.0
    %3117 = vmatprep.subr.mxu0 0.0
    %3118 = vmatpush1.msra.mxu0 0.0
    %3119 = vmatprep.subr.mxu0 0.0
    %3120 = vmatpush1.msra.mxu0 0.0
    %3121 = vmatprep.subr.mxu0 0.0
    %3122 = vmatpush1.msra.mxu0 0.0
    %3123 = vmatprep.subr.mxu0 0.0
    %3124 = vmatpush1.msra.mxu0 0.0
    %3125 = vmatprep.subr.mxu0 0.0
    %3126 = vmatpush1.msra.mxu0 0.0
    %3127 = vmatprep.subr.mxu0 0.0
    %3128 = vmatpush1.msra.mxu0 0.0
    %3129 = vmatprep.subr.mxu0 0.0
    %3130 = vmatpush1.msra.mxu0 0.0
    %3131 = vmatprep.subr.mxu0 0.0
    %3132 = vmatpush1.msra.mxu0 0.0
    %3133 = vmatprep.subr.mxu0 0.0
    %3134 = vmatpush1.msra.mxu0 0.0
    %3135 = vmatprep.subr.mxu0 0.0
    %3136 = vmatpush1.msra.mxu0 0.0
    %3137 = vmatprep.subr.mxu0 0.0
    %3138 = vmatpush1.msra.mxu0 0.0
    %3139 = vmatprep.subr.mxu0 0.0
    %3140 = vmatpush1.msra.mxu0 0.0
    %3141 = vmatprep.subr.mxu0 0.0
    %3142 = vmatpush1.msra.mxu0 0.0
    %3143 = vmatprep.subr.mxu0 0.0
    %3144 = vmatpush1.msra.mxu0 0.0
    %3145 = vmatprep.subr.mxu0 0.0
    %3146 = vmatpush1.msra.mxu0 0.0
    %3147 = vmatprep.mubr.f32.mxu0 0.0
    %3148 = vmatmul.mubr.f32.gmra.mrb[0].mxu0 %v3081
    %v3149 = vpop.f32.mrb[0].mxu0
    %v3150 = vadd.f32 %v3075, %v3149
    %v3151 = vpop.f32.mrb[0].mxu0
    %3152 = vdwg.mxu0
    %v3153 = vadd.f32 %v3150, %v149
    %v3154 = vxor.u32 %v3153, 2147483648
    %v3155 = vmul.f32 %v3154, 1.442695
    %v3156 = vpow.pop %v3155
    %v3157 = vadd.f32 %v3156, 1.0
    %v3158 = vrcp.pop %v3157
    %v3159 = vmul.f32 1.0, %v3158
    %v3160 = vtanh.pop %v3153
    %v3161 = vmul.f32 %v3159, %v2788
    %3163 = vrot.lane.b32.xlu0 %v3160, 64
    %v3164 = vpop.permute.xlu0 %3163
    %v3166 = vmul.f32 %v3159, %v3164
    %3168 = vrot.lane.b32.xlu0 %v3166, 32
    %v3169 = vpop.permute.xlu0 %3168
    %v3171 = vadd.f32 %v3161, %v3169
    %v3172 = vtanh.pop %v3171
    %3174 = vrot.lane.b32.xlu0 %v3172, 64
    %v3175 = vpop.permute.xlu0 %3174
    %v3177 = vmul.f32 %v3159, %v3175
    %v3180 = vunpack.c.l.s4 1966171168
    %v3181 = vunpack.c.0.s8 %v3180
    %v3182 = vlaneseq
    %v3183 = vshrl.u32 %v3182, 7
    %v3184 = vsub.s32 %v3181, %v3183
    %v3185 = vrot.slane %v3177, %v3184
    %v3186 = vcombine.high %v3185, %v3185
    %v3188 = vunpack.c.l.s4 1966171168
    %v3189 = vunpack.c.0.s8 %v3188
    %v3190 = vlaneseq
    %v3191 = vshrl.u32 %v3190, 7
    %v3192 = vsub.s32 %v3189, %v3191
    %v3193 = vrot.slane %v3185, %v3192
    %v3195 = vunpack.c.l.s4 1966171168
    %v3196 = vunpack.c.0.s8 %v3195
    %v3197 = vlaneseq
    %v3198 = vshrl.u32 %v3197, 7
    %v3199 = vsub.s32 %v3196, %v3198
    %v3200 = vrot.slane %v3186, %v3199
    %v3201 = vlaneseq
    %v3202 = vshrl.u32 %v3201, 7
    %v3203 = vsub.s32 0, %v3202
    %v3204 = vrot.slane %v3193, %v3203
    %v3205 = vlaneseq
    %v3206 = vshrl.u32 %v3205, 7
    %v3207 = vsub.s32 0, %v3206
    %v3208 = vrot.slane %v3200, %v3207
    %3209 = vrot.lane.b32.xlu0 %v3204, 32
    %v3210 = vpop.permute.xlu0 %3209
    %3211 = vrot.lane.b32.xlu0 %v3208, 32
    %v3212 = vpop.permute.xlu0 %3211
    %3215 = vst.msk [vmem:[#allocation2 + $0x7] sm:$0x1] %vm534, %v3210
    %3216 = vst.msk [vmem:[#allocation2 + $0xf] sm:$0x1] %vm534, %v3212
    %v3217 = vld [vmem:[#allocation2] sm:$0xff]
    %v3218 = vld [vmem:[#allocation2 + $0x8] sm:$0xff]
    %v3219 = vld [vmem:[%s8] sm:$0xff]
    %v3220 = vld [vmem:[%s8 + $0x8] sm:$0xff]
    %v3221 = vld [vmem:[%s8 + $0x10] sm:$0xff]
    %v3222 = vld [vmem:[%s8 + $0x18] sm:$0xff]
    %v3223 = vld [vmem:[%s9] sm:$0x1]
    %v3225 = vlaneseq
    %v3226 = vshrl.u32 %v3225, 7
    %v3227 = vsub.s32 0, %v3226
    %v3228 = vrot.slane %v3223, %v3227
    %v3231 = vsel %vm151, %v3217, 0
    %v3234 = vsel %vm151, %v3218, 0
    %3236 = vmatprep.subr.mxu0 0.0
    %3237 = vmatpush1.msra.mxu0 %v3219
    %3238 = vmatprep.subr.mxu0 0.0
    %3239 = vmatpush1.msra.mxu0 %v3220
    %3240 = vmatprep.subr.mxu0 0.0
    %3241 = vmatpush1.msra.mxu0 %v3221
    %3242 = vmatprep.subr.mxu0 0.0
    %3243 = vmatpush1.msra.mxu0 %v3222
    %3244 = vmatprep.subr.mxu0 0.0
    %3245 = vmatpush1.msra.mxu0 0.0
    %3246 = vmatprep.subr.mxu0 0.0
    %3247 = vmatpush1.msra.mxu0 0.0
    %3248 = vmatprep.subr.mxu0 0.0
    %3249 = vmatpush1.msra.mxu0 0.0
    %3250 = vmatprep.subr.mxu0 0.0
    %3251 = vmatpush1.msra.mxu0 0.0
    %3252 = vmatprep.subr.mxu0 0.0
    %3253 = vmatpush1.msra.mxu0 0.0
    %3254 = vmatprep.subr.mxu0 0.0
    %3255 = vmatpush1.msra.mxu0 0.0
    %3256 = vmatprep.subr.mxu0 0.0
    %3257 = vmatpush1.msra.mxu0 0.0
    %3258 = vmatprep.subr.mxu0 0.0
    %3259 = vmatpush1.msra.mxu0 0.0
    %3260 = vmatprep.subr.mxu0 0.0
    %3261 = vmatpush1.msra.mxu0 0.0
    %3262 = vmatprep.subr.mxu0 0.0
    %3263 = vmatpush1.msra.mxu0 0.0
    %3264 = vmatprep.subr.mxu0 0.0
    %3265 = vmatpush1.msra.mxu0 0.0
    %3266 = vmatprep.subr.mxu0 0.0
    %3267 = vmatpush1.msra.mxu0 0.0
    %3268 = vmatprep.subr.mxu0 0.0
    %3269 = vmatpush1.msra.mxu0 0.0
    %3270 = vmatprep.subr.mxu0 0.0
    %3271 = vmatpush1.msra.mxu0 0.0
    %3272 = vmatprep.subr.mxu0 0.0
    %3273 = vmatpush1.msra.mxu0 0.0
    %3274 = vmatprep.subr.mxu0 0.0
    %3275 = vmatpush1.msra.mxu0 0.0
    %3276 = vmatprep.subr.mxu0 0.0
    %3277 = vmatpush1.msra.mxu0 0.0
    %3278 = vmatprep.subr.mxu0 0.0
    %3279 = vmatpush1.msra.mxu0 0.0
    %3280 = vmatprep.subr.mxu0 0.0
    %3281 = vmatpush1.msra.mxu0 0.0
    %3282 = vmatprep.subr.mxu0 0.0
    %3283 = vmatpush1.msra.mxu0 0.0
    %3284 = vmatprep.subr.mxu0 0.0
    %3285 = vmatpush1.msra.mxu0 0.0
    %3286 = vmatprep.subr.mxu0 0.0
    %3287 = vmatpush1.msra.mxu0 0.0
    %3288 = vmatprep.subr.mxu0 0.0
    %3289 = vmatpush1.msra.mxu0 0.0
    %3290 = vmatprep.subr.mxu0 0.0
    %3291 = vmatpush1.msra.mxu0 0.0
    %3292 = vmatprep.subr.mxu0 0.0
    %3293 = vmatpush1.msra.mxu0 0.0
    %3294 = vmatprep.subr.mxu0 0.0
    %3295 = vmatpush1.msra.mxu0 0.0
    %3296 = vmatprep.subr.mxu0 0.0
    %3297 = vmatpush1.msra.mxu0 0.0
    %3298 = vmatprep.subr.mxu0 0.0
    %3299 = vmatpush1.msra.mxu0 0.0
    %3300 = vmatprep.mubr.f32.mxu0 0.0
    %3301 = vmatmul.mubr.f32.gmra.mrb[0].mxu0 %v3231
    %v3302 = vpop.f32.mrb[0].mxu0
    %v3303 = vadd.f32 %v3228, %v3302
    %v3304 = vpop.f32.mrb[0].mxu0
    %3305 = vmatprep.mubr.f32.mxu0 0.0
    %3306 = vmatmul.mubr.f32.gmra.mrb[0].mxu0 %v3234
    %v3307 = vpop.f32.mrb[0].mxu0
    %v3308 = vadd.f32 %v3228, %v3307
    %v3309 = vpop.f32.mrb[0].mxu0
    %3310 = vdwg.mxu0
    %vm3311 = vcmask 195584
    %3312 = vst.msk [vmem:[#allocation10] sm:$0xff] %vm3311, %v3303
    %3313 = vst.msk [vmem:[#allocation10 + $0x8] sm:$0xff] %vm3311, %v3308
    %vm3315 = vcmask 254976
    %3316 = vst.msk [vmem:[#allocation11] sm:$0x3] %vm3315, %v3080
    %3317 = vrot.lane.b32.xlu0 %v3177, 32
    %v3318 = vpop.permute.xlu0 %3317
    %s3320 = scalar_lea.vmem [#allocation11], 2
    %3321 = vst.msk [vmem:[%s3320] sm:$0x3] %vm3315, %v3318
    // Predicated region
    $region54: #{tpu_custom_call.1} parent=1 // pred_check
      _
    $region55: #{tpu_custom_call.1} parent=1 // pred_check_branch
      %3323 = sbr.rel (0) target = $region57
    $region56: #{tpu_custom_call.1} parent=1 // pred_region
      %s3325 = ssub.s32 256, 256
      %3326 = vsyncadd [#allocation6], %s3325
      %s3327 = sshll.u32 [#allocation10], 4
      %s3328 = int_to_ptr.vmem [resolvable:$true] %s3327
      %3333 = dma.vmem_to_hbm [thread:$0]  %s3328, 256, %s10, [#allocation6], 128, 128, 8
    $region57: #{tpu_custom_call.1} parent=1 // pred_fallthru
      _
    // Predicated region
    $region58: #{tpu_custom_call.1} parent=1 // pred_check
      _
    $region59: #{tpu_custom_call.1} parent=1 // pred_check_branch
      %3335 = sbr.rel (0) target = $region61
    $region60: #{tpu_custom_call.1} parent=1 // pred_region
      %s3337 = ssub.s32 64, 64
      %3338 = vsyncadd [#allocation12], %s3337
      %s3339 = sshll.u32 [#allocation11], 4
      %s3340 = int_to_ptr.vmem [resolvable:$true] %s3339
      %3345 = dma.vmem_to_hbm [thread:$0]  %s3340, 64, %s11, [#allocation12], 32, 32, 2
    $region61: #{tpu_custom_call.1} parent=1 // pred_fallthru
      _
    // Predicated region
    $region62: #{tpu_custom_call.1} parent=1 // pred_check
      _
    $region63: #{tpu_custom_call.1} parent=1 // pred_check_branch
      %3347 = sbr.rel (0) target = $region65
    $region64: #{tpu_custom_call.1} parent=1 // pred_region
      %s3349 = ssub.s32 256, 256
      %3350 = vsyncadd [#allocation12], %s3349
      %s3351 = sshll.u32 [#allocation13], 4
      %s3352 = int_to_ptr.vmem [resolvable:$true] %s3351
      %3357 = dma.vmem_to_hbm [thread:$0]  %s3352, 256, %s12, [#allocation12], 128, 128, 8
    $region65: #{tpu_custom_call.1} parent=1 // pred_fallthru
      _
    // Predicated region
    $region66: #{tpu_custom_call.1} parent=1 // pred_check
      _
    $region67: #{tpu_custom_call.1} parent=1 // pred_check_branch
      %3359 = sbr.rel (0) target = $region69
    $region68: #{tpu_custom_call.1} parent=1 // pred_region
      %3360 = dma.done [#allocation6], 256
    $region69: #{tpu_custom_call.1} parent=1 // pred_fallthru
      _
    // Predicated region
    $region70: #{tpu_custom_call.1} parent=1 // pred_check
      _
    $region71: #{tpu_custom_call.1} parent=1 // pred_check_branch
      %3362 = sbr.rel (0) target = $region73
    $region72: #{tpu_custom_call.1} parent=1 // pred_region
      %3363 = dma.done [#allocation12], 64
    $region73: #{tpu_custom_call.1} parent=1 // pred_fallthru
      _
    // Predicated region
    $region74: #{tpu_custom_call.1} parent=1 // pred_check
      _
    $region75: #{tpu_custom_call.1} parent=1 // pred_check_branch
      %3365 = sbr.rel (0) target = $region77
    $region76: #{tpu_custom_call.1} parent=1 // pred_region
      %3366 = dma.done [#allocation12], 256
    $region77: #{tpu_custom_call.1} parent=1 // pred_fallthru
      _
    %3367 = vsyncpa [#allocation5], 1
    %3368 = vsyncpa [#allocation8], 1
    %3369 = vsyncpa [#allocation6], 1
    %3370 = vsyncpa [#allocation12], 1

</llo_original>
